<compile_context>
chip_gen: v5e
topology: v5e:2x2
jax: 0.10.0
libtpu: 0.0.40
codegen_flags: <defaults>
</compile_context>

<pallas_src>
import functools

import jax
import jax.numpy as jnp
from jax import lax
from jax.experimental import pallas as pl
from jax.experimental.pallas import tpu as pltpu


# -----------------------------------------------------------------------------
# hardware-aware limits & tile-size helpers
# -----------------------------------------------------------------------------
@functools.lru_cache(maxsize=None)
def _vmem_limit_bytes():
    """~half of physical VMEM: 64 MiB on 128-MiB parts (v5e/v6e), 32 MiB on v7x."""
    cap = 128 * 1024 * 1024
    try:
        cap = int(pltpu.get_tpu_info().vmem_capacity_bytes)
    except Exception:
        pass
    return int(min(96 * 1024 * 1024, max(32 * 1024 * 1024, cap // 2)))


def _pick_k_tile(K, max_tk):
    """Largest multiple-of-128 divisor of K that is <= max_tk (else whole K)."""
    best = None
    t = 128
    while t <= min(K, max_tk):
        if K % t == 0:
            best = t
        t += 128
    return best if best is not None else K


def _pick_m_tile(M, max_tm=1024):
    """Largest divisor of M <= max_tm, preferring multiples of 16 (bf16 packs [16,128])."""
    for step in (16, 8):
        best = None
        t = step
        while t <= min(M, max_tm):
            if M % t == 0:
                best = t
            t += step
        if best is not None:
            return best
    return M


def _pick_b_tile(B):
    """Batch tile: multiple of 8 (sublane rule for [bt, dim] outputs) or whole batch;
    keep >=2 grid steps when possible so v7x's two TensorCores both get work."""
    for c in (16, 8):
        if B % c == 0 and B // c >= 2:
            return c
    return B


# -----------------------------------------------------------------------------
# Kernel 1: DenseCL projector (global MLP branch + dense 1x1-conv branch)
#   input  x : [bt, HW, C]  (channels on lanes)
#   output q : [bt, dim] (L2-normalized, f32)
#          grid : [bt, HW, dim] (per-position L2-normalized, bf16)
#          dense: [bt, dim] (avgpool of UNnormalized grid, then L2-normalized, f32)
# -----------------------------------------------------------------------------
def _densecl_projector_kernel(x_ref,
                              w1_ref, b1_ref, w2_ref, b2_ref, w3_ref, b3_ref,
                              cw1_ref, cb1_ref, cw2_ref, cb2_ref, cw3_ref, cb3_ref,
                              q_ref, grid_ref, dense_ref):
    f32 = jnp.float32
    bf16 = jnp.bfloat16
    x = x_ref[...]                                   # [bt, HW, C] f32
    bt, hw, c = x.shape

    def _l2norm(v):
        return v * lax.rsqrt(jnp.maximum(jnp.sum(v * v, axis=-1, keepdims=True), 1e-24))

    # ---- global branch: AdaptiveAvgPool2d((1,1)) -> Linear/ReLU/Linear/ReLU/Linear
    pooled = jnp.mean(x, axis=1).astype(bf16)                                   # [bt, C]
    h = jnp.maximum(jnp.dot(pooled, w1_ref[...],
                            preferred_element_type=f32) + b1_ref[...], 0.0)
    h = jnp.maximum(jnp.dot(h.astype(bf16), w2_ref[...],
                            preferred_element_type=f32) + b2_ref[...], 0.0)
    q = jnp.dot(h.astype(bf16), w3_ref[...], preferred_element_type=f32) + b3_ref[...]
    q_ref[...] = _l2norm(q)                                                     # [bt, dim]

    # ---- dense branch: 1x1 convs == ONE channel matmul chain over M = bt*HW rows
    xf = x.astype(bf16).reshape(bt * hw, c)                                     # [bt*HW, C]
    g = jnp.maximum(jnp.dot(xf, cw1_ref[...],
                            preferred_element_type=f32) + cb1_ref[...], 0.0)
    g = jnp.maximum(jnp.dot(g.astype(bf16), cw2_ref[...],
                            preferred_element_type=f32) + cb2_ref[...], 0.0)
    g = jnp.dot(g.astype(bf16), cw3_ref[...], preferred_element_type=f32) + cb3_ref[...]
    g3 = g.reshape(bt, hw, g.shape[-1])                                         # [bt, HW, dim]

    # dense avgpool over the UNnormalized grid, then L2-normalize (matches PyTorch order)
    d = jnp.mean(g3, axis=1)                                                    # [bt, dim]
    dense_ref[...] = _l2norm(d)

    # per-position L2 normalization fused; lane-dense bf16 whole-tile store
    grid_ref[...] = _l2norm(g3).astype(grid_ref.dtype)


def densecl_projector(x, p):
    """x: [B, HW, C] -> (q [B,dim] f32, grid [B,HW,dim] bf16, dense [B,dim] f32)."""
    B, HW, C = x.shape
    dim = p["w3"].shape[1]
    bt = _pick_b_tile(B)
    mat_keys = {"w1", "w2", "w3", "cw1", "cw2", "cw3"}
    wkeys = ("w1", "b1", "w2", "b2", "w3", "b3",
             "cw1", "cb1", "cw2", "cb2", "cw3", "cb3")
    # bf16 weights (native MXU rate, half the resident VMEM); biases stay f32.
    ws = [p[k].astype(jnp.bfloat16) if k in mat_keys else p[k] for k in wkeys]
    # TODO(synk): at real DenseCL sizes (hid=2048) the resident weights could additionally
    # be single-buffered (pipeline_mode) or the hidden dim tiled to cut VMEM further on v7x.

    def const_spec(a):
        n = a.ndim
        return pl.BlockSpec(a.shape, lambda b, n=n: (0,) * n)

    out_shapes = (jax.ShapeDtypeStruct((B, dim), jnp.float32),
                  jax.ShapeDtypeStruct((B, HW, dim), jnp.bfloat16),
                  jax.ShapeDtypeStruct((B, dim), jnp.float32))
    q, grid_out, dense = pl.pallas_call(
        _densecl_projector_kernel,
        out_shape=out_shapes,
        grid=(B // bt,),
        in_specs=[pl.BlockSpec((bt, HW, C), lambda b: (b, 0, 0))]
                 + [const_spec(w) for w in ws],
        out_specs=(pl.BlockSpec((bt, dim), lambda b: (b, 0)),
                   pl.BlockSpec((bt, HW, dim), lambda b: (b, 0, 0)),
                   pl.BlockSpec((bt, dim), lambda b: (b, 0))),
        compiler_params=pltpu.CompilerParams(
            dimension_semantics=("parallel",),
            vmem_limit_bytes=_vmem_limit_bytes()),
    )(x, *ws)
    return q, grid_out, dense


# -----------------------------------------------------------------------------
# Kernel 2: generic tiled negative-logits matmul   out = (A @ queue) / T
#   A     : [M, dim]  (global: M=B, dense: M=B*HW), bf16
#   queue : [dim, K]  bf16
#   grid order per call: K-outer when A is tiny (A resident, queue streamed once),
#   M-outer when A is large (A tile DMA'd once, queue re-streamed M/tm times).
# -----------------------------------------------------------------------------
def _neg_logits_kernel(a_ref, queue_ref, out_ref, *, inv_t):
    out_ref[...] = jnp.dot(a_ref[...], queue_ref[...],
                           preferred_element_type=jnp.float32) * inv_t


def neg_logits(a, queue, inv_t):
    M, D = a.shape
    Dq, K = queue.shape
    assert D == Dq
    vmem = _vmem_limit_bytes()
    max_tk = 1024 if vmem >= 64 * 1024 * 1024 else 512
    tk = _pick_k_tile(K, max_tk)
    tm = _pick_m_tile(M, max_tm=2048)
    a16 = a.astype(jnp.bfloat16)
    q16 = queue.astype(jnp.bfloat16)
    a_small = M * D * 2 <= (1 << 20)   # whole A slab <= 1 MiB -> keep it resident
    if a_small:
        grid = (K // tk, M // tm)
        a_spec = pl.BlockSpec((tm, D), lambda kk, mm: (mm, 0))
        q_spec = pl.BlockSpec((D, tk), lambda kk, mm: (0, kk))
        o_spec = pl.BlockSpec((tm, tk), lambda kk, mm: (mm, kk))
    else:
        grid = (M // tm, K // tk)
        a_spec = pl.BlockSpec((tm, D), lambda mm, kk: (mm, 0))
        q_spec = pl.BlockSpec((D, tk), lambda mm, kk: (0, kk))
        o_spec = pl.BlockSpec((tm, tk), lambda mm, kk: (mm, kk))
    # Output kept in f32 to preserve logit precision of the reference module.
    return pl.pallas_call(
        functools.partial(_neg_logits_kernel, inv_t=inv_t),
        out_shape=jax.ShapeDtypeStruct((M, K), jnp.float32),
        grid=grid,
        in_specs=[a_spec, q_spec],
        out_specs=o_spec,
        compiler_params=pltpu.CompilerParams(
            dimension_semantics=("parallel", "parallel"),
            vmem_limit_bytes=vmem),
    )(a16, q16)


# -----------------------------------------------------------------------------
# Kernel 3: dense positive logits (feature matching), batched over images
#   feat_sim = normalize(q_feat) @ normalize(k_feat)^T ; argmax match (first index
#   on ties, like torch.max);  l_pos_dense[b, j] = <q_grid[b, j], k_grid[b, argmax]>
# -----------------------------------------------------------------------------
def _dense_pos_kernel(qf_ref, kf_ref, qg_ref, kg_ref, out_ref):
    f32 = jnp.float32
    bf16 = jnp.bfloat16

    def _l2norm(v):
        return v * lax.rsqrt(jnp.maximum(jnp.sum(v * v, axis=-1, keepdims=True), 1e-24))

    # fused per-position L2 normalization of the backbone features
    qf = _l2norm(qf_ref[...].astype(f32)).astype(bf16)       # [bt, HW, C]
    kf = _l2norm(kf_ref[...].astype(f32)).astype(bf16)       # [bt, HW, C]
    feat_sim = jnp.einsum("bqc,bkc->bqk", qf, kf,
                          preferred_element_type=f32)        # [bt, HW, HW]
    hw = feat_sim.shape[-1]

    m = jnp.max(feat_sim, axis=-1, keepdims=True)
    col = lax.broadcasted_iota(jnp.int32, feat_sim.shape, 2)
    first_idx = jnp.min(jnp.where(feat_sim >= m, col, hw), axis=-1, keepdims=True)
    onehot = (col == first_idx).astype(f32)                   # [bt, HW, HW]

    qk_grid = jnp.einsum("bqd,bkd->bqk", qg_ref[...], kg_ref[...],
                         preferred_element_type=f32)          # [bt, HW, HW]
    out_ref[...] = jnp.sum(onehot * qk_grid, axis=-1)         # [bt, HW] lane-dense


def dense_pos_logits(q_feat, k_feat, q_grid, k_grid):
    B, HW, C = q_feat.shape
    dim = q_grid.shape[-1]
    bt = _pick_b_tile(B)
    return pl.pallas_call(
        _dense_pos_kernel,
        out_shape=jax.ShapeDtypeStruct((B, HW), jnp.float32),
        grid=(B // bt,),
        in_specs=[pl.BlockSpec((bt, HW, C), lambda b: (b, 0, 0)),
                  pl.BlockSpec((bt, HW, C), lambda b: (b, 0, 0)),
                  pl.BlockSpec((bt, HW, dim), lambda b: (b, 0, 0)),
                  pl.BlockSpec((bt, HW, dim), lambda b: (b, 0, 0))],
        out_specs=pl.BlockSpec((bt, HW), lambda b: (b, 0)),
        compiler_params=pltpu.CompilerParams(
            dimension_semantics=("parallel",),
            vmem_limit_bytes=_vmem_limit_bytes()),
    )(q_feat, k_feat, q_grid, k_grid)


# -----------------------------------------------------------------------------
# Glue: parameter init, backbone stand-in, MoCo forward
# -----------------------------------------------------------------------------
def l2_normalize(x, axis):
    n = jnp.sqrt(jnp.sum(x * x, axis=axis, keepdims=True))
    return x / jnp.maximum(n, 1e-12)


def init_encoder_params(key, cin, feat_dim, hid, dim):
    ks = jax.random.split(key, 14)
    u = lambda k, shape, s: jax.random.uniform(k, shape, jnp.float32, -s, s)
    return {
        # TODO(synk): densenet121 backbone replaced by a deterministic 1x1-conv + ReLU stand-in.
        "backbone_w": u(ks[0], (cin, feat_dim), 0.5),
        "backbone_b": u(ks[1], (feat_dim,), 0.1),
        # mlp_kept / mlp_drop (Linear weights stored [in, out]; biases as lane rows)
        "w1": u(ks[2], (feat_dim, hid), (1.0 / feat_dim) ** 0.5),
        "b1": u(ks[3], (1, hid), 0.1),
        "w2": u(ks[4], (hid, hid), (1.0 / hid) ** 0.5),
        "b2": u(ks[5], (1, hid), 0.1),
        "w3": u(ks[6], (hid, dim), (1.0 / hid) ** 0.5),
        "b3": u(ks[7], (1, dim), 0.1),
        # mlp2_kept / mlp2_drop (1x1 convs; weights stored [in, out], biases as lane rows)
        "cw1": u(ks[8], (feat_dim, hid), (1.0 / feat_dim) ** 0.5),
        "cb1": u(ks[9], (1, hid), 0.1),
        "cw2": u(ks[10], (hid, hid), (1.0 / hid) ** 0.5),
        "cb2": u(ks[11], (1, hid), 0.1),
        "cw3": u(ks[12], (hid, dim), (1.0 / hid) ** 0.5),
        "cb3": u(ks[13], (1, dim), 0.1),
    }


def backbone_stub(p, im):
    # im: [B, Cin, H, W] (NCHW, like PyTorch).  1x1 conv Cin->feat_dim + ReLU,
    # emitted channels-last and flattened: [B, HW, feat_dim].
    B, Cin, H, W = im.shape
    feat = jnp.einsum("bchw,co->bhwo", im, p["backbone_w"]) + p["backbone_b"]
    return jnp.maximum(feat, 0.0).reshape(B, H * W, -1)


def moco_forward(params_q, params_k, state, im_q, im_k, *, T=0.07, m=0.999):
    # momentum update of the key encoder (+ stop_gradient: torch.no_grad semantics)
    params_k = jax.tree_util.tree_map(lambda pk, pq: m * pk + (1.0 - m) * pq,
                                      params_k, params_q)
    params_k = jax.tree_util.tree_map(lax.stop_gradient, params_k)
    inv_t = 1.0 / T
    B = im_q.shape[0]

    # ---------------- query path ----------------
    q_feat = backbone_stub(params_q, im_q)                  # [B, HW, feat_dim]
    q, q_grid, _q_dense = densecl_projector(q_feat, params_q)   # normalized in-kernel

    # ---------------- key path (no grad) ----------------
    # TODO(synk): concat_all_gather / _batch_shuffle_ddp are distributed-only; identity on 1 device.
    k_feat = lax.stop_gradient(backbone_stub(params_k, im_k))
    k, k_grid, k_dense = densecl_projector(k_feat, params_k)
    k = lax.stop_gradient(k)
    k_grid = lax.stop_gradient(k_grid)
    k_dense = lax.stop_gradient(k_dense)

    # ---------------- global contrastive logits ----------------
    l_pos = jnp.sum(q * k, axis=-1, keepdims=True)                      # [B, 1]
    l_neg = neg_logits(q, state["queue"], inv_t)                        # [B, K] (already / T)
    logits_global = jnp.concatenate([l_pos * inv_t, l_neg], axis=1)     # [B, 1+K]

    # ---------------- dense contrastive logits ----------------
    HW = q_grid.shape[1]
    l_pos_dense = dense_pos_logits(q_feat, k_feat, q_grid, k_grid)      # [B, HW]
    l_pos_dense = l_pos_dense.reshape(B * HW, 1)
    q_grid_flat = q_grid.reshape(B * HW, -1)                            # bf16 already
    l_neg_dense = neg_logits(q_grid_flat, state["queue2"], inv_t)       # [B*HW, K]
    logits_dense = jnp.concatenate([l_pos_dense * inv_t, l_neg_dense], axis=1)

    labels_global = jnp.zeros((logits_global.shape[0],), jnp.int32)     # torch.long -> int32
    labels_dense = jnp.zeros((logits_dense.shape[0],), jnp.int32)

    # ---------------- queue updates (ring buffer; K % B == 0 as PyTorch asserts) ----------------
    K = state["queue"].shape[1]
    assert K % B == 0
    ptr = state["queue_ptr"]      # device scalar -> jit-traceable, no host sync
    ptr2 = state["queue2_ptr"]
    zero = jnp.zeros((), jnp.int32)
    new_queue = lax.dynamic_update_slice(
        state["queue"], k.T.astype(state["queue"].dtype), (zero, ptr))
    new_queue2 = lax.dynamic_update_slice(
        state["queue2"], k_dense.T.astype(state["queue2"].dtype), (zero, ptr2))
    new_state = {
        "queue": new_queue,
        "queue_ptr": (ptr + B) % K,
        "queue2": new_queue2,
        "queue2_ptr": (ptr2 + B) % K,
    }
    return (logits_global, logits_dense, labels_global, labels_dense), new_state, params_k


if __name__ == "__main__":
    # small shapes consistent with the module (feat_dim / dim / K scaled down)
    B, Cin, H, W = 2, 4, 8, 8
    feat_dim, hid, dim, K = 64, 32, 32, 1024
    T, m = 0.07, 0.999

    root = jax.random.PRNGKey(0)
    k_img_q, k_img_k, k_enc, k_queue, k_queue2 = jax.random.split(root, 5)

    im_q = jax.random.normal(k_img_q, (B, Cin, H, W), jnp.float32)
    im_k = jax.random.normal(k_img_k, (B, Cin, H, W), jnp.float32)

    params_q = init_encoder_params(k_enc, Cin, feat_dim, hid, dim)
    params_k = jax.tree_util.tree_map(jnp.copy, params_q)   # key encoder init from query encoder

    # queues in bf16 (dominant HBM/MXU traffic); normalized columns like the PyTorch buffers
    state = {
        "queue": l2_normalize(jax.random.normal(k_queue, (dim, K), jnp.float32),
                              axis=0).astype(jnp.bfloat16),
        "queue_ptr": jnp.zeros((), jnp.int32),
        "queue2": l2_normalize(jax.random.normal(k_queue2, (dim, K), jnp.float32),
                               axis=0).astype(jnp.bfloat16),
        "queue2_ptr": jnp.zeros((), jnp.int32),
    }

    # jit + donate params_k/state: queues are updated in place (no full-queue copy per step)
    moco_step = jax.jit(functools.partial(moco_forward, T=T, m=m),
                        donate_argnums=(1, 2))

    (logits_global, logits_dense, labels_global, labels_dense), new_state, params_k = moco_step(
        params_q, params_k, state, im_q, im_k)

    jax.block_until_ready((logits_global, logits_dense, labels_global, labels_dense,
                           new_state["queue"], new_state["queue2"]))

    assert logits_global.shape == (B, 1 + K)
    assert logits_dense.shape == (B * H * W, 1 + K)
    assert labels_global.shape == (B,)
    assert labels_dense.shape == (B * H * W,)
    assert int(new_state["queue_ptr"]) == B % K
    assert bool(jnp.all(jnp.isfinite(logits_global)))
    assert bool(jnp.all(jnp.isfinite(logits_dense)))
    print("KERNEL_OK")
</pallas_src>

<mosaic_0001>
module attributes {stable_mosaic.version = 11 : i64} {
  func.func @_densecl_projector_kernel(%arg0: i32, %arg1: memref<2x64x64xf32, #tpu.memory_space<vmem>>, %arg2: memref<64x32xbf16, #tpu.memory_space<vmem>>, %arg3: memref<1x32xf32, #tpu.memory_space<vmem>>, %arg4: memref<32x32xbf16, #tpu.memory_space<vmem>>, %arg5: memref<1x32xf32, #tpu.memory_space<vmem>>, %arg6: memref<32x32xbf16, #tpu.memory_space<vmem>>, %arg7: memref<1x32xf32, #tpu.memory_space<vmem>>, %arg8: memref<64x32xbf16, #tpu.memory_space<vmem>>, %arg9: memref<1x32xf32, #tpu.memory_space<vmem>>, %arg10: memref<32x32xbf16, #tpu.memory_space<vmem>>, %arg11: memref<1x32xf32, #tpu.memory_space<vmem>>, %arg12: memref<32x32xbf16, #tpu.memory_space<vmem>>, %arg13: memref<1x32xf32, #tpu.memory_space<vmem>>, %arg14: memref<2x32xf32, #tpu.memory_space<vmem>>, %arg15: memref<2x64x32xbf16, #tpu.memory_space<vmem>>, %arg16: memref<2x32xf32, #tpu.memory_space<vmem>>) attributes {dimension_semantics = [#tpu.dimension_semantics<parallel>], iteration_bounds = array<i64: 1>, scalar_prefetch = 0 : i64, scratch_operands = 0 : i64, tpu.core_type = #tpu.core_type<tc>, window_params = [{transform_indices = @transform_0, window_bounds = array<i64: 2, 64, 64>}, {pipeline_mode = #tpu.pipeline_mode<synchronous>, transform_indices = @transform_1, window_bounds = array<i64: 64, 32>}, {pipeline_mode = #tpu.pipeline_mode<synchronous>, transform_indices = @transform_2, window_bounds = array<i64: 1, 32>}, {pipeline_mode = #tpu.pipeline_mode<synchronous>, transform_indices = @transform_3, window_bounds = array<i64: 32, 32>}, {pipeline_mode = #tpu.pipeline_mode<synchronous>, transform_indices = @transform_4, window_bounds = array<i64: 1, 32>}, {pipeline_mode = #tpu.pipeline_mode<synchronous>, transform_indices = @transform_5, window_bounds = array<i64: 32, 32>}, {pipeline_mode = #tpu.pipeline_mode<synchronous>, transform_indices = @transform_6, window_bounds = array<i64: 1, 32>}, {pipeline_mode = #tpu.pipeline_mode<synchronous>, transform_indices = @transform_7, window_bounds = array<i64: 64, 32>}, {pipeline_mode = #tpu.pipeline_mode<synchronous>, transform_indices = @transform_8, window_bounds = array<i64: 1, 32>}, {pipeline_mode = #tpu.pipeline_mode<synchronous>, transform_indices = @transform_9, window_bounds = array<i64: 32, 32>}, {pipeline_mode = #tpu.pipeline_mode<synchronous>, transform_indices = @transform_10, window_bounds = array<i64: 1, 32>}, {pipeline_mode = #tpu.pipeline_mode<synchronous>, transform_indices = @transform_11, window_bounds = array<i64: 32, 32>}, {pipeline_mode = #tpu.pipeline_mode<synchronous>, transform_indices = @transform_12, window_bounds = array<i64: 1, 32>}, {transform_indices = @transform_13, window_bounds = array<i64: 2, 32>}, {transform_indices = @transform_14, window_bounds = array<i64: 2, 64, 32>}, {transform_indices = @transform_15, window_bounds = array<i64: 2, 32>}]} {
    %c0 = arith.constant 0 : index
    %c0_0 = arith.constant 0 : index
    %c0_1 = arith.constant 0 : index
    %0 = vector.load %arg1[%c0, %c0_0, %c0_1] : memref<2x64x64xf32, #tpu.memory_space<vmem>>, vector<2x64x64xf32>
    %cst = arith.constant dense<0.000000e+00> : vector<2x64xf32>
    %1 = vector.multi_reduction <add>, %0, %cst [1] : vector<2x64x64xf32> to vector<2x64xf32>
    %cst_2 = arith.constant 6.400000e+01 : f32
    %2 = vector.broadcast %cst_2 : f32 to vector<2x64xf32>
    %3 = arith.divf %1, %2 : vector<2x64xf32>
    %4 = arith.truncf %3 : vector<2x64xf32> to vector<2x64xbf16>
    %c0_3 = arith.constant 0 : index
    %c0_4 = arith.constant 0 : index
    %5 = vector.load %arg2[%c0_3, %c0_4] : memref<64x32xbf16, #tpu.memory_space<vmem>>, vector<64x32xbf16>
    %cst_5 = arith.constant dense<0.000000e+00> : vector<2x32xf32>
    %6 = tpu.matmul %4, %5, %cst_5 {dimension_numbers = #tpu.dot_dimension_numbers<[1], [0], [0], [1], [0, 0, 1, 1], [], []>} : vector<2x64xbf16>, vector<64x32xbf16>, vector<2x32xf32> -> vector<2x32xf32>
    %c0_6 = arith.constant 0 : index
    %c0_7 = arith.constant 0 : index
    %7 = vector.load %arg3[%c0_6, %c0_7] : memref<1x32xf32, #tpu.memory_space<vmem>>, vector<1x32xf32>
    %8 = vector.broadcast %7 : vector<1x32xf32> to vector<2x32xf32>
    %9 = arith.addf %6, %8 : vector<2x32xf32>
    %cst_8 = arith.constant 0.000000e+00 : f32
    %10 = vector.broadcast %cst_8 : f32 to vector<2x32xf32>
    %11 = arith.maximumf %9, %10 : vector<2x32xf32>
    %12 = arith.truncf %11 : vector<2x32xf32> to vector<2x32xbf16>
    %c0_9 = arith.constant 0 : index
    %c0_10 = arith.constant 0 : index
    %13 = vector.load %arg4[%c0_9, %c0_10] : memref<32x32xbf16, #tpu.memory_space<vmem>>, vector<32x32xbf16>
    %cst_11 = arith.constant dense<0.000000e+00> : vector<2x32xf32>
    %14 = tpu.matmul %12, %13, %cst_11 {dimension_numbers = #tpu.dot_dimension_numbers<[1], [0], [0], [1], [0, 0, 1, 1], [], []>} : vector<2x32xbf16>, vector<32x32xbf16>, vector<2x32xf32> -> vector<2x32xf32>
    %c0_12 = arith.constant 0 : index
    %c0_13 = arith.constant 0 : index
    %15 = vector.load %arg5[%c0_12, %c0_13] : memref<1x32xf32, #tpu.memory_space<vmem>>, vector<1x32xf32>
    %16 = vector.broadcast %15 : vector<1x32xf32> to vector<2x32xf32>
    %17 = arith.addf %14, %16 : vector<2x32xf32>
    %cst_14 = arith.constant 0.000000e+00 : f32
    %18 = vector.broadcast %cst_14 : f32 to vector<2x32xf32>
    %19 = arith.maximumf %17, %18 : vector<2x32xf32>
    %20 = arith.truncf %19 : vector<2x32xf32> to vector<2x32xbf16>
    %c0_15 = arith.constant 0 : index
    %c0_16 = arith.constant 0 : index
    %21 = vector.load %arg6[%c0_15, %c0_16] : memref<32x32xbf16, #tpu.memory_space<vmem>>, vector<32x32xbf16>
    %cst_17 = arith.constant dense<0.000000e+00> : vector<2x32xf32>
    %22 = tpu.matmul %20, %21, %cst_17 {dimension_numbers = #tpu.dot_dimension_numbers<[1], [0], [0], [1], [0, 0, 1, 1], [], []>} : vector<2x32xbf16>, vector<32x32xbf16>, vector<2x32xf32> -> vector<2x32xf32>
    %c0_18 = arith.constant 0 : index
    %c0_19 = arith.constant 0 : index
    %23 = vector.load %arg7[%c0_18, %c0_19] : memref<1x32xf32, #tpu.memory_space<vmem>>, vector<1x32xf32>
    %24 = vector.broadcast %23 : vector<1x32xf32> to vector<2x32xf32>
    %25 = arith.addf %22, %24 : vector<2x32xf32>
    %26 = arith.mulf %25, %25 : vector<2x32xf32>
    %cst_20 = arith.constant dense<0.000000e+00> : vector<2xf32>
    %27 = vector.multi_reduction <add>, %26, %cst_20 [1] : vector<2x32xf32> to vector<2xf32>
    %28 = vector.shape_cast %27 : vector<2xf32> to vector<2x1xf32>
    %cst_21 = arith.constant 1.000000e-24 : f32
    %29 = vector.broadcast %cst_21 : f32 to vector<2x1xf32>
    %30 = arith.maximumf %28, %29 : vector<2x1xf32>
    %31 = math.rsqrt %30 : vector<2x1xf32>
    %32 = vector.broadcast %31 : vector<2x1xf32> to vector<2x32xf32>
    %33 = arith.mulf %25, %32 : vector<2x32xf32>
    %c0_22 = arith.constant 0 : index
    %c0_23 = arith.constant 0 : index
    %34 = vector.load %arg14[%c0_22, %c0_23] : memref<2x32xf32, #tpu.memory_space<vmem>>, vector<2x32xf32>
    tpu.vector_store %arg14[%c0_22, %c0_23], %33 {strides = array<i32>} : memref<2x32xf32, #tpu.memory_space<vmem>>, vector<2x32xf32>,
    %35 = arith.truncf %0 : vector<2x64x64xf32> to vector<2x64x64xbf16>
    %36 = vector.shape_cast %35 : vector<2x64x64xbf16> to vector<128x64xbf16>
    %c0_24 = arith.constant 0 : index
    %c0_25 = arith.constant 0 : index
    %37 = vector.load %arg8[%c0_24, %c0_25] : memref<64x32xbf16, #tpu.memory_space<vmem>>, vector<64x32xbf16>
    %cst_26 = arith.constant dense<0.000000e+00> : vector<128x32xf32>
    %38 = tpu.matmul %36, %37, %cst_26 {dimension_numbers = #tpu.dot_dimension_numbers<[1], [0], [0], [1], [0, 0, 1, 1], [], []>} : vector<128x64xbf16>, vector<64x32xbf16>, vector<128x32xf32> -> vector<128x32xf32>
    %c0_27 = arith.constant 0 : index
    %c0_28 = arith.constant 0 : index
    %39 = vector.load %arg9[%c0_27, %c0_28] : memref<1x32xf32, #tpu.memory_space<vmem>>, vector<1x32xf32>
    %40 = vector.broadcast %39 : vector<1x32xf32> to vector<128x32xf32>
    %41 = arith.addf %38, %40 : vector<128x32xf32>
    %cst_29 = arith.constant 0.000000e+00 : f32
    %42 = vector.broadcast %cst_29 : f32 to vector<128x32xf32>
    %43 = arith.maximumf %41, %42 : vector<128x32xf32>
    %44 = arith.truncf %43 : vector<128x32xf32> to vector<128x32xbf16>
    %c0_30 = arith.constant 0 : index
    %c0_31 = arith.constant 0 : index
    %45 = vector.load %arg10[%c0_30, %c0_31] : memref<32x32xbf16, #tpu.memory_space<vmem>>, vector<32x32xbf16>
    %cst_32 = arith.constant dense<0.000000e+00> : vector<128x32xf32>
    %46 = tpu.matmul %44, %45, %cst_32 {dimension_numbers = #tpu.dot_dimension_numbers<[1], [0], [0], [1], [0, 0, 1, 1], [], []>} : vector<128x32xbf16>, vector<32x32xbf16>, vector<128x32xf32> -> vector<128x32xf32>
    %c0_33 = arith.constant 0 : index
    %c0_34 = arith.constant 0 : index
    %47 = vector.load %arg11[%c0_33, %c0_34] : memref<1x32xf32, #tpu.memory_space<vmem>>, vector<1x32xf32>
    %48 = vector.broadcast %47 : vector<1x32xf32> to vector<128x32xf32>
    %49 = arith.addf %46, %48 : vector<128x32xf32>
    %cst_35 = arith.constant 0.000000e+00 : f32
    %50 = vector.broadcast %cst_35 : f32 to vector<128x32xf32>
    %51 = arith.maximumf %49, %50 : vector<128x32xf32>
    %52 = arith.truncf %51 : vector<128x32xf32> to vector<128x32xbf16>
    %c0_36 = arith.constant 0 : index
    %c0_37 = arith.constant 0 : index
    %53 = vector.load %arg12[%c0_36, %c0_37] : memref<32x32xbf16, #tpu.memory_space<vmem>>, vector<32x32xbf16>
    %cst_38 = arith.constant dense<0.000000e+00> : vector<128x32xf32>
    %54 = tpu.matmul %52, %53, %cst_38 {dimension_numbers = #tpu.dot_dimension_numbers<[1], [0], [0], [1], [0, 0, 1, 1], [], []>} : vector<128x32xbf16>, vector<32x32xbf16>, vector<128x32xf32> -> vector<128x32xf32>
    %c0_39 = arith.constant 0 : index
    %c0_40 = arith.constant 0 : index
    %55 = vector.load %arg13[%c0_39, %c0_40] : memref<1x32xf32, #tpu.memory_space<vmem>>, vector<1x32xf32>
    %56 = vector.broadcast %55 : vector<1x32xf32> to vector<128x32xf32>
    %57 = arith.addf %54, %56 : vector<128x32xf32>
    %58 = vector.shape_cast %57 : vector<128x32xf32> to vector<2x64x32xf32>
    %cst_41 = arith.constant dense<0.000000e+00> : vector<2x32xf32>
    %59 = vector.multi_reduction <add>, %58, %cst_41 [1] : vector<2x64x32xf32> to vector<2x32xf32>
    %cst_42 = arith.constant 6.400000e+01 : f32
    %60 = vector.broadcast %cst_42 : f32 to vector<2x32xf32>
    %61 = arith.divf %59, %60 : vector<2x32xf32>
    %62 = arith.mulf %61, %61 : vector<2x32xf32>
    %cst_43 = arith.constant dense<0.000000e+00> : vector<2xf32>
    %63 = vector.multi_reduction <add>, %62, %cst_43 [1] : vector<2x32xf32> to vector<2xf32>
    %64 = vector.shape_cast %63 : vector<2xf32> to vector<2x1xf32>
    %cst_44 = arith.constant 1.000000e-24 : f32
    %65 = vector.broadcast %cst_44 : f32 to vector<2x1xf32>
    %66 = arith.maximumf %64, %65 : vector<2x1xf32>
    %67 = math.rsqrt %66 : vector<2x1xf32>
    %68 = vector.broadcast %67 : vector<2x1xf32> to vector<2x32xf32>
    %69 = arith.mulf %61, %68 : vector<2x32xf32>
    %c0_45 = arith.constant 0 : index
    %c0_46 = arith.constant 0 : index
    %70 = vector.load %arg16[%c0_45, %c0_46] : memref<2x32xf32, #tpu.memory_space<vmem>>, vector<2x32xf32>
    tpu.vector_store %arg16[%c0_45, %c0_46], %69 {strides = array<i32>} : memref<2x32xf32, #tpu.memory_space<vmem>>, vector<2x32xf32>,
    %71 = arith.mulf %58, %58 : vector<2x64x32xf32>
    %cst_47 = arith.constant dense<0.000000e+00> : vector<2x64xf32>
    %72 = vector.multi_reduction <add>, %71, %cst_47 [2] : vector<2x64x32xf32> to vector<2x64xf32>
    %73 = vector.shape_cast %72 : vector<2x64xf32> to vector<2x64x1xf32>
    %cst_48 = arith.constant 1.000000e-24 : f32
    %74 = vector.broadcast %cst_48 : f32 to vector<2x64x1xf32>
    %75 = arith.maximumf %73, %74 : vector<2x64x1xf32>
    %76 = math.rsqrt %75 : vector<2x64x1xf32>
    %77 = vector.broadcast %76 : vector<2x64x1xf32> to vector<2x64x32xf32>
    %78 = arith.mulf %58, %77 : vector<2x64x32xf32>
    %79 = arith.truncf %78 : vector<2x64x32xf32> to vector<2x64x32xbf16>
    %c0_49 = arith.constant 0 : index
    %c0_50 = arith.constant 0 : index
    %c0_51 = arith.constant 0 : index
    %80 = vector.load %arg15[%c0_49, %c0_50, %c0_51] : memref<2x64x32xbf16, #tpu.memory_space<vmem>>, vector<2x64x32xbf16>
    tpu.vector_store %arg15[%c0_49, %c0_50, %c0_51], %79 {strides = array<i32>} : memref<2x64x32xbf16, #tpu.memory_space<vmem>>, vector<2x64x32xbf16>,
    return
  }
  func.func @transform_0(%arg0: i32) -> (i32, i32, i32) {
    %c0_i32 = arith.constant 0 : i32
    %c0_i32_0 = arith.constant 0 : i32
    %c0_i32_1 = arith.constant 0 : i32
    return %arg0, %c0_i32, %c0_i32_0 : i32, i32, i32
  }
  func.func @transform_1(%arg0: i32) -> (i32, i32) {
    %c0_i32 = arith.constant 0 : i32
    %c0_i32_0 = arith.constant 0 : i32
    %c0_i32_1 = arith.constant 0 : i32
    return %c0_i32, %c0_i32_0 : i32, i32
  }
  func.func @transform_2(%arg0: i32) -> (i32, i32) {
    %c0_i32 = arith.constant 0 : i32
    %c0_i32_0 = arith.constant 0 : i32
    %c0_i32_1 = arith.constant 0 : i32
    return %c0_i32, %c0_i32_0 : i32, i32
  }
  func.func @transform_3(%arg0: i32) -> (i32, i32) {
    %c0_i32 = arith.constant 0 : i32
    %c0_i32_0 = arith.constant 0 : i32
    %c0_i32_1 = arith.constant 0 : i32
    return %c0_i32, %c0_i32_0 : i32, i32
  }
  func.func @transform_4(%arg0: i32) -> (i32, i32) {
    %c0_i32 = arith.constant 0 : i32
    %c0_i32_0 = arith.constant 0 : i32
    %c0_i32_1 = arith.constant 0 : i32
    return %c0_i32, %c0_i32_0 : i32, i32
  }
  func.func @transform_5(%arg0: i32) -> (i32, i32) {
    %c0_i32 = arith.constant 0 : i32
    %c0_i32_0 = arith.constant 0 : i32
    %c0_i32_1 = arith.constant 0 : i32
    return %c0_i32, %c0_i32_0 : i32, i32
  }
  func.func @transform_6(%arg0: i32) -> (i32, i32) {
    %c0_i32 = arith.constant 0 : i32
    %c0_i32_0 = arith.constant 0 : i32
    %c0_i32_1 = arith.constant 0 : i32
    return %c0_i32, %c0_i32_0 : i32, i32
  }
  func.func @transform_7(%arg0: i32) -> (i32, i32) {
    %c0_i32 = arith.constant 0 : i32
    %c0_i32_0 = arith.constant 0 : i32
    %c0_i32_1 = arith.constant 0 : i32
    return %c0_i32, %c0_i32_0 : i32, i32
  }
  func.func @transform_8(%arg0: i32) -> (i32, i32) {
    %c0_i32 = arith.constant 0 : i32
    %c0_i32_0 = arith.constant 0 : i32
    %c0_i32_1 = arith.constant 0 : i32
    return %c0_i32, %c0_i32_0 : i32, i32
  }
  func.func @transform_9(%arg0: i32) -> (i32, i32) {
    %c0_i32 = arith.constant 0 : i32
    %c0_i32_0 = arith.constant 0 : i32
    %c0_i32_1 = arith.constant 0 : i32
    return %c0_i32, %c0_i32_0 : i32, i32
  }
  func.func @transform_10(%arg0: i32) -> (i32, i32) {
    %c0_i32 = arith.constant 0 : i32
    %c0_i32_0 = arith.constant 0 : i32
    %c0_i32_1 = arith.constant 0 : i32
    return %c0_i32, %c0_i32_0 : i32, i32
  }
  func.func @transform_11(%arg0: i32) -> (i32, i32) {
    %c0_i32 = arith.constant 0 : i32
    %c0_i32_0 = arith.constant 0 : i32
    %c0_i32_1 = arith.constant 0 : i32
    return %c0_i32, %c0_i32_0 : i32, i32
  }
  func.func @transform_12(%arg0: i32) -> (i32, i32) {
    %c0_i32 = arith.constant 0 : i32
    %c0_i32_0 = arith.constant 0 : i32
    %c0_i32_1 = arith.constant 0 : i32
    return %c0_i32, %c0_i32_0 : i32, i32
  }
  func.func @transform_13(%arg0: i32) -> (i32, i32) {
    %c0_i32 = arith.constant 0 : i32
    %c0_i32_0 = arith.constant 0 : i32
    return %arg0, %c0_i32 : i32, i32
  }
  func.func @transform_14(%arg0: i32) -> (i32, i32, i32) {
    %c0_i32 = arith.constant 0 : i32
    %c0_i32_0 = arith.constant 0 : i32
    %c0_i32_1 = arith.constant 0 : i32
    return %arg0, %c0_i32, %c0_i32_0 : i32, i32, i32
  }
  func.func @transform_15(%arg0: i32) -> (i32, i32) {
    %c0_i32 = arith.constant 0 : i32
    %c0_i32_0 = arith.constant 0 : i32
    return %arg0, %c0_i32 : i32, i32
  }
}

module attributes {stable_mosaic.version = 11 : i64} {
  func.func @_dense_pos_kernel(%arg0: i32, %arg1: memref<2x64x64xf32, #tpu.memory_space<vmem>>, %arg2: memref<2x64x64xf32, #tpu.memory_space<vmem>>, %arg3: memref<2x64x32xbf16, #tpu.memory_space<vmem>>, %arg4: memref<2x64x32xbf16, #tpu.memory_space<vmem>>, %arg5: memref<2x64xf32, #tpu.memory_space<vmem>>) attributes {dimension_semantics = [#tpu.dimension_semantics<parallel>], iteration_bounds = array<i64: 1>, scalar_prefetch = 0 : i64, scratch_operands = 0 : i64, tpu.core_type = #tpu.core_type<tc>, window_params = [{transform_indices = @transform_0, window_bounds = array<i64: 2, 64, 64>}, {transform_indices = @transform_1, window_bounds = array<i64: 2, 64, 64>}, {transform_indices = @transform_2, window_bounds = array<i64: 2, 64, 32>}, {transform_indices = @transform_3, window_bounds = array<i64: 2, 64, 32>}, {transform_indices = @transform_4, window_bounds = array<i64: 2, 64>}]} {
    %c0 = arith.constant 0 : index
    %c0_0 = arith.constant 0 : index
    %c0_1 = arith.constant 0 : index
    %0 = vector.load %arg1[%c0, %c0_0, %c0_1] : memref<2x64x64xf32, #tpu.memory_space<vmem>>, vector<2x64x64xf32>
    %1 = arith.mulf %0, %0 : vector<2x64x64xf32>
    %cst = arith.constant dense<0.000000e+00> : vector<2x64xf32>
    %2 = vector.multi_reduction <add>, %1, %cst [2] : vector<2x64x64xf32> to vector<2x64xf32>
    %3 = vector.shape_cast %2 : vector<2x64xf32> to vector<2x64x1xf32>
    %cst_2 = arith.constant 1.000000e-24 : f32
    %4 = vector.broadcast %cst_2 : f32 to vector<2x64x1xf32>
    %5 = arith.maximumf %3, %4 : vector<2x64x1xf32>
    %6 = math.rsqrt %5 : vector<2x64x1xf32>
    %7 = vector.broadcast %6 : vector<2x64x1xf32> to vector<2x64x64xf32>
    %8 = arith.mulf %0, %7 : vector<2x64x64xf32>
    %9 = arith.truncf %8 : vector<2x64x64xf32> to vector<2x64x64xbf16>
    %c0_3 = arith.constant 0 : index
    %c0_4 = arith.constant 0 : index
    %c0_5 = arith.constant 0 : index
    %10 = vector.load %arg2[%c0_3, %c0_4, %c0_5] : memref<2x64x64xf32, #tpu.memory_space<vmem>>, vector<2x64x64xf32>
    %11 = arith.mulf %10, %10 : vector<2x64x64xf32>
    %cst_6 = arith.constant dense<0.000000e+00> : vector<2x64xf32>
    %12 = vector.multi_reduction <add>, %11, %cst_6 [2] : vector<2x64x64xf32> to vector<2x64xf32>
    %13 = vector.shape_cast %12 : vector<2x64xf32> to vector<2x64x1xf32>
    %cst_7 = arith.constant 1.000000e-24 : f32
    %14 = vector.broadcast %cst_7 : f32 to vector<2x64x1xf32>
    %15 = arith.maximumf %13, %14 : vector<2x64x1xf32>
    %16 = math.rsqrt %15 : vector<2x64x1xf32>
    %17 = vector.broadcast %16 : vector<2x64x1xf32> to vector<2x64x64xf32>
    %18 = arith.mulf %10, %17 : vector<2x64x64xf32>
    %19 = arith.truncf %18 : vector<2x64x64xf32> to vector<2x64x64xbf16>
    "tpu.trace_start"() <{level = 10 : i32, message = "bqc,bkc->bqk"}> : () -> ()
    %cst_8 = arith.constant dense<0.000000e+00> : vector<2x64x64xf32>
    %20 = tpu.matmul %9, %19, %cst_8 {dimension_numbers = #tpu.dot_dimension_numbers<[2], [2], [1], [1], [0, 0, 0, 1, 1, 1], [0], [0]>} : vector<2x64x64xbf16>, vector<2x64x64xbf16>, vector<2x64x64xf32> -> vector<2x64x64xf32>
    "tpu.trace_stop"() : () -> ()
    %cst_9 = arith.constant dense<0xFF800000> : vector<2x64xf32>
    %21 = vector.multi_reduction <maximumf>, %20, %cst_9 [2] : vector<2x64x64xf32> to vector<2x64xf32>
    %22 = vector.shape_cast %21 : vector<2x64xf32> to vector<2x64x1xf32>
    %23 = tpu.iota {dimensions = array<i32: 2>} : vector<2x64x64xi32>
    %24 = vector.broadcast %22 : vector<2x64x1xf32> to vector<2x64x64xf32>
    %25 = arith.cmpf oge, %20, %24 : vector<2x64x64xf32>
    %c64_i32 = arith.constant 64 : i32
    %26 = vector.broadcast %c64_i32 : i32 to vector<2x64x64xi32>
    %27 = arith.select %25, %23, %26 : vector<2x64x64xi1>, vector<2x64x64xi32>
    %cst_10 = arith.constant dense<2147483647> : vector<2x64xi32>
    %28 = vector.multi_reduction <minsi>, %27, %cst_10 [2] : vector<2x64x64xi32> to vector<2x64xi32>
    %29 = vector.shape_cast %28 : vector<2x64xi32> to vector<2x64x1xi32>
    %30 = vector.broadcast %29 : vector<2x64x1xi32> to vector<2x64x64xi32>
    %31 = arith.cmpi eq, %23, %30 : vector<2x64x64xi32>
    %32 = arith.extui %31 : vector<2x64x64xi1> to vector<2x64x64xi32>
    %33 = arith.sitofp %32 : vector<2x64x64xi32> to vector<2x64x64xf32>
    %c0_11 = arith.constant 0 : index
    %c0_12 = arith.constant 0 : index
    %c0_13 = arith.constant 0 : index
    %34 = vector.load %arg3[%c0_11, %c0_12, %c0_13] : memref<2x64x32xbf16, #tpu.memory_space<vmem>>, vector<2x64x32xbf16>
    %c0_14 = arith.constant 0 : index
    %c0_15 = arith.constant 0 : index
    %c0_16 = arith.constant 0 : index
    %35 = vector.load %arg4[%c0_14, %c0_15, %c0_16] : memref<2x64x32xbf16, #tpu.memory_space<vmem>>, vector<2x64x32xbf16>
    "tpu.trace_start"() <{level = 10 : i32, message = "bqd,bkd->bqk"}> : () -> ()
    %cst_17 = arith.constant dense<0.000000e+00> : vector<2x64x64xf32>
    %36 = tpu.matmul %34, %35, %cst_17 {dimension_numbers = #tpu.dot_dimension_numbers<[2], [2], [1], [1], [0, 0, 0, 1, 1, 1], [0], [0]>} : vector<2x64x32xbf16>, vector<2x64x32xbf16>, vector<2x64x64xf32> -> vector<2x64x64xf32>
    "tpu.trace_stop"() : () -> ()
    %37 = arith.mulf %33, %36 : vector<2x64x64xf32>
    %cst_18 = arith.constant dense<0.000000e+00> : vector<2x64xf32>
    %38 = vector.multi_reduction <add>, %37, %cst_18 [2] : vector<2x64x64xf32> to vector<2x64xf32>
    %c0_19 = arith.constant 0 : index
    %c0_20 = arith.constant 0 : index
    %39 = vector.load %arg5[%c0_19, %c0_20] : memref<2x64xf32, #tpu.memory_space<vmem>>, vector<2x64xf32>
    tpu.vector_store %arg5[%c0_19, %c0_20], %38 {strides = array<i32>} : memref<2x64xf32, #tpu.memory_space<vmem>>, vector<2x64xf32>,
    return
  }
  func.func @transform_0(%arg0: i32) -> (i32, i32, i32) {
    %c0_i32 = arith.constant 0 : i32
    %c0_i32_0 = arith.constant 0 : i32
    %c0_i32_1 = arith.constant 0 : i32
    return %arg0, %c0_i32, %c0_i32_0 : i32, i32, i32
  }
  func.func @transform_1(%arg0: i32) -> (i32, i32, i32) {
    %c0_i32 = arith.constant 0 : i32
    %c0_i32_0 = arith.constant 0 : i32
    %c0_i32_1 = arith.constant 0 : i32
    return %arg0, %c0_i32, %c0_i32_0 : i32, i32, i32
  }
  func.func @transform_2(%arg0: i32) -> (i32, i32, i32) {
    %c0_i32 = arith.constant 0 : i32
    %c0_i32_0 = arith.constant 0 : i32
    %c0_i32_1 = arith.constant 0 : i32
    return %arg0, %c0_i32, %c0_i32_0 : i32, i32, i32
  }
  func.func @transform_3(%arg0: i32) -> (i32, i32, i32) {
    %c0_i32 = arith.constant 0 : i32
    %c0_i32_0 = arith.constant 0 : i32
    %c0_i32_1 = arith.constant 0 : i32
    return %arg0, %c0_i32, %c0_i32_0 : i32, i32, i32
  }
  func.func @transform_4(%arg0: i32) -> (i32, i32) {
    %c0_i32 = arith.constant 0 : i32
    %c0_i32_0 = arith.constant 0 : i32
    return %arg0, %c0_i32 : i32, i32
  }
}

module attributes {stable_mosaic.version = 11 : i64} {
  func.func @_densecl_projector_kernel(%arg0: i32, %arg1: memref<2x64x64xf32, #tpu.memory_space<vmem>>, %arg2: memref<64x32xbf16, #tpu.memory_space<vmem>>, %arg3: memref<1x32xf32, #tpu.memory_space<vmem>>, %arg4: memref<32x32xbf16, #tpu.memory_space<vmem>>, %arg5: memref<1x32xf32, #tpu.memory_space<vmem>>, %arg6: memref<32x32xbf16, #tpu.memory_space<vmem>>, %arg7: memref<1x32xf32, #tpu.memory_space<vmem>>, %arg8: memref<64x32xbf16, #tpu.memory_space<vmem>>, %arg9: memref<1x32xf32, #tpu.memory_space<vmem>>, %arg10: memref<32x32xbf16, #tpu.memory_space<vmem>>, %arg11: memref<1x32xf32, #tpu.memory_space<vmem>>, %arg12: memref<32x32xbf16, #tpu.memory_space<vmem>>, %arg13: memref<1x32xf32, #tpu.memory_space<vmem>>, %arg14: memref<2x32xf32, #tpu.memory_space<vmem>>, %arg15: memref<2x64x32xbf16, #tpu.memory_space<vmem>>, %arg16: memref<2x32xf32, #tpu.memory_space<vmem>>) attributes {dimension_semantics = [#tpu.dimension_semantics<parallel>], iteration_bounds = array<i64: 1>, scalar_prefetch = 0 : i64, scratch_operands = 0 : i64, tpu.core_type = #tpu.core_type<tc>, window_params = [{transform_indices = @transform_0, window_bounds = array<i64: 2, 64, 64>}, {pipeline_mode = #tpu.pipeline_mode<synchronous>, transform_indices = @transform_1, window_bounds = array<i64: 64, 32>}, {pipeline_mode = #tpu.pipeline_mode<synchronous>, transform_indices = @transform_2, window_bounds = array<i64: 1, 32>}, {pipeline_mode = #tpu.pipeline_mode<synchronous>, transform_indices = @transform_3, window_bounds = array<i64: 32, 32>}, {pipeline_mode = #tpu.pipeline_mode<synchronous>, transform_indices = @transform_4, window_bounds = array<i64: 1, 32>}, {pipeline_mode = #tpu.pipeline_mode<synchronous>, transform_indices = @transform_5, window_bounds = array<i64: 32, 32>}, {pipeline_mode = #tpu.pipeline_mode<synchronous>, transform_indices = @transform_6, window_bounds = array<i64: 1, 32>}, {pipeline_mode = #tpu.pipeline_mode<synchronous>, transform_indices = @transform_7, window_bounds = array<i64: 64, 32>}, {pipeline_mode = #tpu.pipeline_mode<synchronous>, transform_indices = @transform_8, window_bounds = array<i64: 1, 32>}, {pipeline_mode = #tpu.pipeline_mode<synchronous>, transform_indices = @transform_9, window_bounds = array<i64: 32, 32>}, {pipeline_mode = #tpu.pipeline_mode<synchronous>, transform_indices = @transform_10, window_bounds = array<i64: 1, 32>}, {pipeline_mode = #tpu.pipeline_mode<synchronous>, transform_indices = @transform_11, window_bounds = array<i64: 32, 32>}, {pipeline_mode = #tpu.pipeline_mode<synchronous>, transform_indices = @transform_12, window_bounds = array<i64: 1, 32>}, {transform_indices = @transform_13, window_bounds = array<i64: 2, 32>}, {transform_indices = @transform_14, window_bounds = array<i64: 2, 64, 32>}, {transform_indices = @transform_15, window_bounds = array<i64: 2, 32>}]} {
    %c0 = arith.constant 0 : index
    %c0_0 = arith.constant 0 : index
    %c0_1 = arith.constant 0 : index
    %0 = vector.load %arg1[%c0, %c0_0, %c0_1] : memref<2x64x64xf32, #tpu.memory_space<vmem>>, vector<2x64x64xf32>
    %cst = arith.constant dense<0.000000e+00> : vector<2x64xf32>
    %1 = vector.multi_reduction <add>, %0, %cst [1] : vector<2x64x64xf32> to vector<2x64xf32>
    %cst_2 = arith.constant 6.400000e+01 : f32
    %2 = vector.broadcast %cst_2 : f32 to vector<2x64xf32>
    %3 = arith.divf %1, %2 : vector<2x64xf32>
    %4 = arith.truncf %3 : vector<2x64xf32> to vector<2x64xbf16>
    %c0_3 = arith.constant 0 : index
    %c0_4 = arith.constant 0 : index
    %5 = vector.load %arg2[%c0_3, %c0_4] : memref<64x32xbf16, #tpu.memory_space<vmem>>, vector<64x32xbf16>
    %cst_5 = arith.constant dense<0.000000e+00> : vector<2x32xf32>
    %6 = tpu.matmul %4, %5, %cst_5 {dimension_numbers = #tpu.dot_dimension_numbers<[1], [0], [0], [1], [0, 0, 1, 1], [], []>} : vector<2x64xbf16>, vector<64x32xbf16>, vector<2x32xf32> -> vector<2x32xf32>
    %c0_6 = arith.constant 0 : index
    %c0_7 = arith.constant 0 : index
    %7 = vector.load %arg3[%c0_6, %c0_7] : memref<1x32xf32, #tpu.memory_space<vmem>>, vector<1x32xf32>
    %8 = vector.broadcast %7 : vector<1x32xf32> to vector<2x32xf32>
    %9 = arith.addf %6, %8 : vector<2x32xf32>
    %cst_8 = arith.constant 0.000000e+00 : f32
    %10 = vector.broadcast %cst_8 : f32 to vector<2x32xf32>
    %11 = arith.maximumf %9, %10 : vector<2x32xf32>
    %12 = arith.truncf %11 : vector<2x32xf32> to vector<2x32xbf16>
    %c0_9 = arith.constant 0 : index
    %c0_10 = arith.constant 0 : index
    %13 = vector.load %arg4[%c0_9, %c0_10] : memref<32x32xbf16, #tpu.memory_space<vmem>>, vector<32x32xbf16>
    %cst_11 = arith.constant dense<0.000000e+00> : vector<2x32xf32>
    %14 = tpu.matmul %12, %13, %cst_11 {dimension_numbers = #tpu.dot_dimension_numbers<[1], [0], [0], [1], [0, 0, 1, 1], [], []>} : vector<2x32xbf16>, vector<32x32xbf16>, vector<2x32xf32> -> vector<2x32xf32>
    %c0_12 = arith.constant 0 : index
    %c0_13 = arith.constant 0 : index
    %15 = vector.load %arg5[%c0_12, %c0_13] : memref<1x32xf32, #tpu.memory_space<vmem>>, vector<1x32xf32>
    %16 = vector.broadcast %15 : vector<1x32xf32> to vector<2x32xf32>
    %17 = arith.addf %14, %16 : vector<2x32xf32>
    %cst_14 = arith.constant 0.000000e+00 : f32
    %18 = vector.broadcast %cst_14 : f32 to vector<2x32xf32>
    %19 = arith.maximumf %17, %18 : vector<2x32xf32>
    %20 = arith.truncf %19 : vector<2x32xf32> to vector<2x32xbf16>
    %c0_15 = arith.constant 0 : index
    %c0_16 = arith.constant 0 : index
    %21 = vector.load %arg6[%c0_15, %c0_16] : memref<32x32xbf16, #tpu.memory_space<vmem>>, vector<32x32xbf16>
    %cst_17 = arith.constant dense<0.000000e+00> : vector<2x32xf32>
    %22 = tpu.matmul %20, %21, %cst_17 {dimension_numbers = #tpu.dot_dimension_numbers<[1], [0], [0], [1], [0, 0, 1, 1], [], []>} : vector<2x32xbf16>, vector<32x32xbf16>, vector<2x32xf32> -> vector<2x32xf32>
    %c0_18 = arith.constant 0 : index
    %c0_19 = arith.constant 0 : index
    %23 = vector.load %arg7[%c0_18, %c0_19] : memref<1x32xf32, #tpu.memory_space<vmem>>, vector<1x32xf32>
    %24 = vector.broadcast %23 : vector<1x32xf32> to vector<2x32xf32>
    %25 = arith.addf %22, %24 : vector<2x32xf32>
    %26 = arith.mulf %25, %25 : vector<2x32xf32>
    %cst_20 = arith.constant dense<0.000000e+00> : vector<2xf32>
    %27 = vector.multi_reduction <add>, %26, %cst_20 [1] : vector<2x32xf32> to vector<2xf32>
    %28 = vector.shape_cast %27 : vector<2xf32> to vector<2x1xf32>
    %cst_21 = arith.constant 1.000000e-24 : f32
    %29 = vector.broadcast %cst_21 : f32 to vector<2x1xf32>
    %30 = arith.maximumf %28, %29 : vector<2x1xf32>
    %31 = math.rsqrt %30 : vector<2x1xf32>
    %32 = vector.broadcast %31 : vector<2x1xf32> to vector<2x32xf32>
    %33 = arith.mulf %25, %32 : vector<2x32xf32>
    %c0_22 = arith.constant 0 : index
    %c0_23 = arith.constant 0 : index
    %34 = vector.load %arg14[%c0_22, %c0_23] : memref<2x32xf32, #tpu.memory_space<vmem>>, vector<2x32xf32>
    tpu.vector_store %arg14[%c0_22, %c0_23], %33 {strides = array<i32>} : memref<2x32xf32, #tpu.memory_space<vmem>>, vector<2x32xf32>,
    %35 = arith.truncf %0 : vector<2x64x64xf32> to vector<2x64x64xbf16>
    %36 = vector.shape_cast %35 : vector<2x64x64xbf16> to vector<128x64xbf16>
    %c0_24 = arith.constant 0 : index
    %c0_25 = arith.constant 0 : index
    %37 = vector.load %arg8[%c0_24, %c0_25] : memref<64x32xbf16, #tpu.memory_space<vmem>>, vector<64x32xbf16>
    %cst_26 = arith.constant dense<0.000000e+00> : vector<128x32xf32>
    %38 = tpu.matmul %36, %37, %cst_26 {dimension_numbers = #tpu.dot_dimension_numbers<[1], [0], [0], [1], [0, 0, 1, 1], [], []>} : vector<128x64xbf16>, vector<64x32xbf16>, vector<128x32xf32> -> vector<128x32xf32>
    %c0_27 = arith.constant 0 : index
    %c0_28 = arith.constant 0 : index
    %39 = vector.load %arg9[%c0_27, %c0_28] : memref<1x32xf32, #tpu.memory_space<vmem>>, vector<1x32xf32>
    %40 = vector.broadcast %39 : vector<1x32xf32> to vector<128x32xf32>
    %41 = arith.addf %38, %40 : vector<128x32xf32>
    %cst_29 = arith.constant 0.000000e+00 : f32
    %42 = vector.broadcast %cst_29 : f32 to vector<128x32xf32>
    %43 = arith.maximumf %41, %42 : vector<128x32xf32>
    %44 = arith.truncf %43 : vector<128x32xf32> to vector<128x32xbf16>
    %c0_30 = arith.constant 0 : index
    %c0_31 = arith.constant 0 : index
    %45 = vector.load %arg10[%c0_30, %c0_31] : memref<32x32xbf16, #tpu.memory_space<vmem>>, vector<32x32xbf16>
    %cst_32 = arith.constant dense<0.000000e+00> : vector<128x32xf32>
    %46 = tpu.matmul %44, %45, %cst_32 {dimension_numbers = #tpu.dot_dimension_numbers<[1], [0], [0], [1], [0, 0, 1, 1], [], []>} : vector<128x32xbf16>, vector<32x32xbf16>, vector<128x32xf32> -> vector<128x32xf32>
    %c0_33 = arith.constant 0 : index
    %c0_34 = arith.constant 0 : index
    %47 = vector.load %arg11[%c0_33, %c0_34] : memref<1x32xf32, #tpu.memory_space<vmem>>, vector<1x32xf32>
    %48 = vector.broadcast %47 : vector<1x32xf32> to vector<128x32xf32>
    %49 = arith.addf %46, %48 : vector<128x32xf32>
    %cst_35 = arith.constant 0.000000e+00 : f32
    %50 = vector.broadcast %cst_35 : f32 to vector<128x32xf32>
    %51 = arith.maximumf %49, %50 : vector<128x32xf32>
    %52 = arith.truncf %51 : vector<128x32xf32> to vector<128x32xbf16>
    %c0_36 = arith.constant 0 : index
    %c0_37 = arith.constant 0 : index
    %53 = vector.load %arg12[%c0_36, %c0_37] : memref<32x32xbf16, #tpu.memory_space<vmem>>, vector<32x32xbf16>
    %cst_38 = arith.constant dense<0.000000e+00> : vector<128x32xf32>
    %54 = tpu.matmul %52, %53, %cst_38 {dimension_numbers = #tpu.dot_dimension_numbers<[1], [0], [0], [1], [0, 0, 1, 1], [], []>} : vector<128x32xbf16>, vector<32x32xbf16>, vector<128x32xf32> -> vector<128x32xf32>
    %c0_39 = arith.constant 0 : index
    %c0_40 = arith.constant 0 : index
    %55 = vector.load %arg13[%c0_39, %c0_40] : memref<1x32xf32, #tpu.memory_space<vmem>>, vector<1x32xf32>
    %56 = vector.broadcast %55 : vector<1x32xf32> to vector<128x32xf32>
    %57 = arith.addf %54, %56 : vector<128x32xf32>
    %58 = vector.shape_cast %57 : vector<128x32xf32> to vector<2x64x32xf32>
    %cst_41 = arith.constant dense<0.000000e+00> : vector<2x32xf32>
    %59 = vector.multi_reduction <add>, %58, %cst_41 [1] : vector<2x64x32xf32> to vector<2x32xf32>
    %cst_42 = arith.constant 6.400000e+01 : f32
    %60 = vector.broadcast %cst_42 : f32 to vector<2x32xf32>
    %61 = arith.divf %59, %60 : vector<2x32xf32>
    %62 = arith.mulf %61, %61 : vector<2x32xf32>
    %cst_43 = arith.constant dense<0.000000e+00> : vector<2xf32>
    %63 = vector.multi_reduction <add>, %62, %cst_43 [1] : vector<2x32xf32> to vector<2xf32>
    %64 = vector.shape_cast %63 : vector<2xf32> to vector<2x1xf32>
    %cst_44 = arith.constant 1.000000e-24 : f32
    %65 = vector.broadcast %cst_44 : f32 to vector<2x1xf32>
    %66 = arith.maximumf %64, %65 : vector<2x1xf32>
    %67 = math.rsqrt %66 : vector<2x1xf32>
    %68 = vector.broadcast %67 : vector<2x1xf32> to vector<2x32xf32>
    %69 = arith.mulf %61, %68 : vector<2x32xf32>
    %c0_45 = arith.constant 0 : index
    %c0_46 = arith.constant 0 : index
    %70 = vector.load %arg16[%c0_45, %c0_46] : memref<2x32xf32, #tpu.memory_space<vmem>>, vector<2x32xf32>
    tpu.vector_store %arg16[%c0_45, %c0_46], %69 {strides = array<i32>} : memref<2x32xf32, #tpu.memory_space<vmem>>, vector<2x32xf32>,
    %71 = arith.mulf %58, %58 : vector<2x64x32xf32>
    %cst_47 = arith.constant dense<0.000000e+00> : vector<2x64xf32>
    %72 = vector.multi_reduction <add>, %71, %cst_47 [2] : vector<2x64x32xf32> to vector<2x64xf32>
    %73 = vector.shape_cast %72 : vector<2x64xf32> to vector<2x64x1xf32>
    %cst_48 = arith.constant 1.000000e-24 : f32
    %74 = vector.broadcast %cst_48 : f32 to vector<2x64x1xf32>
    %75 = arith.maximumf %73, %74 : vector<2x64x1xf32>
    %76 = math.rsqrt %75 : vector<2x64x1xf32>
    %77 = vector.broadcast %76 : vector<2x64x1xf32> to vector<2x64x32xf32>
    %78 = arith.mulf %58, %77 : vector<2x64x32xf32>
    %79 = arith.truncf %78 : vector<2x64x32xf32> to vector<2x64x32xbf16>
    %c0_49 = arith.constant 0 : index
    %c0_50 = arith.constant 0 : index
    %c0_51 = arith.constant 0 : index
    %80 = vector.load %arg15[%c0_49, %c0_50, %c0_51] : memref<2x64x32xbf16, #tpu.memory_space<vmem>>, vector<2x64x32xbf16>
    tpu.vector_store %arg15[%c0_49, %c0_50, %c0_51], %79 {strides = array<i32>} : memref<2x64x32xbf16, #tpu.memory_space<vmem>>, vector<2x64x32xbf16>,
    return
  }
  func.func @transform_0(%arg0: i32) -> (i32, i32, i32) {
    %c0_i32 = arith.constant 0 : i32
    %c0_i32_0 = arith.constant 0 : i32
    %c0_i32_1 = arith.constant 0 : i32
    return %arg0, %c0_i32, %c0_i32_0 : i32, i32, i32
  }
  func.func @transform_1(%arg0: i32) -> (i32, i32) {
    %c0_i32 = arith.constant 0 : i32
    %c0_i32_0 = arith.constant 0 : i32
    %c0_i32_1 = arith.constant 0 : i32
    return %c0_i32, %c0_i32_0 : i32, i32
  }
  func.func @transform_2(%arg0: i32) -> (i32, i32) {
    %c0_i32 = arith.constant 0 : i32
    %c0_i32_0 = arith.constant 0 : i32
    %c0_i32_1 = arith.constant 0 : i32
    return %c0_i32, %c0_i32_0 : i32, i32
  }
  func.func @transform_3(%arg0: i32) -> (i32, i32) {
    %c0_i32 = arith.constant 0 : i32
    %c0_i32_0 = arith.constant 0 : i32
    %c0_i32_1 = arith.constant 0 : i32
    return %c0_i32, %c0_i32_0 : i32, i32
  }
  func.func @transform_4(%arg0: i32) -> (i32, i32) {
    %c0_i32 = arith.constant 0 : i32
    %c0_i32_0 = arith.constant 0 : i32
    %c0_i32_1 = arith.constant 0 : i32
    return %c0_i32, %c0_i32_0 : i32, i32
  }
  func.func @transform_5(%arg0: i32) -> (i32, i32) {
    %c0_i32 = arith.constant 0 : i32
    %c0_i32_0 = arith.constant 0 : i32
    %c0_i32_1 = arith.constant 0 : i32
    return %c0_i32, %c0_i32_0 : i32, i32
  }
  func.func @transform_6(%arg0: i32) -> (i32, i32) {
    %c0_i32 = arith.constant 0 : i32
    %c0_i32_0 = arith.constant 0 : i32
    %c0_i32_1 = arith.constant 0 : i32
    return %c0_i32, %c0_i32_0 : i32, i32
  }
  func.func @transform_7(%arg0: i32) -> (i32, i32) {
    %c0_i32 = arith.constant 0 : i32
    %c0_i32_0 = arith.constant 0 : i32
    %c0_i32_1 = arith.constant 0 : i32
    return %c0_i32, %c0_i32_0 : i32, i32
  }
  func.func @transform_8(%arg0: i32) -> (i32, i32) {
    %c0_i32 = arith.constant 0 : i32
    %c0_i32_0 = arith.constant 0 : i32
    %c0_i32_1 = arith.constant 0 : i32
    return %c0_i32, %c0_i32_0 : i32, i32
  }
  func.func @transform_9(%arg0: i32) -> (i32, i32) {
    %c0_i32 = arith.constant 0 : i32
    %c0_i32_0 = arith.constant 0 : i32
    %c0_i32_1 = arith.constant 0 : i32
    return %c0_i32, %c0_i32_0 : i32, i32
  }
  func.func @transform_10(%arg0: i32) -> (i32, i32) {
    %c0_i32 = arith.constant 0 : i32
    %c0_i32_0 = arith.constant 0 : i32
    %c0_i32_1 = arith.constant 0 : i32
    return %c0_i32, %c0_i32_0 : i32, i32
  }
  func.func @transform_11(%arg0: i32) -> (i32, i32) {
    %c0_i32 = arith.constant 0 : i32
    %c0_i32_0 = arith.constant 0 : i32
    %c0_i32_1 = arith.constant 0 : i32
    return %c0_i32, %c0_i32_0 : i32, i32
  }
  func.func @transform_12(%arg0: i32) -> (i32, i32) {
    %c0_i32 = arith.constant 0 : i32
    %c0_i32_0 = arith.constant 0 : i32
    %c0_i32_1 = arith.constant 0 : i32
    return %c0_i32, %c0_i32_0 : i32, i32
  }
  func.func @transform_13(%arg0: i32) -> (i32, i32) {
    %c0_i32 = arith.constant 0 : i32
    %c0_i32_0 = arith.constant 0 : i32
    return %arg0, %c0_i32 : i32, i32
  }
  func.func @transform_14(%arg0: i32) -> (i32, i32, i32) {
    %c0_i32 = arith.constant 0 : i32
    %c0_i32_0 = arith.constant 0 : i32
    %c0_i32_1 = arith.constant 0 : i32
    return %arg0, %c0_i32, %c0_i32_0 : i32, i32, i32
  }
  func.func @transform_15(%arg0: i32) -> (i32, i32) {
    %c0_i32 = arith.constant 0 : i32
    %c0_i32_0 = arith.constant 0 : i32
    return %arg0, %c0_i32 : i32, i32
  }
}

module attributes {stable_mosaic.version = 11 : i64} {
  func.func @_neg_logits_kernel(%arg0: i32, %arg1: i32, %arg2: memref<2x32xbf16, #tpu.memory_space<vmem>>, %arg3: memref<32x1024xbf16, #tpu.memory_space<vmem>>, %arg4: memref<2x1024xf32, #tpu.memory_space<vmem>>) attributes {dimension_semantics = [#tpu.dimension_semantics<parallel>, #tpu.dimension_semantics<parallel>], iteration_bounds = array<i64: 1, 1>, scalar_prefetch = 0 : i64, scratch_operands = 0 : i64, tpu.core_type = #tpu.core_type<tc>, window_params = [{transform_indices = @transform_0, window_bounds = array<i64: 2, 32>}, {transform_indices = @transform_1, window_bounds = array<i64: 32, 1024>}, {transform_indices = @transform_2, window_bounds = array<i64: 2, 1024>}]} {
    %c0 = arith.constant 0 : index
    %c0_0 = arith.constant 0 : index
    %0 = vector.load %arg2[%c0, %c0_0] : memref<2x32xbf16, #tpu.memory_space<vmem>>, vector<2x32xbf16>
    %c0_1 = arith.constant 0 : index
    %c0_2 = arith.constant 0 : index
    %1 = vector.load %arg3[%c0_1, %c0_2] : memref<32x1024xbf16, #tpu.memory_space<vmem>>, vector<32x1024xbf16>
    %cst = arith.constant dense<0.000000e+00> : vector<2x1024xf32>
    %2 = tpu.matmul %0, %1, %cst {dimension_numbers = #tpu.dot_dimension_numbers<[1], [0], [0], [1], [0, 0, 1, 1], [], []>} : vector<2x32xbf16>, vector<32x1024xbf16>, vector<2x1024xf32> -> vector<2x1024xf32>
    %cst_3 = arith.constant 14.2857141 : f32
    %3 = vector.broadcast %cst_3 : f32 to vector<2x1024xf32>
    %4 = arith.mulf %2, %3 : vector<2x1024xf32>
    %c0_4 = arith.constant 0 : index
    %c0_5 = arith.constant 0 : index
    %5 = vector.load %arg4[%c0_4, %c0_5] : memref<2x1024xf32, #tpu.memory_space<vmem>>, vector<2x1024xf32>
    tpu.vector_store %arg4[%c0_4, %c0_5], %4 {strides = array<i32>} : memref<2x1024xf32, #tpu.memory_space<vmem>>, vector<2x1024xf32>,
    return
  }
  func.func @transform_0(%arg0: i32, %arg1: i32) -> (i32, i32) {
    %c0_i32 = arith.constant 0 : i32
    %c0_i32_0 = arith.constant 0 : i32
    return %arg1, %c0_i32 : i32, i32
  }
  func.func @transform_1(%arg0: i32, %arg1: i32) -> (i32, i32) {
    %c0_i32 = arith.constant 0 : i32
    %c0_i32_0 = arith.constant 0 : i32
    return %c0_i32, %arg0 : i32, i32
  }
  func.func @transform_2(%arg0: i32, %arg1: i32) -> (i32, i32) {
    %c0_i32 = arith.constant 0 : i32
    return %arg1, %arg0 : i32, i32
  }
}

module attributes {stable_mosaic.version = 11 : i64} {
  func.func @_neg_logits_kernel(%arg0: i32, %arg1: i32, %arg2: memref<128x32xbf16, #tpu.memory_space<vmem>>, %arg3: memref<32x1024xbf16, #tpu.memory_space<vmem>>, %arg4: memref<128x1024xf32, #tpu.memory_space<vmem>>) attributes {dimension_semantics = [#tpu.dimension_semantics<parallel>, #tpu.dimension_semantics<parallel>], iteration_bounds = array<i64: 1, 1>, scalar_prefetch = 0 : i64, scratch_operands = 0 : i64, tpu.core_type = #tpu.core_type<tc>, window_params = [{transform_indices = @transform_0, window_bounds = array<i64: 128, 32>}, {transform_indices = @transform_1, window_bounds = array<i64: 32, 1024>}, {transform_indices = @transform_2, window_bounds = array<i64: 128, 1024>}]} {
    %c0 = arith.constant 0 : index
    %c0_0 = arith.constant 0 : index
    %0 = vector.load %arg2[%c0, %c0_0] : memref<128x32xbf16, #tpu.memory_space<vmem>>, vector<128x32xbf16>
    %c0_1 = arith.constant 0 : index
    %c0_2 = arith.constant 0 : index
    %1 = vector.load %arg3[%c0_1, %c0_2] : memref<32x1024xbf16, #tpu.memory_space<vmem>>, vector<32x1024xbf16>
    %cst = arith.constant dense<0.000000e+00> : vector<128x1024xf32>
    %2 = tpu.matmul %0, %1, %cst {dimension_numbers = #tpu.dot_dimension_numbers<[1], [0], [0], [1], [0, 0, 1, 1], [], []>} : vector<128x32xbf16>, vector<32x1024xbf16>, vector<128x1024xf32> -> vector<128x1024xf32>
    %cst_3 = arith.constant 14.2857141 : f32
    %3 = vector.broadcast %cst_3 : f32 to vector<128x1024xf32>
    %4 = arith.mulf %2, %3 : vector<128x1024xf32>
    %c0_4 = arith.constant 0 : index
    %c0_5 = arith.constant 0 : index
    %5 = vector.load %arg4[%c0_4, %c0_5] : memref<128x1024xf32, #tpu.memory_space<vmem>>, vector<128x1024xf32>
    tpu.vector_store %arg4[%c0_4, %c0_5], %4 {strides = array<i32>} : memref<128x1024xf32, #tpu.memory_space<vmem>>, vector<128x1024xf32>,
    return
  }
  func.func @transform_0(%arg0: i32, %arg1: i32) -> (i32, i32) {
    %c0_i32 = arith.constant 0 : i32
    %c0_i32_0 = arith.constant 0 : i32
    return %arg1, %c0_i32 : i32, i32
  }
  func.func @transform_1(%arg0: i32, %arg1: i32) -> (i32, i32) {
    %c0_i32 = arith.constant 0 : i32
    %c0_i32_0 = arith.constant 0 : i32
    return %c0_i32, %arg0 : i32, i32
  }
  func.func @transform_2(%arg0: i32, %arg1: i32) -> (i32, i32) {
    %c0_i32 = arith.constant 0 : i32
    return %arg1, %arg0 : i32, i32
  }
}

</mosaic_0001>

<llo_original>
// kernel: moco_forward.7
$region0: #{moco_forward.7}
  #allocation0 [shape = 'u32[]', space=smem, size = 0x4, offset = 0x4, fixed_abs, tag = 'smem constant byte address 0x4 - core index']
  #allocation1 [shape = 'u32[72,128]{1,0:T(1,128)}', space=vmem, size = 0x9000, scoped, tag = 'internal scratch']
  %s0 = inlined_call_operand.vmem [shape: bf16[2,32], index: 0, kind: input, shape index: {}]
  %s1 = inlined_call_operand.vmem [shape: bf16[32,1024], index: 1, kind: input, shape index: {}]
  %s2 = inlined_call_operand.vmem [shape: f32[2,1024], index: 2, kind: output, shape index: {}]
  %s3 = sld [smem:[#allocation0]]
  $region18: #{moco_forward.7} parent=0
    _
  %s5 = ssub.s32 1, %s3
  %s6 = scalar_select 0, %s5, %s3
  // Predicated region
  $region2: #{moco_forward.7} parent=0 // pred_check
    _
  $region3: #{moco_forward.7} parent=0 // pred_check_branch
    %8 = sbr.rel (0) target = $region5
  $region4: #{moco_forward.7} parent=0 // pred_region
    _
  $region5: #{moco_forward.7} parent=0 // pred_fallthru
    _
  // Predicated region
  $region6: #{moco_forward.7} parent=0 // pred_check
    _
  $region7: #{moco_forward.7} parent=0 // pred_check_branch
    %10 = sbr.rel (0) target = $region9
  $region8: #{moco_forward.7} parent=0 // pred_region
    _
  $region9: #{moco_forward.7} parent=0 // pred_fallthru
    _
  %v12 = vld [vmem:[%s0] sm:$0x1]
  %v13 = vld [vmem:[%s1] sm:$0xff]
  %v14 = vld [vmem:[%s1 + $0x8] sm:$0xff]
  %v15 = vld [vmem:[%s1 + $0x10] sm:$0xff]
  %v16 = vld [vmem:[%s1 + $0x18] sm:$0xff]
  %v17 = vld [vmem:[%s1 + $0x20] sm:$0xff]
  %v18 = vld [vmem:[%s1 + $0x28] sm:$0xff]
  %v19 = vld [vmem:[%s1 + $0x30] sm:$0xff]
  %v20 = vld [vmem:[%s1 + $0x38] sm:$0xff]
  %v21 = vld [vmem:[%s1 + $0x40] sm:$0xff]
  %v22 = vld [vmem:[%s1 + $0x48] sm:$0xff]
  %v23 = vld [vmem:[%s1 + $0x50] sm:$0xff]
  %v24 = vld [vmem:[%s1 + $0x58] sm:$0xff]
  %v25 = vld [vmem:[%s1 + $0x60] sm:$0xff]
  %v26 = vld [vmem:[%s1 + $0x68] sm:$0xff]
  %v27 = vld [vmem:[%s1 + $0x70] sm:$0xff]
  %v28 = vld [vmem:[%s1 + $0x78] sm:$0xff]
  %v45 = vunpack.c.l.b16 %v13
  %v46 = vunpack.c.h.b16 %v13
  %v47 = vunpack.c.l.b16 %v14
  %v48 = vunpack.c.h.b16 %v14
  %v49 = vunpack.c.l.b16 %v15
  %v50 = vunpack.c.h.b16 %v15
  %v51 = vunpack.c.l.b16 %v16
  %v52 = vunpack.c.h.b16 %v16
  %v53 = vunpack.c.l.b16 %v17
  %v54 = vunpack.c.h.b16 %v17
  %v55 = vunpack.c.l.b16 %v18
  %v56 = vunpack.c.h.b16 %v18
  %v57 = vunpack.c.l.b16 %v19
  %v58 = vunpack.c.h.b16 %v19
  %v59 = vunpack.c.l.b16 %v20
  %v60 = vunpack.c.h.b16 %v20
  %v61 = vunpack.c.l.b16 %v21
  %v62 = vunpack.c.h.b16 %v21
  %v63 = vunpack.c.l.b16 %v22
  %v64 = vunpack.c.h.b16 %v22
  %v65 = vunpack.c.l.b16 %v23
  %v66 = vunpack.c.h.b16 %v23
  %v67 = vunpack.c.l.b16 %v24
  %v68 = vunpack.c.h.b16 %v24
  %v69 = vunpack.c.l.b16 %v25
  %v70 = vunpack.c.h.b16 %v25
  %v71 = vunpack.c.l.b16 %v26
  %v72 = vunpack.c.h.b16 %v26
  %v73 = vunpack.c.l.b16 %v27
  %v74 = vunpack.c.h.b16 %v27
  %v75 = vunpack.c.l.b16 %v28
  %v76 = vunpack.c.h.b16 %v28
  %v77 = vpack.c.b16 %v53, %v45
  %v78 = vpack.c.b16 %v54, %v46
  %v79 = vpack.c.b16 %v55, %v47
  %v80 = vpack.c.b16 %v56, %v48
  %v81 = vpack.c.b16 %v57, %v49
  %v82 = vpack.c.b16 %v58, %v50
  %v83 = vpack.c.b16 %v59, %v51
  %v84 = vpack.c.b16 %v60, %v52
  %v85 = vpack.c.b16 %v69, %v61
  %v86 = vpack.c.b16 %v70, %v62
  %v87 = vpack.c.b16 %v71, %v63
  %v88 = vpack.c.b16 %v72, %v64
  %v89 = vpack.c.b16 %v73, %v65
  %v90 = vpack.c.b16 %v74, %v66
  %v91 = vpack.c.b16 %v75, %v67
  %v92 = vpack.c.b16 %v76, %v68
  %vm109 = vcmask 261120
  %v111 = vsel %vm109, %v12, 0
  %113 = vmatpush.bf16.msra.mxu0 0
  %114 = vmatpush.bf16.msra.mxu0 0
  %115 = vmatpush.bf16.msra.mxu0 0
  %116 = vmatpush.bf16.msra.mxu0 0
  %117 = vmatpush.bf16.msra.mxu0 0
  %118 = vmatpush.bf16.msra.mxu0 0
  %119 = vmatpush.bf16.msra.mxu0 %v85
  %120 = vmatpush.bf16.msra.mxu0 %v77
  %121 = vmatmul.bf16.gmra.mxu0 %v111
  %v122 = vpop.f32.mrf.mxu0
  %v123 = vadd.f32 0.0, %v122
  %v124 = vpop.f32.mrf.mxu0
  %125 = vdwg.mxu0
  %126 = vmatpush.bf16.msra.mxu0 0
  %127 = vmatpush.bf16.msra.mxu0 0
  %128 = vmatpush.bf16.msra.mxu0 0
  %129 = vmatpush.bf16.msra.mxu0 0
  %130 = vmatpush.bf16.msra.mxu0 0
  %131 = vmatpush.bf16.msra.mxu0 0
  %132 = vmatpush.bf16.msra.mxu0 %v86
  %133 = vmatpush.bf16.msra.mxu0 %v78
  %134 = vmatmul.bf16.gmra.mxu0 %v111
  %v135 = vpop.f32.mrf.mxu0
  %v136 = vadd.f32 0.0, %v135
  %v137 = vpop.f32.mrf.mxu0
  %138 = vdwg.mxu0
  %139 = vmatpush.bf16.msra.mxu0 0
  %140 = vmatpush.bf16.msra.mxu0 0
  %141 = vmatpush.bf16.msra.mxu0 0
  %142 = vmatpush.bf16.msra.mxu0 0
  %143 = vmatpush.bf16.msra.mxu0 0
  %144 = vmatpush.bf16.msra.mxu0 0
  %145 = vmatpush.bf16.msra.mxu0 %v87
  %146 = vmatpush.bf16.msra.mxu0 %v79
  %147 = vmatmul.bf16.gmra.mxu0 %v111
  %v148 = vpop.f32.mrf.mxu0
  %v149 = vadd.f32 0.0, %v148
  %v150 = vpop.f32.mrf.mxu0
  %151 = vdwg.mxu0
  %152 = vmatpush.bf16.msra.mxu0 0
  %153 = vmatpush.bf16.msra.mxu0 0
  %154 = vmatpush.bf16.msra.mxu0 0
  %155 = vmatpush.bf16.msra.mxu0 0
  %156 = vmatpush.bf16.msra.mxu0 0
  %157 = vmatpush.bf16.msra.mxu0 0
  %158 = vmatpush.bf16.msra.mxu0 %v88
  %159 = vmatpush.bf16.msra.mxu0 %v80
  %160 = vmatmul.bf16.gmra.mxu0 %v111
  %v161 = vpop.f32.mrf.mxu0
  %v162 = vadd.f32 0.0, %v161
  %v163 = vpop.f32.mrf.mxu0
  %164 = vdwg.mxu0
  %165 = vmatpush.bf16.msra.mxu0 0
  %166 = vmatpush.bf16.msra.mxu0 0
  %167 = vmatpush.bf16.msra.mxu0 0
  %168 = vmatpush.bf16.msra.mxu0 0
  %169 = vmatpush.bf16.msra.mxu0 0
  %170 = vmatpush.bf16.msra.mxu0 0
  %171 = vmatpush.bf16.msra.mxu0 %v89
  %172 = vmatpush.bf16.msra.mxu0 %v81
  %173 = vmatmul.bf16.gmra.mxu0 %v111
  %v174 = vpop.f32.mrf.mxu0
  %v175 = vadd.f32 0.0, %v174
  %v176 = vpop.f32.mrf.mxu0
  %177 = vdwg.mxu0
  %178 = vmatpush.bf16.msra.mxu0 0
  %179 = vmatpush.bf16.msra.mxu0 0
  %180 = vmatpush.bf16.msra.mxu0 0
  %181 = vmatpush.bf16.msra.mxu0 0
  %182 = vmatpush.bf16.msra.mxu0 0
  %183 = vmatpush.bf16.msra.mxu0 0
  %184 = vmatpush.bf16.msra.mxu0 %v90
  %185 = vmatpush.bf16.msra.mxu0 %v82
  %186 = vmatmul.bf16.gmra.mxu0 %v111
  %v187 = vpop.f32.mrf.mxu0
  %v188 = vadd.f32 0.0, %v187
  %v189 = vpop.f32.mrf.mxu0
  %190 = vdwg.mxu0
  %191 = vmatpush.bf16.msra.mxu0 0
  %192 = vmatpush.bf16.msra.mxu0 0
  %193 = vmatpush.bf16.msra.mxu0 0
  %194 = vmatpush.bf16.msra.mxu0 0
  %195 = vmatpush.bf16.msra.mxu0 0
  %196 = vmatpush.bf16.msra.mxu0 0
  %197 = vmatpush.bf16.msra.mxu0 %v91
  %198 = vmatpush.bf16.msra.mxu0 %v83
  %199 = vmatmul.bf16.gmra.mxu0 %v111
  %v200 = vpop.f32.mrf.mxu0
  %v201 = vadd.f32 0.0, %v200
  %v202 = vpop.f32.mrf.mxu0
  %203 = vdwg.mxu0
  %204 = vmatpush.bf16.msra.mxu0 0
  %205 = vmatpush.bf16.msra.mxu0 0
  %206 = vmatpush.bf16.msra.mxu0 0
  %207 = vmatpush.bf16.msra.mxu0 0
  %208 = vmatpush.bf16.msra.mxu0 0
  %209 = vmatpush.bf16.msra.mxu0 0
  %210 = vmatpush.bf16.msra.mxu0 %v92
  %211 = vmatpush.bf16.msra.mxu0 %v84
  %212 = vmatmul.bf16.gmra.mxu0 %v111
  %v213 = vpop.f32.mrf.mxu0
  %v214 = vadd.f32 0.0, %v213
  %v215 = vpop.f32.mrf.mxu0
  %216 = vdwg.mxu0
  %v217 = vmul.f32 %v123, 14.285714
  %v218 = vmul.f32 %v136, 14.285714
  %v219 = vmul.f32 %v149, 14.285714
  %v220 = vmul.f32 %v162, 14.285714
  %v221 = vmul.f32 %v175, 14.285714
  %v222 = vmul.f32 %v188, 14.285714
  %v223 = vmul.f32 %v201, 14.285714
  %v224 = vmul.f32 %v214, 14.285714
  %v233 = vrot.slane %v218, 6
  %v234 = vrot.slane %v219, 4
  %v235 = vrot.slane %v220, 2
  %v236 = vrot.slane %v222, 6
  %v237 = vrot.slane %v223, 4
  %v238 = vrot.slane %v224, 2
  %vm239 = vcmask 1041408
  %v240 = vsel %vm239, %v217, %v233
  %vm241 = vcmask 1045508
  %v242 = vsel %vm241, %v234, %v235
  %vm243 = vcmask 1043456
  %v244 = vsel %vm243, %v240, %v242
  %v245 = vsel %vm239, %v221, %v236
  %v246 = vsel %vm241, %v237, %v238
  %v247 = vsel %vm243, %v245, %v246
  %250 = vst [vmem:[%s2] sm:$0xff] %v244
  %251 = vst [vmem:[%s2 + $0x8] sm:$0xff] %v247
  // Predicated region
  $region10: #{moco_forward.7} parent=0 // pred_check
    _
  $region11: #{moco_forward.7} parent=0 // pred_check_branch
    %253 = sbr.rel (0) target = $region13
  $region12: #{moco_forward.7} parent=0 // pred_region
    _
  $region13: #{moco_forward.7} parent=0 // pred_fallthru
    _
  // Predicated region
  $region14: #{moco_forward.7} parent=0 // pred_check
    _
  $region15: #{moco_forward.7} parent=0 // pred_check_branch
    %255 = sbr.rel (0) target = $region17
  $region16: #{moco_forward.7} parent=0 // pred_region
    _
  $region17: #{moco_forward.7} parent=0 // pred_fallthru
    _

// kernel: moco_forward.5
$region0: #{moco_forward.5}
  #allocation0 [shape = 'u32[]', space=smem, size = 0x4, offset = 0x4, fixed_abs, tag = 'smem constant byte address 0x4 - core index']
  #allocation1 [shape = 'u32[72,128]{1,0:T(1,128)}', space=vmem, size = 0x9000, scoped, tag = 'internal scratch']
  %s0 = inlined_call_operand.vmem [shape: f32[2,64,64], index: 0, kind: input, shape index: {}]
  %s1 = inlined_call_operand.vmem [shape: bf16[64,32], index: 1, kind: input, shape index: {}]
  %s2 = inlined_call_operand.vmem [shape: f32[1,32], index: 2, kind: input, shape index: {}]
  %s3 = inlined_call_operand.vmem [shape: bf16[32,32], index: 3, kind: input, shape index: {}]
  %s4 = inlined_call_operand.vmem [shape: f32[1,32], index: 4, kind: input, shape index: {}]
  %s5 = inlined_call_operand.vmem [shape: bf16[32,32], index: 5, kind: input, shape index: {}]
  %s6 = inlined_call_operand.vmem [shape: f32[1,32], index: 6, kind: input, shape index: {}]
  %s7 = inlined_call_operand.vmem [shape: bf16[64,32], index: 7, kind: input, shape index: {}]
  %s8 = inlined_call_operand.vmem [shape: f32[1,32], index: 8, kind: input, shape index: {}]
  %s9 = inlined_call_operand.vmem [shape: bf16[32,32], index: 9, kind: input, shape index: {}]
  %s10 = inlined_call_operand.vmem [shape: f32[1,32], index: 10, kind: input, shape index: {}]
  %s11 = inlined_call_operand.vmem [shape: bf16[32,32], index: 11, kind: input, shape index: {}]
  %s12 = inlined_call_operand.vmem [shape: f32[1,32], index: 12, kind: input, shape index: {}]
  %s13 = inlined_call_operand.vmem [shape: f32[2,32], index: 13, kind: output, shape index: {0}]
  %s14 = inlined_call_operand.vmem [shape: bf16[2,64,32], index: 14, kind: output, shape index: {1}]
  %s15 = inlined_call_operand.hbm [shape: f32[2,32], index: 15, kind: output, shape index: {2}]
  %16 = xla_tuple %s13, %s14, %s15
  %s17 = sld [smem:[#allocation0]]
  $region78: #{moco_forward.5} parent=0
    _
  %s19 = ssub.s32 1, %s17
  %s20 = scalar_select 0, %s19, %s17
  $region1: #{moco_forward.5} parent=0
    #allocation2 [shape = 'u8[1024]{0}', space=vmem, size = 0x400, scoped, tag = 'output window, operand 2, single buffered']
    #allocation3 [shape = 's32[1]{0}', space=sflag, size = 0x4, scoped, tag = 'scoped memory for moco_forward.5']
    %21 = vsyncpa [#allocation3], 0
    // Predicated region
    $region2: #{moco_forward.5} parent=1 // pred_check
      _
    $region3: #{moco_forward.5} parent=1 // pred_check_branch
      %23 = sbr.rel (0) target = $region5
    $region4: #{moco_forward.5} parent=1 // pred_region
      _
    $region5: #{moco_forward.5} parent=1 // pred_fallthru
      _
    // Predicated region
    $region6: #{moco_forward.5} parent=1 // pred_check
      _
    $region7: #{moco_forward.5} parent=1 // pred_check_branch
      %25 = sbr.rel (0) target = $region9
    $region8: #{moco_forward.5} parent=1 // pred_region
      _
    $region9: #{moco_forward.5} parent=1 // pred_fallthru
      _
    // Predicated region
    $region10: #{moco_forward.5} parent=1 // pred_check
      _
    $region11: #{moco_forward.5} parent=1 // pred_check_branch
      %27 = sbr.rel (0) target = $region13
    $region12: #{moco_forward.5} parent=1 // pred_region
      _
    $region13: #{moco_forward.5} parent=1 // pred_fallthru
      _
    // Predicated region
    $region14: #{moco_forward.5} parent=1 // pred_check
      _
    $region15: #{moco_forward.5} parent=1 // pred_check_branch
      %29 = sbr.rel (0) target = $region17
    $region16: #{moco_forward.5} parent=1 // pred_region
      _
    $region17: #{moco_forward.5} parent=1 // pred_fallthru
      _
    // Predicated region
    $region18: #{moco_forward.5} parent=1 // pred_check
      _
    $region19: #{moco_forward.5} parent=1 // pred_check_branch
      %31 = sbr.rel (0) target = $region21
    $region20: #{moco_forward.5} parent=1 // pred_region
      _
    $region21: #{moco_forward.5} parent=1 // pred_fallthru
      _
    // Predicated region
    $region22: #{moco_forward.5} parent=1 // pred_check
      _
    $region23: #{moco_forward.5} parent=1 // pred_check_branch
      %33 = sbr.rel (0) target = $region25
    $region24: #{moco_forward.5} parent=1 // pred_region
      _
    $region25: #{moco_forward.5} parent=1 // pred_fallthru
      _
    // Predicated region
    $region26: #{moco_forward.5} parent=1 // pred_check
      _
    $region27: #{moco_forward.5} parent=1 // pred_check_branch
      %35 = sbr.rel (0) target = $region29
    $region28: #{moco_forward.5} parent=1 // pred_region
      _
    $region29: #{moco_forward.5} parent=1 // pred_fallthru
      _
    // Predicated region
    $region30: #{moco_forward.5} parent=1 // pred_check
      _
    $region31: #{moco_forward.5} parent=1 // pred_check_branch
      %37 = sbr.rel (0) target = $region33
    $region32: #{moco_forward.5} parent=1 // pred_region
      _
    $region33: #{moco_forward.5} parent=1 // pred_fallthru
      _
    // Predicated region
    $region34: #{moco_forward.5} parent=1 // pred_check
      _
    $region35: #{moco_forward.5} parent=1 // pred_check_branch
      %39 = sbr.rel (0) target = $region37
    $region36: #{moco_forward.5} parent=1 // pred_region
      _
    $region37: #{moco_forward.5} parent=1 // pred_fallthru
      _
    // Predicated region
    $region38: #{moco_forward.5} parent=1 // pred_check
      _
    $region39: #{moco_forward.5} parent=1 // pred_check_branch
      %41 = sbr.rel (0) target = $region41
    $region40: #{moco_forward.5} parent=1 // pred_region
      _
    $region41: #{moco_forward.5} parent=1 // pred_fallthru
      _
    // Predicated region
    $region42: #{moco_forward.5} parent=1 // pred_check
      _
    $region43: #{moco_forward.5} parent=1 // pred_check_branch
      %43 = sbr.rel (0) target = $region45
    $region44: #{moco_forward.5} parent=1 // pred_region
      _
    $region45: #{moco_forward.5} parent=1 // pred_fallthru
      _
    // Predicated region
    $region46: #{moco_forward.5} parent=1 // pred_check
      _
    $region47: #{moco_forward.5} parent=1 // pred_check_branch
      %45 = sbr.rel (0) target = $region49
    $region48: #{moco_forward.5} parent=1 // pred_region
      _
    $region49: #{moco_forward.5} parent=1 // pred_fallthru
      _
    // Predicated region
    $region50: #{moco_forward.5} parent=1 // pred_check
      _
    $region51: #{moco_forward.5} parent=1 // pred_check_branch
      %47 = sbr.rel (0) target = $region53
    $region52: #{moco_forward.5} parent=1 // pred_region
      _
    $region53: #{moco_forward.5} parent=1 // pred_fallthru
      _
    %v49 = vld [vmem:[%s0] sm:$0xff]
    %v50 = vld [vmem:[%s0 + $0x8] sm:$0xff]
    %v51 = vld [vmem:[%s0 + $0x10] sm:$0xff]
    %v52 = vld [vmem:[%s0 + $0x18] sm:$0xff]
    %v53 = vld [vmem:[%s0 + $0x20] sm:$0xff]
    %v54 = vld [vmem:[%s0 + $0x28] sm:$0xff]
    %v55 = vld [vmem:[%s0 + $0x30] sm:$0xff]
    %v56 = vld [vmem:[%s0 + $0x38] sm:$0xff]
    %v57 = vld [vmem:[%s0 + $0x40] sm:$0xff]
    %v58 = vld [vmem:[%s0 + $0x48] sm:$0xff]
    %v59 = vld [vmem:[%s0 + $0x50] sm:$0xff]
    %v60 = vld [vmem:[%s0 + $0x58] sm:$0xff]
    %v61 = vld [vmem:[%s0 + $0x60] sm:$0xff]
    %v62 = vld [vmem:[%s0 + $0x68] sm:$0xff]
    %v63 = vld [vmem:[%s0 + $0x70] sm:$0xff]
    %v64 = vld [vmem:[%s0 + $0x78] sm:$0xff]
    %vm65 = vcmask 523264
    %v66 = vsel %vm65, %v49, 0.0
    %v67 = vsel %vm65, %v50, 0.0
    %v68 = vadd.f32 %v66, %v67
    %v69 = vsel %vm65, %v51, 0.0
    %v70 = vadd.f32 %v68, %v69
    %v71 = vsel %vm65, %v52, 0.0
    %v72 = vadd.f32 %v70, %v71
    %v73 = vsel %vm65, %v53, 0.0
    %v74 = vadd.f32 %v72, %v73
    %v75 = vsel %vm65, %v54, 0.0
    %v76 = vadd.f32 %v74, %v75
    %v77 = vsel %vm65, %v55, 0.0
    %v78 = vadd.f32 %v76, %v77
    %v79 = vsel %vm65, %v56, 0.0
    %v80 = vadd.f32 %v78, %v79
    %v81 = vrot.slane %v80, 4
    %v82 = vadd.f32 %v80, %v81
    %v83 = vrot.slane %v82, 2
    %v84 = vadd.f32 %v82, %v83
    %v85 = vrot.slane %v84, 1
    %v86 = vadd.f32 %v84, %v85
    %v87 = vsel %vm65, %v57, 0.0
    %v88 = vsel %vm65, %v58, 0.0
    %v89 = vadd.f32 %v87, %v88
    %v90 = vsel %vm65, %v59, 0.0
    %v91 = vadd.f32 %v89, %v90
    %v92 = vsel %vm65, %v60, 0.0
    %v93 = vadd.f32 %v91, %v92
    %v94 = vsel %vm65, %v61, 0.0
    %v95 = vadd.f32 %v93, %v94
    %v96 = vsel %vm65, %v62, 0.0
    %v97 = vadd.f32 %v95, %v96
    %v98 = vsel %vm65, %v63, 0.0
    %v99 = vadd.f32 %v97, %v98
    %v100 = vsel %vm65, %v64, 0.0
    %v101 = vadd.f32 %v99, %v100
    %v102 = vrot.slane %v101, 4
    %v103 = vadd.f32 %v101, %v102
    %v104 = vrot.slane %v103, 2
    %v105 = vadd.f32 %v103, %v104
    %v106 = vrot.slane %v105, 1
    %v107 = vadd.f32 %v105, %v106
    %v108 = vrcp.pop 64.0
    %v109 = vmul.f32 64.0, %v108
    %v110 = vsub.f32 1.0, %v109
    %v111 = vmul.f32 %v108, %v110
    %v112 = vadd.f32 %v108, %v111
    %vm113 = vweird.f32 %v108
    %v114 = vsel %vm113, %v108, %v112
    %v115 = vmul.f32 %v86, %v114
    %v116 = vmul.f32 %v107, %v114
    %v117 = vpack.c.bf16 %v115, %v115
    %v118 = vpack.c.bf16 %v116, %v116
    %v119 = vld [vmem:[%s1] sm:$0xf]
    %v120 = vld [vmem:[%s1 + $0x4] sm:$0xf]
    %v121 = vld [vmem:[%s1 + $0x8] sm:$0xf]
    %v122 = vld [vmem:[%s1 + $0xc] sm:$0xf]
    %v123 = vld [vmem:[%s1 + $0x10] sm:$0xf]
    %v124 = vld [vmem:[%s1 + $0x14] sm:$0xf]
    %v125 = vld [vmem:[%s1 + $0x18] sm:$0xf]
    %v126 = vld [vmem:[%s1 + $0x1c] sm:$0xf]
    %v127 = vld [vmem:[%s2] sm:$0x1]
    %v129 = vperm.slane %v127, 0
    %v133 = vunpack.c.l.b16 %v117
    %v134 = vunpack.c.l.b16 %v118
    %vm135 = vcmask 1041409
    %v136 = vsel %vm135, %v134, %v133
    %v137 = vpack.c.b16 %v136, %v136
    %v146 = vunpack.c.l.b16 %v119
    %v147 = vunpack.c.l.b16 %v120
    %v148 = vunpack.c.l.b16 %v121
    %v149 = vunpack.c.l.b16 %v122
    %v150 = vunpack.c.l.b16 %v123
    %v151 = vunpack.c.l.b16 %v124
    %v152 = vunpack.c.l.b16 %v125
    %v153 = vunpack.c.l.b16 %v126
    %v154 = vpack.c.b16 %v147, %v146
    %v155 = vpack.c.b16 %v149, %v148
    %v156 = vpack.c.b16 %v151, %v150
    %v157 = vpack.c.b16 %v153, %v152
    %v163 = vsel %vm65, %v137, 0
    %165 = vmatpush.bf16.msra.mxu0 0
    %166 = vmatpush.bf16.msra.mxu0 0
    %167 = vmatpush.bf16.msra.mxu0 0
    %168 = vmatpush.bf16.msra.mxu0 0
    %169 = vmatpush.bf16.msra.mxu0 %v157
    %170 = vmatpush.bf16.msra.mxu0 %v156
    %171 = vmatpush.bf16.msra.mxu0 %v155
    %172 = vmatpush.bf16.msra.mxu0 %v154
    %173 = vmatmul.bf16.gmra.mxu0 %v163
    %v174 = vpop.f32.mrf.mxu0
    %v175 = vadd.f32 %v129, %v174
    %v176 = vpop.f32.mrf.mxu0
    %177 = vdwg.mxu0
    %v178 = vmax.f32 %v175, 0.0
    %v179 = vpack.c.bf16 %v178, %v178
    %v180 = vld [vmem:[%s3] sm:$0xf]
    %v181 = vld [vmem:[%s3 + $0x4] sm:$0xf]
    %v182 = vld [vmem:[%s3 + $0x8] sm:$0xf]
    %v183 = vld [vmem:[%s3 + $0xc] sm:$0xf]
    %v184 = vld [vmem:[%s4] sm:$0x1]
    %v186 = vperm.slane %v184, 0
    %v192 = vunpack.c.l.b16 %v180
    %v193 = vunpack.c.l.b16 %v181
    %v194 = vunpack.c.l.b16 %v182
    %v195 = vunpack.c.l.b16 %v183
    %v196 = vpack.c.b16 %v193, %v192
    %v197 = vpack.c.b16 %v195, %v194
    %vm200 = vcmask 261120
    %v202 = vsel %vm200, %v179, 0
    %204 = vmatpush.bf16.msra.mxu0 0
    %205 = vmatpush.bf16.msra.mxu0 0
    %206 = vmatpush.bf16.msra.mxu0 0
    %207 = vmatpush.bf16.msra.mxu0 0
    %208 = vmatpush.bf16.msra.mxu0 0
    %209 = vmatpush.bf16.msra.mxu0 0
    %210 = vmatpush.bf16.msra.mxu0 %v197
    %211 = vmatpush.bf16.msra.mxu0 %v196
    %212 = vmatmul.bf16.gmra.mxu0 %v202
    %v213 = vpop.f32.mrf.mxu0
    %v214 = vadd.f32 %v186, %v213
    %v215 = vpop.f32.mrf.mxu0
    %216 = vdwg.mxu0
    %v217 = vmax.f32 %v214, 0.0
    %v218 = vpack.c.bf16 %v217, %v217
    %v219 = vld [vmem:[%s5] sm:$0xf]
    %v220 = vld [vmem:[%s5 + $0x4] sm:$0xf]
    %v221 = vld [vmem:[%s5 + $0x8] sm:$0xf]
    %v222 = vld [vmem:[%s5 + $0xc] sm:$0xf]
    %v223 = vld [vmem:[%s6] sm:$0x1]
    %v225 = vperm.slane %v223, 0
    %v231 = vunpack.c.l.b16 %v219
    %v232 = vunpack.c.l.b16 %v220
    %v233 = vunpack.c.l.b16 %v221
    %v234 = vunpack.c.l.b16 %v222
    %v235 = vpack.c.b16 %v232, %v231
    %v236 = vpack.c.b16 %v234, %v233
    %v240 = vsel %vm200, %v218, 0
    %242 = vmatpush.bf16.msra.mxu0 0
    %243 = vmatpush.bf16.msra.mxu0 0
    %244 = vmatpush.bf16.msra.mxu0 0
    %245 = vmatpush.bf16.msra.mxu0 0
    %246 = vmatpush.bf16.msra.mxu0 0
    %247 = vmatpush.bf16.msra.mxu0 0
    %248 = vmatpush.bf16.msra.mxu0 %v236
    %249 = vmatpush.bf16.msra.mxu0 %v235
    %250 = vmatmul.bf16.gmra.mxu0 %v240
    %v251 = vpop.f32.mrf.mxu0
    %v252 = vadd.f32 %v225, %v251
    %v253 = vpop.f32.mrf.mxu0
    %254 = vdwg.mxu0
    %v255 = vmul.f32 %v252, %v252
    %vm256 = vcmask 254976
    %v257 = vsel %vm256, %v255, 0.0
    %258 = vadd.xlane.f32.xlu0 %v257
    %v259 = vpop.xlane.xlu0 %258
    %v260 = vmax.f32 %v259, 1e-24
    %v261 = vrsqrt.pop %v260
    %v262 = vmul.f32 %v261, %v260
    %v263 = vmul.f32 %v262, %v261
    %v264 = vmul.f32 0.5, %v263
    %v265 = vsub.f32 1.5, %v264
    %v266 = vmul.f32 %v261, %v265
    %vm267 = vweird.f32 %v260
    %vm268 = vweird.f32 %v261
    %vm269 = vmor %vm267, %vm268
    %v270 = vsel %vm269, %v261, %v266
    %v271 = vmul.f32 %v252, %v270
    %272 = vst.msk [vmem:[%s13] sm:$0x3] %vm256, %v271
    %v273 = vpack.c.bf16 %v49, %v49
    %v274 = vpack.c.bf16 %v50, %v50
    %v275 = vpack.c.bf16 %v51, %v51
    %v276 = vpack.c.bf16 %v52, %v52
    %v277 = vpack.c.bf16 %v53, %v53
    %v278 = vpack.c.bf16 %v54, %v54
    %v279 = vpack.c.bf16 %v55, %v55
    %v280 = vpack.c.bf16 %v56, %v56
    %v281 = vpack.c.bf16 %v57, %v57
    %v282 = vpack.c.bf16 %v58, %v58
    %v283 = vpack.c.bf16 %v59, %v59
    %v284 = vpack.c.bf16 %v60, %v60
    %v285 = vpack.c.bf16 %v61, %v61
    %v286 = vpack.c.bf16 %v62, %v62
    %v287 = vpack.c.bf16 %v63, %v63
    %v288 = vpack.c.bf16 %v64, %v64
    %v289 = vld [vmem:[%s7] sm:$0xf]
    %v290 = vld [vmem:[%s7 + $0x4] sm:$0xf]
    %v291 = vld [vmem:[%s7 + $0x8] sm:$0xf]
    %v292 = vld [vmem:[%s7 + $0xc] sm:$0xf]
    %v293 = vld [vmem:[%s7 + $0x10] sm:$0xf]
    %v294 = vld [vmem:[%s7 + $0x14] sm:$0xf]
    %v295 = vld [vmem:[%s7 + $0x18] sm:$0xf]
    %v296 = vld [vmem:[%s7 + $0x1c] sm:$0xf]
    %v297 = vld [vmem:[%s8] sm:$0x1]
    %v299 = vperm.slane %v297, 0
    %v317 = vunpack.c.l.b16 %v273
    %v318 = vunpack.c.l.b16 %v274
    %v319 = vunpack.c.l.b16 %v275
    %v320 = vunpack.c.l.b16 %v276
    %v321 = vunpack.c.l.b16 %v277
    %v322 = vunpack.c.l.b16 %v278
    %v323 = vunpack.c.l.b16 %v279
    %v324 = vunpack.c.l.b16 %v280
    %v325 = vunpack.c.l.b16 %v281
    %v326 = vunpack.c.l.b16 %v282
    %v327 = vunpack.c.l.b16 %v283
    %v328 = vunpack.c.l.b16 %v284
    %v329 = vunpack.c.l.b16 %v285
    %v330 = vunpack.c.l.b16 %v286
    %v331 = vunpack.c.l.b16 %v287
    %v332 = vunpack.c.l.b16 %v288
    %v333 = vpack.c.b16 %v318, %v317
    %v334 = vpack.c.b16 %v320, %v319
    %v335 = vpack.c.b16 %v322, %v321
    %v336 = vpack.c.b16 %v324, %v323
    %v337 = vpack.c.b16 %v326, %v325
    %v338 = vpack.c.b16 %v328, %v327
    %v339 = vpack.c.b16 %v330, %v329
    %v340 = vpack.c.b16 %v332, %v331
    %v349 = vunpack.c.l.b16 %v289
    %v350 = vunpack.c.l.b16 %v290
    %v351 = vunpack.c.l.b16 %v291
    %v352 = vunpack.c.l.b16 %v292
    %v353 = vunpack.c.l.b16 %v293
    %v354 = vunpack.c.l.b16 %v294
    %v355 = vunpack.c.l.b16 %v295
    %v356 = vunpack.c.l.b16 %v296
    %v357 = vpack.c.b16 %v350, %v349
    %v358 = vpack.c.b16 %v352, %v351
    %v359 = vpack.c.b16 %v354, %v353
    %v360 = vpack.c.b16 %v356, %v355
    %v366 = vsel %vm65, %v333, 0
    %v369 = vsel %vm65, %v334, 0
    %v372 = vsel %vm65, %v335, 0
    %v375 = vsel %vm65, %v336, 0
    %v378 = vsel %vm65, %v337, 0
    %v381 = vsel %vm65, %v338, 0
    %v384 = vsel %vm65, %v339, 0
    %v387 = vsel %vm65, %v340, 0
    %389 = vmatpush.bf16.msra.mxu0 0
    %390 = vmatpush.bf16.msra.mxu0 0
    %391 = vmatpush.bf16.msra.mxu0 0
    %392 = vmatpush.bf16.msra.mxu0 0
    %393 = vmatpush.bf16.msra.mxu0 %v360
    %394 = vmatpush.bf16.msra.mxu0 %v359
    %395 = vmatpush.bf16.msra.mxu0 %v358
    %396 = vmatpush.bf16.msra.mxu0 %v357
    %397 = vmatmul.bf16.gmra.mxu0 %v366
    %v398 = vpop.f32.mrf.mxu0
    %v399 = vadd.f32 %v299, %v398
    %v400 = vpop.f32.mrf.mxu0
    %v401 = vadd.f32 %v299, %v400
    %402 = vmatmul.bf16.gmra.mxu0 %v369
    %v403 = vpop.f32.mrf.mxu0
    %v404 = vadd.f32 %v299, %v403
    %v405 = vpop.f32.mrf.mxu0
    %v406 = vadd.f32 %v299, %v405
    %407 = vmatmul.bf16.gmra.mxu0 %v372
    %v408 = vpop.f32.mrf.mxu0
    %v409 = vadd.f32 %v299, %v408
    %v410 = vpop.f32.mrf.mxu0
    %v411 = vadd.f32 %v299, %v410
    %412 = vmatmul.bf16.gmra.mxu0 %v375
    %v413 = vpop.f32.mrf.mxu0
    %v414 = vadd.f32 %v299, %v413
    %v415 = vpop.f32.mrf.mxu0
    %v416 = vadd.f32 %v299, %v415
    %417 = vmatmul.bf16.gmra.mxu0 %v378
    %v418 = vpop.f32.mrf.mxu0
    %v419 = vadd.f32 %v299, %v418
    %v420 = vpop.f32.mrf.mxu0
    %v421 = vadd.f32 %v299, %v420
    %422 = vmatmul.bf16.gmra.mxu0 %v381
    %v423 = vpop.f32.mrf.mxu0
    %v424 = vadd.f32 %v299, %v423
    %v425 = vpop.f32.mrf.mxu0
    %v426 = vadd.f32 %v299, %v425
    %427 = vmatmul.bf16.gmra.mxu0 %v384
    %v428 = vpop.f32.mrf.mxu0
    %v429 = vadd.f32 %v299, %v428
    %v430 = vpop.f32.mrf.mxu0
    %v431 = vadd.f32 %v299, %v430
    %432 = vmatmul.bf16.gmra.mxu0 %v387
    %v433 = vpop.f32.mrf.mxu0
    %v434 = vadd.f32 %v299, %v433
    %v435 = vpop.f32.mrf.mxu0
    %v436 = vadd.f32 %v299, %v435
    %437 = vdwg.mxu0
    %v438 = vmax.f32 %v399, 0.0
    %v439 = vmax.f32 %v401, 0.0
    %v440 = vmax.f32 %v404, 0.0
    %v441 = vmax.f32 %v406, 0.0
    %v442 = vmax.f32 %v409, 0.0
    %v443 = vmax.f32 %v411, 0.0
    %v444 = vmax.f32 %v414, 0.0
    %v445 = vmax.f32 %v416, 0.0
    %v446 = vmax.f32 %v419, 0.0
    %v447 = vmax.f32 %v421, 0.0
    %v448 = vmax.f32 %v424, 0.0
    %v449 = vmax.f32 %v426, 0.0
    %v450 = vmax.f32 %v429, 0.0
    %v451 = vmax.f32 %v431, 0.0
    %v452 = vmax.f32 %v434, 0.0
    %v453 = vmax.f32 %v436, 0.0
    %v454 = vpack.c.bf16 %v439, %v438
    %v455 = vpack.c.bf16 %v441, %v440
    %v456 = vpack.c.bf16 %v443, %v442
    %v457 = vpack.c.bf16 %v445, %v444
    %v458 = vpack.c.bf16 %v447, %v446
    %v459 = vpack.c.bf16 %v449, %v448
    %v460 = vpack.c.bf16 %v451, %v450
    %v461 = vpack.c.bf16 %v453, %v452
    %v462 = vld [vmem:[%s9] sm:$0xf]
    %v463 = vld [vmem:[%s9 + $0x4] sm:$0xf]
    %v464 = vld [vmem:[%s9 + $0x8] sm:$0xf]
    %v465 = vld [vmem:[%s9 + $0xc] sm:$0xf]
    %v466 = vld [vmem:[%s10] sm:$0x1]
    %v468 = vperm.slane %v466, 0
    %v474 = vunpack.c.l.b16 %v462
    %v475 = vunpack.c.l.b16 %v463
    %v476 = vunpack.c.l.b16 %v464
    %v477 = vunpack.c.l.b16 %v465
    %v478 = vpack.c.b16 %v475, %v474
    %v479 = vpack.c.b16 %v477, %v476
    %v483 = vsel %vm200, %v454, 0
    %v486 = vsel %vm200, %v455, 0
    %v489 = vsel %vm200, %v456, 0
    %v492 = vsel %vm200, %v457, 0
    %v495 = vsel %vm200, %v458, 0
    %v498 = vsel %vm200, %v459, 0
    %v501 = vsel %vm200, %v460, 0
    %v504 = vsel %vm200, %v461, 0
    %506 = vmatpush.bf16.msra.mxu0 0
    %507 = vmatpush.bf16.msra.mxu0 0
    %508 = vmatpush.bf16.msra.mxu0 0
    %509 = vmatpush.bf16.msra.mxu0 0
    %510 = vmatpush.bf16.msra.mxu0 0
    %511 = vmatpush.bf16.msra.mxu0 0
    %512 = vmatpush.bf16.msra.mxu0 %v479
    %513 = vmatpush.bf16.msra.mxu0 %v478
    %514 = vmatmul.bf16.gmra.mxu0 %v483
    %v515 = vpop.f32.mrf.mxu0
    %v516 = vadd.f32 %v468, %v515
    %v517 = vpop.f32.mrf.mxu0
    %v518 = vadd.f32 %v468, %v517
    %519 = vmatmul.bf16.gmra.mxu0 %v486
    %v520 = vpop.f32.mrf.mxu0
    %v521 = vadd.f32 %v468, %v520
    %v522 = vpop.f32.mrf.mxu0
    %v523 = vadd.f32 %v468, %v522
    %524 = vmatmul.bf16.gmra.mxu0 %v489
    %v525 = vpop.f32.mrf.mxu0
    %v526 = vadd.f32 %v468, %v525
    %v527 = vpop.f32.mrf.mxu0
    %v528 = vadd.f32 %v468, %v527
    %529 = vmatmul.bf16.gmra.mxu0 %v492
    %v530 = vpop.f32.mrf.mxu0
    %v531 = vadd.f32 %v468, %v530
    %v532 = vpop.f32.mrf.mxu0
    %v533 = vadd.f32 %v468, %v532
    %534 = vmatmul.bf16.gmra.mxu0 %v495
    %v535 = vpop.f32.mrf.mxu0
    %v536 = vadd.f32 %v468, %v535
    %v537 = vpop.f32.mrf.mxu0
    %v538 = vadd.f32 %v468, %v537
    %539 = vmatmul.bf16.gmra.mxu0 %v498
    %v540 = vpop.f32.mrf.mxu0
    %v541 = vadd.f32 %v468, %v540
    %v542 = vpop.f32.mrf.mxu0
    %v543 = vadd.f32 %v468, %v542
    %544 = vmatmul.bf16.gmra.mxu0 %v501
    %v545 = vpop.f32.mrf.mxu0
    %v546 = vadd.f32 %v468, %v545
    %v547 = vpop.f32.mrf.mxu0
    %v548 = vadd.f32 %v468, %v547
    %549 = vmatmul.bf16.gmra.mxu0 %v504
    %v550 = vpop.f32.mrf.mxu0
    %v551 = vadd.f32 %v468, %v550
    %v552 = vpop.f32.mrf.mxu0
    %v553 = vadd.f32 %v468, %v552
    %554 = vdwg.mxu0
    %v555 = vmax.f32 %v516, 0.0
    %v556 = vmax.f32 %v518, 0.0
    %v557 = vmax.f32 %v521, 0.0
    %v558 = vmax.f32 %v523, 0.0
    %v559 = vmax.f32 %v526, 0.0
    %v560 = vmax.f32 %v528, 0.0
    %v561 = vmax.f32 %v531, 0.0
    %v562 = vmax.f32 %v533, 0.0
    %v563 = vmax.f32 %v536, 0.0
    %v564 = vmax.f32 %v538, 0.0
    %v565 = vmax.f32 %v541, 0.0
    %v566 = vmax.f32 %v543, 0.0
    %v567 = vmax.f32 %v546, 0.0
    %v568 = vmax.f32 %v548, 0.0
    %v569 = vmax.f32 %v551, 0.0
    %v570 = vmax.f32 %v553, 0.0
    %v571 = vpack.c.bf16 %v556, %v555
    %v572 = vpack.c.bf16 %v558, %v557
    %v573 = vpack.c.bf16 %v560, %v559
    %v574 = vpack.c.bf16 %v562, %v561
    %v575 = vpack.c.bf16 %v564, %v563
    %v576 = vpack.c.bf16 %v566, %v565
    %v577 = vpack.c.bf16 %v568, %v567
    %v578 = vpack.c.bf16 %v570, %v569
    %v579 = vld [vmem:[%s11] sm:$0xf]
    %v580 = vld [vmem:[%s11 + $0x4] sm:$0xf]
    %v581 = vld [vmem:[%s11 + $0x8] sm:$0xf]
    %v582 = vld [vmem:[%s11 + $0xc] sm:$0xf]
    %v583 = vld [vmem:[%s12] sm:$0x1]
    %v585 = vperm.slane %v583, 0
    %v591 = vunpack.c.l.b16 %v579
    %v592 = vunpack.c.l.b16 %v580
    %v593 = vunpack.c.l.b16 %v581
    %v594 = vunpack.c.l.b16 %v582
    %v595 = vpack.c.b16 %v592, %v591
    %v596 = vpack.c.b16 %v594, %v593
    %v600 = vsel %vm200, %v571, 0
    %v603 = vsel %vm200, %v572, 0
    %v606 = vsel %vm200, %v573, 0
    %v609 = vsel %vm200, %v574, 0
    %v612 = vsel %vm200, %v575, 0
    %v615 = vsel %vm200, %v576, 0
    %v618 = vsel %vm200, %v577, 0
    %v621 = vsel %vm200, %v578, 0
    %623 = vmatpush.bf16.msra.mxu0 0
    %624 = vmatpush.bf16.msra.mxu0 0
    %625 = vmatpush.bf16.msra.mxu0 0
    %626 = vmatpush.bf16.msra.mxu0 0
    %627 = vmatpush.bf16.msra.mxu0 0
    %628 = vmatpush.bf16.msra.mxu0 0
    %629 = vmatpush.bf16.msra.mxu0 %v596
    %630 = vmatpush.bf16.msra.mxu0 %v595
    %631 = vmatmul.bf16.gmra.mxu0 %v600
    %v632 = vpop.f32.mrf.mxu0
    %v633 = vadd.f32 %v585, %v632
    %v634 = vpop.f32.mrf.mxu0
    %v635 = vadd.f32 %v585, %v634
    %636 = vmatmul.bf16.gmra.mxu0 %v603
    %v637 = vpop.f32.mrf.mxu0
    %v638 = vadd.f32 %v585, %v637
    %v639 = vpop.f32.mrf.mxu0
    %v640 = vadd.f32 %v585, %v639
    %641 = vmatmul.bf16.gmra.mxu0 %v606
    %v642 = vpop.f32.mrf.mxu0
    %v643 = vadd.f32 %v585, %v642
    %v644 = vpop.f32.mrf.mxu0
    %v645 = vadd.f32 %v585, %v644
    %646 = vmatmul.bf16.gmra.mxu0 %v609
    %v647 = vpop.f32.mrf.mxu0
    %v648 = vadd.f32 %v585, %v647
    %v649 = vpop.f32.mrf.mxu0
    %v650 = vadd.f32 %v585, %v649
    %651 = vmatmul.bf16.gmra.mxu0 %v612
    %v652 = vpop.f32.mrf.mxu0
    %v653 = vadd.f32 %v585, %v652
    %v654 = vpop.f32.mrf.mxu0
    %v655 = vadd.f32 %v585, %v654
    %656 = vmatmul.bf16.gmra.mxu0 %v615
    %v657 = vpop.f32.mrf.mxu0
    %v658 = vadd.f32 %v585, %v657
    %v659 = vpop.f32.mrf.mxu0
    %v660 = vadd.f32 %v585, %v659
    %661 = vmatmul.bf16.gmra.mxu0 %v618
    %v662 = vpop.f32.mrf.mxu0
    %v663 = vadd.f32 %v585, %v662
    %v664 = vpop.f32.mrf.mxu0
    %v665 = vadd.f32 %v585, %v664
    %666 = vmatmul.bf16.gmra.mxu0 %v621
    %v667 = vpop.f32.mrf.mxu0
    %v668 = vadd.f32 %v585, %v667
    %v669 = vpop.f32.mrf.mxu0
    %v670 = vadd.f32 %v585, %v669
    %671 = vdwg.mxu0
    %v672 = vsel %vm200, %v633, 0.0
    %v673 = vsel %vm200, %v635, 0.0
    %v674 = vadd.f32 %v672, %v673
    %v675 = vsel %vm200, %v638, 0.0
    %v676 = vadd.f32 %v674, %v675
    %v677 = vsel %vm200, %v640, 0.0
    %v678 = vadd.f32 %v676, %v677
    %v679 = vsel %vm200, %v643, 0.0
    %v680 = vadd.f32 %v678, %v679
    %v681 = vsel %vm200, %v645, 0.0
    %v682 = vadd.f32 %v680, %v681
    %v683 = vsel %vm200, %v648, 0.0
    %v684 = vadd.f32 %v682, %v683
    %v685 = vsel %vm200, %v650, 0.0
    %v686 = vadd.f32 %v684, %v685
    %v687 = vrot.slane %v686, 4
    %v688 = vadd.f32 %v686, %v687
    %v689 = vrot.slane %v688, 2
    %v690 = vadd.f32 %v688, %v689
    %v691 = vrot.slane %v690, 1
    %v692 = vadd.f32 %v690, %v691
    %v693 = vsel %vm200, %v653, 0.0
    %v694 = vsel %vm200, %v655, 0.0
    %v695 = vadd.f32 %v693, %v694
    %v696 = vsel %vm200, %v658, 0.0
    %v697 = vadd.f32 %v695, %v696
    %v698 = vsel %vm200, %v660, 0.0
    %v699 = vadd.f32 %v697, %v698
    %v700 = vsel %vm200, %v663, 0.0
    %v701 = vadd.f32 %v699, %v700
    %v702 = vsel %vm200, %v665, 0.0
    %v703 = vadd.f32 %v701, %v702
    %v704 = vsel %vm200, %v668, 0.0
    %v705 = vadd.f32 %v703, %v704
    %v706 = vsel %vm200, %v670, 0.0
    %v707 = vadd.f32 %v705, %v706
    %v708 = vrot.slane %v707, 4
    %v709 = vadd.f32 %v707, %v708
    %v710 = vrot.slane %v709, 2
    %v711 = vadd.f32 %v709, %v710
    %v712 = vrot.slane %v711, 1
    %v713 = vadd.f32 %v711, %v712
    %v714 = vmul.f32 %v692, %v114
    %v715 = vmul.f32 %v713, %v114
    %v716 = vmul.f32 %v714, %v714
    %v717 = vmul.f32 %v715, %v715
    %v720 = vsel %vm135, %v717, %v716
    %v722 = vsel %vm256, %v720, 0.0
    %723 = vadd.xlane.f32.xlu0 %v722
    %v724 = vpop.xlane.xlu0 %723
    %v725 = vmax.f32 %v724, 1e-24
    %v726 = vrsqrt.pop %v725
    %v727 = vmul.f32 %v726, %v725
    %v728 = vmul.f32 %v727, %v726
    %v729 = vmul.f32 0.5, %v728
    %v730 = vsub.f32 1.5, %v729
    %v731 = vmul.f32 %v726, %v730
    %vm732 = vweird.f32 %v725
    %vm733 = vweird.f32 %v726
    %vm734 = vmor %vm732, %vm733
    %v735 = vsel %vm734, %v726, %v731
    %v737 = vrot.slane %v735, 1
    %v740 = vmul.f32 %v714, %v735
    %v741 = vmul.f32 %v715, %v737
    %v744 = vrot.slane %v741, 7
    %v745 = vsel %vm135, %v744, %v740
    %747 = vst.msk [vmem:[#allocation2] sm:$0x3] %vm256, %v745
    %v748 = vmul.f32 %v633, %v633
    %v749 = vmul.f32 %v635, %v635
    %v750 = vmul.f32 %v638, %v638
    %v751 = vmul.f32 %v640, %v640
    %v752 = vmul.f32 %v643, %v643
    %v753 = vmul.f32 %v645, %v645
    %v754 = vmul.f32 %v648, %v648
    %v755 = vmul.f32 %v650, %v650
    %v756 = vmul.f32 %v653, %v653
    %v757 = vmul.f32 %v655, %v655
    %v758 = vmul.f32 %v658, %v658
    %v759 = vmul.f32 %v660, %v660
    %v760 = vmul.f32 %v663, %v663
    %v761 = vmul.f32 %v665, %v665
    %v762 = vmul.f32 %v668, %v668
    %v763 = vmul.f32 %v670, %v670
    %v764 = vsel %vm200, %v748, 0.0
    %765 = vadd.xlane.f32.xlu0 %v764
    %v766 = vpop.xlane.xlu0 %765
    %v767 = vsel %vm200, %v749, 0.0
    %768 = vadd.xlane.f32.xlu0 %v767
    %v769 = vpop.xlane.xlu0 %768
    %v770 = vsel %vm200, %v750, 0.0
    %771 = vadd.xlane.f32.xlu0 %v770
    %v772 = vpop.xlane.xlu0 %771
    %v773 = vsel %vm200, %v751, 0.0
    %774 = vadd.xlane.f32.xlu0 %v773
    %v775 = vpop.xlane.xlu0 %774
    %v776 = vsel %vm200, %v752, 0.0
    %777 = vadd.xlane.f32.xlu0 %v776
    %v778 = vpop.xlane.xlu0 %777
    %v779 = vsel %vm200, %v753, 0.0
    %780 = vadd.xlane.f32.xlu0 %v779
    %v781 = vpop.xlane.xlu0 %780
    %v782 = vsel %vm200, %v754, 0.0
    %783 = vadd.xlane.f32.xlu0 %v782
    %v784 = vpop.xlane.xlu0 %783
    %v785 = vsel %vm200, %v755, 0.0
    %786 = vadd.xlane.f32.xlu0 %v785
    %v787 = vpop.xlane.xlu0 %786
    %v788 = vsel %vm200, %v756, 0.0
    %789 = vadd.xlane.f32.xlu0 %v788
    %v790 = vpop.xlane.xlu0 %789
    %v791 = vsel %vm200, %v757, 0.0
    %792 = vadd.xlane.f32.xlu0 %v791
    %v793 = vpop.xlane.xlu0 %792
    %v794 = vsel %vm200, %v758, 0.0
    %795 = vadd.xlane.f32.xlu0 %v794
    %v796 = vpop.xlane.xlu0 %795
    %v797 = vsel %vm200, %v759, 0.0
    %798 = vadd.xlane.f32.xlu0 %v797
    %v799 = vpop.xlane.xlu0 %798
    %v800 = vsel %vm200, %v760, 0.0
    %801 = vadd.xlane.f32.xlu0 %v800
    %v802 = vpop.xlane.xlu0 %801
    %v803 = vsel %vm200, %v761, 0.0
    %804 = vadd.xlane.f32.xlu0 %v803
    %v805 = vpop.xlane.xlu0 %804
    %v806 = vsel %vm200, %v762, 0.0
    %807 = vadd.xlane.f32.xlu0 %v806
    %v808 = vpop.xlane.xlu0 %807
    %v809 = vsel %vm200, %v763, 0.0
    %810 = vadd.xlane.f32.xlu0 %v809
    %v811 = vpop.xlane.xlu0 %810
    %v812 = vmax.f32 %v766, 1e-24
    %v813 = vmax.f32 %v769, 1e-24
    %v814 = vmax.f32 %v772, 1e-24
    %v815 = vmax.f32 %v775, 1e-24
    %v816 = vmax.f32 %v778, 1e-24
    %v817 = vmax.f32 %v781, 1e-24
    %v818 = vmax.f32 %v784, 1e-24
    %v819 = vmax.f32 %v787, 1e-24
    %v820 = vmax.f32 %v790, 1e-24
    %v821 = vmax.f32 %v793, 1e-24
    %v822 = vmax.f32 %v796, 1e-24
    %v823 = vmax.f32 %v799, 1e-24
    %v824 = vmax.f32 %v802, 1e-24
    %v825 = vmax.f32 %v805, 1e-24
    %v826 = vmax.f32 %v808, 1e-24
    %v827 = vmax.f32 %v811, 1e-24
    %v828 = vrsqrt.pop %v812
    %v829 = vmul.f32 %v828, %v812
    %v830 = vmul.f32 %v829, %v828
    %v831 = vmul.f32 0.5, %v830
    %v832 = vsub.f32 1.5, %v831
    %v833 = vmul.f32 %v828, %v832
    %vm834 = vweird.f32 %v812
    %vm835 = vweird.f32 %v828
    %vm836 = vmor %vm834, %vm835
    %v837 = vsel %vm836, %v828, %v833
    %v838 = vrsqrt.pop %v813
    %v839 = vmul.f32 %v838, %v813
    %v840 = vmul.f32 %v839, %v838
    %v841 = vmul.f32 0.5, %v840
    %v842 = vsub.f32 1.5, %v841
    %v843 = vmul.f32 %v838, %v842
    %vm844 = vweird.f32 %v813
    %vm845 = vweird.f32 %v838
    %vm846 = vmor %vm844, %vm845
    %v847 = vsel %vm846, %v838, %v843
    %v848 = vrsqrt.pop %v814
    %v849 = vmul.f32 %v848, %v814
    %v850 = vmul.f32 %v849, %v848
    %v851 = vmul.f32 0.5, %v850
    %v852 = vsub.f32 1.5, %v851
    %v853 = vmul.f32 %v848, %v852
    %vm854 = vweird.f32 %v814
    %vm855 = vweird.f32 %v848
    %vm856 = vmor %vm854, %vm855
    %v857 = vsel %vm856, %v848, %v853
    %v858 = vrsqrt.pop %v815
    %v859 = vmul.f32 %v858, %v815
    %v860 = vmul.f32 %v859, %v858
    %v861 = vmul.f32 0.5, %v860
    %v862 = vsub.f32 1.5, %v861
    %v863 = vmul.f32 %v858, %v862
    %vm864 = vweird.f32 %v815
    %vm865 = vweird.f32 %v858
    %vm866 = vmor %vm864, %vm865
    %v867 = vsel %vm866, %v858, %v863
    %v868 = vrsqrt.pop %v816
    %v869 = vmul.f32 %v868, %v816
    %v870 = vmul.f32 %v869, %v868
    %v871 = vmul.f32 0.5, %v870
    %v872 = vsub.f32 1.5, %v871
    %v873 = vmul.f32 %v868, %v872
    %vm874 = vweird.f32 %v816
    %vm875 = vweird.f32 %v868
    %vm876 = vmor %vm874, %vm875
    %v877 = vsel %vm876, %v868, %v873
    %v878 = vrsqrt.pop %v817
    %v879 = vmul.f32 %v878, %v817
    %v880 = vmul.f32 %v879, %v878
    %v881 = vmul.f32 0.5, %v880
    %v882 = vsub.f32 1.5, %v881
    %v883 = vmul.f32 %v878, %v882
    %vm884 = vweird.f32 %v817
    %vm885 = vweird.f32 %v878
    %vm886 = vmor %vm884, %vm885
    %v887 = vsel %vm886, %v878, %v883
    %v888 = vrsqrt.pop %v818
    %v889 = vmul.f32 %v888, %v818
    %v890 = vmul.f32 %v889, %v888
    %v891 = vmul.f32 0.5, %v890
    %v892 = vsub.f32 1.5, %v891
    %v893 = vmul.f32 %v888, %v892
    %vm894 = vweird.f32 %v818
    %vm895 = vweird.f32 %v888
    %vm896 = vmor %vm894, %vm895
    %v897 = vsel %vm896, %v888, %v893
    %v898 = vrsqrt.pop %v819
    %v899 = vmul.f32 %v898, %v819
    %v900 = vmul.f32 %v899, %v898
    %v901 = vmul.f32 0.5, %v900
    %v902 = vsub.f32 1.5, %v901
    %v903 = vmul.f32 %v898, %v902
    %vm904 = vweird.f32 %v819
    %vm905 = vweird.f32 %v898
    %vm906 = vmor %vm904, %vm905
    %v907 = vsel %vm906, %v898, %v903
    %v908 = vrsqrt.pop %v820
    %v909 = vmul.f32 %v908, %v820
    %v910 = vmul.f32 %v909, %v908
    %v911 = vmul.f32 0.5, %v910
    %v912 = vsub.f32 1.5, %v911
    %v913 = vmul.f32 %v908, %v912
    %vm914 = vweird.f32 %v820
    %vm915 = vweird.f32 %v908
    %vm916 = vmor %vm914, %vm915
    %v917 = vsel %vm916, %v908, %v913
    %v918 = vrsqrt.pop %v821
    %v919 = vmul.f32 %v918, %v821
    %v920 = vmul.f32 %v919, %v918
    %v921 = vmul.f32 0.5, %v920
    %v922 = vsub.f32 1.5, %v921
    %v923 = vmul.f32 %v918, %v922
    %vm924 = vweird.f32 %v821
    %vm925 = vweird.f32 %v918
    %vm926 = vmor %vm924, %vm925
    %v927 = vsel %vm926, %v918, %v923
    %v928 = vrsqrt.pop %v822
    %v929 = vmul.f32 %v928, %v822
    %v930 = vmul.f32 %v929, %v928
    %v931 = vmul.f32 0.5, %v930
    %v932 = vsub.f32 1.5, %v931
    %v933 = vmul.f32 %v928, %v932
    %vm934 = vweird.f32 %v822
    %vm935 = vweird.f32 %v928
    %vm936 = vmor %vm934, %vm935
    %v937 = vsel %vm936, %v928, %v933
    %v938 = vrsqrt.pop %v823
    %v939 = vmul.f32 %v938, %v823
    %v940 = vmul.f32 %v939, %v938
    %v941 = vmul.f32 0.5, %v940
    %v942 = vsub.f32 1.5, %v941
    %v943 = vmul.f32 %v938, %v942
    %vm944 = vweird.f32 %v823
    %vm945 = vweird.f32 %v938
    %vm946 = vmor %vm944, %vm945
    %v947 = vsel %vm946, %v938, %v943
    %v948 = vrsqrt.pop %v824
    %v949 = vmul.f32 %v948, %v824
    %v950 = vmul.f32 %v949, %v948
    %v951 = vmul.f32 0.5, %v950
    %v952 = vsub.f32 1.5, %v951
    %v953 = vmul.f32 %v948, %v952
    %vm954 = vweird.f32 %v824
    %vm955 = vweird.f32 %v948
    %vm956 = vmor %vm954, %vm955
    %v957 = vsel %vm956, %v948, %v953
    %v958 = vrsqrt.pop %v825
    %v959 = vmul.f32 %v958, %v825
    %v960 = vmul.f32 %v959, %v958
    %v961 = vmul.f32 0.5, %v960
    %v962 = vsub.f32 1.5, %v961
    %v963 = vmul.f32 %v958, %v962
    %vm964 = vweird.f32 %v825
    %vm965 = vweird.f32 %v958
    %vm966 = vmor %vm964, %vm965
    %v967 = vsel %vm966, %v958, %v963
    %v968 = vrsqrt.pop %v826
    %v969 = vmul.f32 %v968, %v826
    %v970 = vmul.f32 %v969, %v968
    %v971 = vmul.f32 0.5, %v970
    %v972 = vsub.f32 1.5, %v971
    %v973 = vmul.f32 %v968, %v972
    %vm974 = vweird.f32 %v826
    %vm975 = vweird.f32 %v968
    %vm976 = vmor %vm974, %vm975
    %v977 = vsel %vm976, %v968, %v973
    %v978 = vrsqrt.pop %v827
    %v979 = vmul.f32 %v978, %v827
    %v980 = vmul.f32 %v979, %v978
    %v981 = vmul.f32 0.5, %v980
    %v982 = vsub.f32 1.5, %v981
    %v983 = vmul.f32 %v978, %v982
    %vm984 = vweird.f32 %v827
    %vm985 = vweird.f32 %v978
    %vm986 = vmor %vm984, %vm985
    %v987 = vsel %vm986, %v978, %v983
    %v988 = vmul.f32 %v633, %v837
    %v989 = vmul.f32 %v635, %v847
    %v990 = vmul.f32 %v638, %v857
    %v991 = vmul.f32 %v640, %v867
    %v992 = vmul.f32 %v643, %v877
    %v993 = vmul.f32 %v645, %v887
    %v994 = vmul.f32 %v648, %v897
    %v995 = vmul.f32 %v650, %v907
    %v996 = vmul.f32 %v653, %v917
    %v997 = vmul.f32 %v655, %v927
    %v998 = vmul.f32 %v658, %v937
    %v999 = vmul.f32 %v660, %v947
    %v1000 = vmul.f32 %v663, %v957
    %v1001 = vmul.f32 %v665, %v967
    %v1002 = vmul.f32 %v668, %v977
    %v1003 = vmul.f32 %v670, %v987
    %v1004 = vpack.c.bf16 %v988, %v988
    %v1005 = vpack.c.bf16 %v989, %v989
    %v1006 = vpack.c.bf16 %v990, %v990
    %v1007 = vpack.c.bf16 %v991, %v991
    %v1008 = vpack.c.bf16 %v992, %v992
    %v1009 = vpack.c.bf16 %v993, %v993
    %v1010 = vpack.c.bf16 %v994, %v994
    %v1011 = vpack.c.bf16 %v995, %v995
    %v1012 = vpack.c.bf16 %v996, %v996
    %v1013 = vpack.c.bf16 %v997, %v997
    %v1014 = vpack.c.bf16 %v998, %v998
    %v1015 = vpack.c.bf16 %v999, %v999
    %v1016 = vpack.c.bf16 %v1000, %v1000
    %v1017 = vpack.c.bf16 %v1001, %v1001
    %v1018 = vpack.c.bf16 %v1002, %v1002
    %v1019 = vpack.c.bf16 %v1003, %v1003
    %vm1020 = vcmask 257024
    %1021 = vst.msk [vmem:[%s14] sm:$0xf] %vm1020, %v1004
    %1022 = vst.msk [vmem:[%s14 + $0x4] sm:$0xf] %vm1020, %v1005
    %1023 = vst.msk [vmem:[%s14 + $0x8] sm:$0xf] %vm1020, %v1006
    %1024 = vst.msk [vmem:[%s14 + $0xc] sm:$0xf] %vm1020, %v1007
    %1025 = vst.msk [vmem:[%s14 + $0x10] sm:$0xf] %vm1020, %v1008
    %1026 = vst.msk [vmem:[%s14 + $0x14] sm:$0xf] %vm1020, %v1009
    %1027 = vst.msk [vmem:[%s14 + $0x18] sm:$0xf] %vm1020, %v1010
    %1028 = vst.msk [vmem:[%s14 + $0x1c] sm:$0xf] %vm1020, %v1011
    %1029 = vst.msk [vmem:[%s14 + $0x20] sm:$0xf] %vm1020, %v1012
    %1030 = vst.msk [vmem:[%s14 + $0x24] sm:$0xf] %vm1020, %v1013
    %1031 = vst.msk [vmem:[%s14 + $0x28] sm:$0xf] %vm1020, %v1014
    %1032 = vst.msk [vmem:[%s14 + $0x2c] sm:$0xf] %vm1020, %v1015
    %1033 = vst.msk [vmem:[%s14 + $0x30] sm:$0xf] %vm1020, %v1016
    %1034 = vst.msk [vmem:[%s14 + $0x34] sm:$0xf] %vm1020, %v1017
    %1035 = vst.msk [vmem:[%s14 + $0x38] sm:$0xf] %vm1020, %v1018
    %1036 = vst.msk [vmem:[%s14 + $0x3c] sm:$0xf] %vm1020, %v1019
    // Predicated region
    $region54: #{moco_forward.5} parent=1 // pred_check
      _
    $region55: #{moco_forward.5} parent=1 // pred_check_branch
      %1038 = sbr.rel (0) target = $region57
    $region56: #{moco_forward.5} parent=1 // pred_region
      _
    $region57: #{moco_forward.5} parent=1 // pred_fallthru
      _
    // Predicated region
    $region58: #{moco_forward.5} parent=1 // pred_check
      _
    $region59: #{moco_forward.5} parent=1 // pred_check_branch
      %1040 = sbr.rel (0) target = $region61
    $region60: #{moco_forward.5} parent=1 // pred_region
      _
    $region61: #{moco_forward.5} parent=1 // pred_fallthru
      _
    // Predicated region
    $region62: #{moco_forward.5} parent=1 // pred_check
      _
    $region63: #{moco_forward.5} parent=1 // pred_check_branch
      %1042 = sbr.rel (0) target = $region65
    $region64: #{moco_forward.5} parent=1 // pred_region
      %1044 = vsyncadd [#allocation3], 0
      %s1046 = sshll.u32 [#allocation2], 4
      %s1047 = int_to_ptr.vmem [resolvable:$true] %s1046
      %s1048 = sshll.u32 %s15, 4
      %s1049 = int_to_ptr.hbm [resolvable:$true] %s1048
      %1051 = dma.vmem_to_hbm [thread:$0]  %s1047, 32, %s1049, [#allocation3]
    $region65: #{moco_forward.5} parent=1 // pred_fallthru
      _
    // Predicated region
    $region66: #{moco_forward.5} parent=1 // pred_check
      _
    $region67: #{moco_forward.5} parent=1 // pred_check_branch
      %1053 = sbr.rel (0) target = $region69
    $region68: #{moco_forward.5} parent=1 // pred_region
      _
    $region69: #{moco_forward.5} parent=1 // pred_fallthru
      _
    // Predicated region
    $region70: #{moco_forward.5} parent=1 // pred_check
      _
    $region71: #{moco_forward.5} parent=1 // pred_check_branch
      %1055 = sbr.rel (0) target = $region73
    $region72: #{moco_forward.5} parent=1 // pred_region
      _
    $region73: #{moco_forward.5} parent=1 // pred_fallthru
      _
    // Predicated region
    $region74: #{moco_forward.5} parent=1 // pred_check
      _
    $region75: #{moco_forward.5} parent=1 // pred_check_branch
      %1057 = sbr.rel (0) target = $region77
    $region76: #{moco_forward.5} parent=1 // pred_region
      %1059 = dma.done [#allocation3], 32
    $region77: #{moco_forward.5} parent=1 // pred_fallthru
      _
    %1060 = vsyncpa [#allocation3], 1

// kernel: moco_forward.8
$region0: #{moco_forward.8}
  #allocation0 [shape = 'u32[]', space=smem, size = 0x4, offset = 0x4, fixed_abs, tag = 'smem constant byte address 0x4 - core index']
  #allocation1 [shape = 'u32[72,128]{1,0:T(1,128)}', space=vmem, size = 0x9000, scoped, tag = 'internal scratch']
  %s0 = inlined_call_operand.vmem [shape: f32[2,64,64], index: 0, kind: input, shape index: {}]
  %s1 = inlined_call_operand.vmem [shape: f32[2,64,64], index: 1, kind: input, shape index: {}]
  %s2 = inlined_call_operand.vmem [shape: bf16[2,64,32], index: 2, kind: input, shape index: {}]
  %s3 = inlined_call_operand.vmem [shape: bf16[2,64,32], index: 3, kind: input, shape index: {}]
  %s4 = inlined_call_operand.vmem [shape: f32[2,64], index: 4, kind: output, shape index: {}]
  %s5 = sld [smem:[#allocation0]]
  $region26: #{moco_forward.8} parent=0
    _
  %s7 = ssub.s32 1, %s5
  %s8 = scalar_select 0, %s7, %s5
  // Predicated region
  $region2: #{moco_forward.8} parent=0 // pred_check
    _
  $region3: #{moco_forward.8} parent=0 // pred_check_branch
    %10 = sbr.rel (0) target = $region5
  $region4: #{moco_forward.8} parent=0 // pred_region
    _
  $region5: #{moco_forward.8} parent=0 // pred_fallthru
    _
  // Predicated region
  $region6: #{moco_forward.8} parent=0 // pred_check
    _
  $region7: #{moco_forward.8} parent=0 // pred_check_branch
    %12 = sbr.rel (0) target = $region9
  $region8: #{moco_forward.8} parent=0 // pred_region
    _
  $region9: #{moco_forward.8} parent=0 // pred_fallthru
    _
  // Predicated region
  $region10: #{moco_forward.8} parent=0 // pred_check
    _
  $region11: #{moco_forward.8} parent=0 // pred_check_branch
    %14 = sbr.rel (0) target = $region13
  $region12: #{moco_forward.8} parent=0 // pred_region
    _
  $region13: #{moco_forward.8} parent=0 // pred_fallthru
    _
  // Predicated region
  $region14: #{moco_forward.8} parent=0 // pred_check
    _
  $region15: #{moco_forward.8} parent=0 // pred_check_branch
    %16 = sbr.rel (0) target = $region17
  $region16: #{moco_forward.8} parent=0 // pred_region
    _
  $region17: #{moco_forward.8} parent=0 // pred_fallthru
    _
  %v18 = vld [vmem:[%s0] sm:$0xff]
  %v19 = vld [vmem:[%s0 + $0x8] sm:$0xff]
  %v20 = vld [vmem:[%s0 + $0x10] sm:$0xff]
  %v21 = vld [vmem:[%s0 + $0x18] sm:$0xff]
  %v22 = vld [vmem:[%s0 + $0x20] sm:$0xff]
  %v23 = vld [vmem:[%s0 + $0x28] sm:$0xff]
  %v24 = vld [vmem:[%s0 + $0x30] sm:$0xff]
  %v25 = vld [vmem:[%s0 + $0x38] sm:$0xff]
  %v26 = vld [vmem:[%s0 + $0x40] sm:$0xff]
  %v27 = vld [vmem:[%s0 + $0x48] sm:$0xff]
  %v28 = vld [vmem:[%s0 + $0x50] sm:$0xff]
  %v29 = vld [vmem:[%s0 + $0x58] sm:$0xff]
  %v30 = vld [vmem:[%s0 + $0x60] sm:$0xff]
  %v31 = vld [vmem:[%s0 + $0x68] sm:$0xff]
  %v32 = vld [vmem:[%s0 + $0x70] sm:$0xff]
  %v33 = vld [vmem:[%s0 + $0x78] sm:$0xff]
  %v34 = vmul.f32 %v18, %v18
  %v35 = vmul.f32 %v19, %v19
  %v36 = vmul.f32 %v20, %v20
  %v37 = vmul.f32 %v21, %v21
  %v38 = vmul.f32 %v22, %v22
  %v39 = vmul.f32 %v23, %v23
  %v40 = vmul.f32 %v24, %v24
  %v41 = vmul.f32 %v25, %v25
  %v42 = vmul.f32 %v26, %v26
  %v43 = vmul.f32 %v27, %v27
  %v44 = vmul.f32 %v28, %v28
  %v45 = vmul.f32 %v29, %v29
  %v46 = vmul.f32 %v30, %v30
  %v47 = vmul.f32 %v31, %v31
  %v48 = vmul.f32 %v32, %v32
  %v49 = vmul.f32 %v33, %v33
  %vm50 = vcmask 523264
  %v51 = vsel %vm50, %v34, 0.0
  %52 = vadd.xlane.f32.xlu0 %v51
  %v53 = vpop.xlane.xlu0 %52
  %v54 = vsel %vm50, %v35, 0.0
  %55 = vadd.xlane.f32.xlu0 %v54
  %v56 = vpop.xlane.xlu0 %55
  %v57 = vsel %vm50, %v36, 0.0
  %58 = vadd.xlane.f32.xlu0 %v57
  %v59 = vpop.xlane.xlu0 %58
  %v60 = vsel %vm50, %v37, 0.0
  %61 = vadd.xlane.f32.xlu0 %v60
  %v62 = vpop.xlane.xlu0 %61
  %v63 = vsel %vm50, %v38, 0.0
  %64 = vadd.xlane.f32.xlu0 %v63
  %v65 = vpop.xlane.xlu0 %64
  %v66 = vsel %vm50, %v39, 0.0
  %67 = vadd.xlane.f32.xlu0 %v66
  %v68 = vpop.xlane.xlu0 %67
  %v69 = vsel %vm50, %v40, 0.0
  %70 = vadd.xlane.f32.xlu0 %v69
  %v71 = vpop.xlane.xlu0 %70
  %v72 = vsel %vm50, %v41, 0.0
  %73 = vadd.xlane.f32.xlu0 %v72
  %v74 = vpop.xlane.xlu0 %73
  %v75 = vsel %vm50, %v42, 0.0
  %76 = vadd.xlane.f32.xlu0 %v75
  %v77 = vpop.xlane.xlu0 %76
  %v78 = vsel %vm50, %v43, 0.0
  %79 = vadd.xlane.f32.xlu0 %v78
  %v80 = vpop.xlane.xlu0 %79
  %v81 = vsel %vm50, %v44, 0.0
  %82 = vadd.xlane.f32.xlu0 %v81
  %v83 = vpop.xlane.xlu0 %82
  %v84 = vsel %vm50, %v45, 0.0
  %85 = vadd.xlane.f32.xlu0 %v84
  %v86 = vpop.xlane.xlu0 %85
  %v87 = vsel %vm50, %v46, 0.0
  %88 = vadd.xlane.f32.xlu0 %v87
  %v89 = vpop.xlane.xlu0 %88
  %v90 = vsel %vm50, %v47, 0.0
  %91 = vadd.xlane.f32.xlu0 %v90
  %v92 = vpop.xlane.xlu0 %91
  %v93 = vsel %vm50, %v48, 0.0
  %94 = vadd.xlane.f32.xlu0 %v93
  %v95 = vpop.xlane.xlu0 %94
  %v96 = vsel %vm50, %v49, 0.0
  %97 = vadd.xlane.f32.xlu0 %v96
  %v98 = vpop.xlane.xlu0 %97
  %v99 = vmax.f32 %v53, 1e-24
  %v100 = vmax.f32 %v56, 1e-24
  %v101 = vmax.f32 %v59, 1e-24
  %v102 = vmax.f32 %v62, 1e-24
  %v103 = vmax.f32 %v65, 1e-24
  %v104 = vmax.f32 %v68, 1e-24
  %v105 = vmax.f32 %v71, 1e-24
  %v106 = vmax.f32 %v74, 1e-24
  %v107 = vmax.f32 %v77, 1e-24
  %v108 = vmax.f32 %v80, 1e-24
  %v109 = vmax.f32 %v83, 1e-24
  %v110 = vmax.f32 %v86, 1e-24
  %v111 = vmax.f32 %v89, 1e-24
  %v112 = vmax.f32 %v92, 1e-24
  %v113 = vmax.f32 %v95, 1e-24
  %v114 = vmax.f32 %v98, 1e-24
  %v115 = vrsqrt.pop %v99
  %v116 = vmul.f32 %v115, %v99
  %v117 = vmul.f32 %v116, %v115
  %v118 = vmul.f32 0.5, %v117
  %v119 = vsub.f32 1.5, %v118
  %v120 = vmul.f32 %v115, %v119
  %vm121 = vweird.f32 %v99
  %vm122 = vweird.f32 %v115
  %vm123 = vmor %vm121, %vm122
  %v124 = vsel %vm123, %v115, %v120
  %v125 = vrsqrt.pop %v100
  %v126 = vmul.f32 %v125, %v100
  %v127 = vmul.f32 %v126, %v125
  %v128 = vmul.f32 0.5, %v127
  %v129 = vsub.f32 1.5, %v128
  %v130 = vmul.f32 %v125, %v129
  %vm131 = vweird.f32 %v100
  %vm132 = vweird.f32 %v125
  %vm133 = vmor %vm131, %vm132
  %v134 = vsel %vm133, %v125, %v130
  %v135 = vrsqrt.pop %v101
  %v136 = vmul.f32 %v135, %v101
  %v137 = vmul.f32 %v136, %v135
  %v138 = vmul.f32 0.5, %v137
  %v139 = vsub.f32 1.5, %v138
  %v140 = vmul.f32 %v135, %v139
  %vm141 = vweird.f32 %v101
  %vm142 = vweird.f32 %v135
  %vm143 = vmor %vm141, %vm142
  %v144 = vsel %vm143, %v135, %v140
  %v145 = vrsqrt.pop %v102
  %v146 = vmul.f32 %v145, %v102
  %v147 = vmul.f32 %v146, %v145
  %v148 = vmul.f32 0.5, %v147
  %v149 = vsub.f32 1.5, %v148
  %v150 = vmul.f32 %v145, %v149
  %vm151 = vweird.f32 %v102
  %vm152 = vweird.f32 %v145
  %vm153 = vmor %vm151, %vm152
  %v154 = vsel %vm153, %v145, %v150
  %v155 = vrsqrt.pop %v103
  %v156 = vmul.f32 %v155, %v103
  %v157 = vmul.f32 %v156, %v155
  %v158 = vmul.f32 0.5, %v157
  %v159 = vsub.f32 1.5, %v158
  %v160 = vmul.f32 %v155, %v159
  %vm161 = vweird.f32 %v103
  %vm162 = vweird.f32 %v155
  %vm163 = vmor %vm161, %vm162
  %v164 = vsel %vm163, %v155, %v160
  %v165 = vrsqrt.pop %v104
  %v166 = vmul.f32 %v165, %v104
  %v167 = vmul.f32 %v166, %v165
  %v168 = vmul.f32 0.5, %v167
  %v169 = vsub.f32 1.5, %v168
  %v170 = vmul.f32 %v165, %v169
  %vm171 = vweird.f32 %v104
  %vm172 = vweird.f32 %v165
  %vm173 = vmor %vm171, %vm172
  %v174 = vsel %vm173, %v165, %v170
  %v175 = vrsqrt.pop %v105
  %v176 = vmul.f32 %v175, %v105
  %v177 = vmul.f32 %v176, %v175
  %v178 = vmul.f32 0.5, %v177
  %v179 = vsub.f32 1.5, %v178
  %v180 = vmul.f32 %v175, %v179
  %vm181 = vweird.f32 %v105
  %vm182 = vweird.f32 %v175
  %vm183 = vmor %vm181, %vm182
  %v184 = vsel %vm183, %v175, %v180
  %v185 = vrsqrt.pop %v106
  %v186 = vmul.f32 %v185, %v106
  %v187 = vmul.f32 %v186, %v185
  %v188 = vmul.f32 0.5, %v187
  %v189 = vsub.f32 1.5, %v188
  %v190 = vmul.f32 %v185, %v189
  %vm191 = vweird.f32 %v106
  %vm192 = vweird.f32 %v185
  %vm193 = vmor %vm191, %vm192
  %v194 = vsel %vm193, %v185, %v190
  %v195 = vrsqrt.pop %v107
  %v196 = vmul.f32 %v195, %v107
  %v197 = vmul.f32 %v196, %v195
  %v198 = vmul.f32 0.5, %v197
  %v199 = vsub.f32 1.5, %v198
  %v200 = vmul.f32 %v195, %v199
  %vm201 = vweird.f32 %v107
  %vm202 = vweird.f32 %v195
  %vm203 = vmor %vm201, %vm202
  %v204 = vsel %vm203, %v195, %v200
  %v205 = vrsqrt.pop %v108
  %v206 = vmul.f32 %v205, %v108
  %v207 = vmul.f32 %v206, %v205
  %v208 = vmul.f32 0.5, %v207
  %v209 = vsub.f32 1.5, %v208
  %v210 = vmul.f32 %v205, %v209
  %vm211 = vweird.f32 %v108
  %vm212 = vweird.f32 %v205
  %vm213 = vmor %vm211, %vm212
  %v214 = vsel %vm213, %v205, %v210
  %v215 = vrsqrt.pop %v109
  %v216 = vmul.f32 %v215, %v109
  %v217 = vmul.f32 %v216, %v215
  %v218 = vmul.f32 0.5, %v217
  %v219 = vsub.f32 1.5, %v218
  %v220 = vmul.f32 %v215, %v219
  %vm221 = vweird.f32 %v109
  %vm222 = vweird.f32 %v215
  %vm223 = vmor %vm221, %vm222
  %v224 = vsel %vm223, %v215, %v220
  %v225 = vrsqrt.pop %v110
  %v226 = vmul.f32 %v225, %v110
  %v227 = vmul.f32 %v226, %v225
  %v228 = vmul.f32 0.5, %v227
  %v229 = vsub.f32 1.5, %v228
  %v230 = vmul.f32 %v225, %v229
  %vm231 = vweird.f32 %v110
  %vm232 = vweird.f32 %v225
  %vm233 = vmor %vm231, %vm232
  %v234 = vsel %vm233, %v225, %v230
  %v235 = vrsqrt.pop %v111
  %v236 = vmul.f32 %v235, %v111
  %v237 = vmul.f32 %v236, %v235
  %v238 = vmul.f32 0.5, %v237
  %v239 = vsub.f32 1.5, %v238
  %v240 = vmul.f32 %v235, %v239
  %vm241 = vweird.f32 %v111
  %vm242 = vweird.f32 %v235
  %vm243 = vmor %vm241, %vm242
  %v244 = vsel %vm243, %v235, %v240
  %v245 = vrsqrt.pop %v112
  %v246 = vmul.f32 %v245, %v112
  %v247 = vmul.f32 %v246, %v245
  %v248 = vmul.f32 0.5, %v247
  %v249 = vsub.f32 1.5, %v248
  %v250 = vmul.f32 %v245, %v249
  %vm251 = vweird.f32 %v112
  %vm252 = vweird.f32 %v245
  %vm253 = vmor %vm251, %vm252
  %v254 = vsel %vm253, %v245, %v250
  %v255 = vrsqrt.pop %v113
  %v256 = vmul.f32 %v255, %v113
  %v257 = vmul.f32 %v256, %v255
  %v258 = vmul.f32 0.5, %v257
  %v259 = vsub.f32 1.5, %v258
  %v260 = vmul.f32 %v255, %v259
  %vm261 = vweird.f32 %v113
  %vm262 = vweird.f32 %v255
  %vm263 = vmor %vm261, %vm262
  %v264 = vsel %vm263, %v255, %v260
  %v265 = vrsqrt.pop %v114
  %v266 = vmul.f32 %v265, %v114
  %v267 = vmul.f32 %v266, %v265
  %v268 = vmul.f32 0.5, %v267
  %v269 = vsub.f32 1.5, %v268
  %v270 = vmul.f32 %v265, %v269
  %vm271 = vweird.f32 %v114
  %vm272 = vweird.f32 %v265
  %vm273 = vmor %vm271, %vm272
  %v274 = vsel %vm273, %v265, %v270
  %v275 = vmul.f32 %v18, %v124
  %v276 = vmul.f32 %v19, %v134
  %v277 = vmul.f32 %v20, %v144
  %v278 = vmul.f32 %v21, %v154
  %v279 = vmul.f32 %v22, %v164
  %v280 = vmul.f32 %v23, %v174
  %v281 = vmul.f32 %v24, %v184
  %v282 = vmul.f32 %v25, %v194
  %v283 = vmul.f32 %v26, %v204
  %v284 = vmul.f32 %v27, %v214
  %v285 = vmul.f32 %v28, %v224
  %v286 = vmul.f32 %v29, %v234
  %v287 = vmul.f32 %v30, %v244
  %v288 = vmul.f32 %v31, %v254
  %v289 = vmul.f32 %v32, %v264
  %v290 = vmul.f32 %v33, %v274
  %v291 = vpack.c.bf16 %v275, %v275
  %v292 = vpack.c.bf16 %v276, %v276
  %v293 = vpack.c.bf16 %v277, %v277
  %v294 = vpack.c.bf16 %v278, %v278
  %v295 = vpack.c.bf16 %v279, %v279
  %v296 = vpack.c.bf16 %v280, %v280
  %v297 = vpack.c.bf16 %v281, %v281
  %v298 = vpack.c.bf16 %v282, %v282
  %v299 = vpack.c.bf16 %v283, %v283
  %v300 = vpack.c.bf16 %v284, %v284
  %v301 = vpack.c.bf16 %v285, %v285
  %v302 = vpack.c.bf16 %v286, %v286
  %v303 = vpack.c.bf16 %v287, %v287
  %v304 = vpack.c.bf16 %v288, %v288
  %v305 = vpack.c.bf16 %v289, %v289
  %v306 = vpack.c.bf16 %v290, %v290
  %v307 = vld [vmem:[%s1] sm:$0xff]
  %v308 = vld [vmem:[%s1 + $0x8] sm:$0xff]
  %v309 = vld [vmem:[%s1 + $0x10] sm:$0xff]
  %v310 = vld [vmem:[%s1 + $0x18] sm:$0xff]
  %v311 = vld [vmem:[%s1 + $0x20] sm:$0xff]
  %v312 = vld [vmem:[%s1 + $0x28] sm:$0xff]
  %v313 = vld [vmem:[%s1 + $0x30] sm:$0xff]
  %v314 = vld [vmem:[%s1 + $0x38] sm:$0xff]
  %v315 = vld [vmem:[%s1 + $0x40] sm:$0xff]
  %v316 = vld [vmem:[%s1 + $0x48] sm:$0xff]
  %v317 = vld [vmem:[%s1 + $0x50] sm:$0xff]
  %v318 = vld [vmem:[%s1 + $0x58] sm:$0xff]
  %v319 = vld [vmem:[%s1 + $0x60] sm:$0xff]
  %v320 = vld [vmem:[%s1 + $0x68] sm:$0xff]
  %v321 = vld [vmem:[%s1 + $0x70] sm:$0xff]
  %v322 = vld [vmem:[%s1 + $0x78] sm:$0xff]
  %v323 = vmul.f32 %v307, %v307
  %v324 = vmul.f32 %v308, %v308
  %v325 = vmul.f32 %v309, %v309
  %v326 = vmul.f32 %v310, %v310
  %v327 = vmul.f32 %v311, %v311
  %v328 = vmul.f32 %v312, %v312
  %v329 = vmul.f32 %v313, %v313
  %v330 = vmul.f32 %v314, %v314
  %v331 = vmul.f32 %v315, %v315
  %v332 = vmul.f32 %v316, %v316
  %v333 = vmul.f32 %v317, %v317
  %v334 = vmul.f32 %v318, %v318
  %v335 = vmul.f32 %v319, %v319
  %v336 = vmul.f32 %v320, %v320
  %v337 = vmul.f32 %v321, %v321
  %v338 = vmul.f32 %v322, %v322
  %v339 = vsel %vm50, %v323, 0.0
  %340 = vadd.xlane.f32.xlu0 %v339
  %v341 = vpop.xlane.xlu0 %340
  %v342 = vsel %vm50, %v324, 0.0
  %343 = vadd.xlane.f32.xlu0 %v342
  %v344 = vpop.xlane.xlu0 %343
  %v345 = vsel %vm50, %v325, 0.0
  %346 = vadd.xlane.f32.xlu0 %v345
  %v347 = vpop.xlane.xlu0 %346
  %v348 = vsel %vm50, %v326, 0.0
  %349 = vadd.xlane.f32.xlu0 %v348
  %v350 = vpop.xlane.xlu0 %349
  %v351 = vsel %vm50, %v327, 0.0
  %352 = vadd.xlane.f32.xlu0 %v351
  %v353 = vpop.xlane.xlu0 %352
  %v354 = vsel %vm50, %v328, 0.0
  %355 = vadd.xlane.f32.xlu0 %v354
  %v356 = vpop.xlane.xlu0 %355
  %v357 = vsel %vm50, %v329, 0.0
  %358 = vadd.xlane.f32.xlu0 %v357
  %v359 = vpop.xlane.xlu0 %358
  %v360 = vsel %vm50, %v330, 0.0
  %361 = vadd.xlane.f32.xlu0 %v360
  %v362 = vpop.xlane.xlu0 %361
  %v363 = vsel %vm50, %v331, 0.0
  %364 = vadd.xlane.f32.xlu0 %v363
  %v365 = vpop.xlane.xlu0 %364
  %v366 = vsel %vm50, %v332, 0.0
  %367 = vadd.xlane.f32.xlu0 %v366
  %v368 = vpop.xlane.xlu0 %367
  %v369 = vsel %vm50, %v333, 0.0
  %370 = vadd.xlane.f32.xlu0 %v369
  %v371 = vpop.xlane.xlu0 %370
  %v372 = vsel %vm50, %v334, 0.0
  %373 = vadd.xlane.f32.xlu0 %v372
  %v374 = vpop.xlane.xlu0 %373
  %v375 = vsel %vm50, %v335, 0.0
  %376 = vadd.xlane.f32.xlu0 %v375
  %v377 = vpop.xlane.xlu0 %376
  %v378 = vsel %vm50, %v336, 0.0
  %379 = vadd.xlane.f32.xlu0 %v378
  %v380 = vpop.xlane.xlu0 %379
  %v381 = vsel %vm50, %v337, 0.0
  %382 = vadd.xlane.f32.xlu0 %v381
  %v383 = vpop.xlane.xlu0 %382
  %v384 = vsel %vm50, %v338, 0.0
  %385 = vadd.xlane.f32.xlu0 %v384
  %v386 = vpop.xlane.xlu0 %385
  %v387 = vmax.f32 %v341, 1e-24
  %v388 = vmax.f32 %v344, 1e-24
  %v389 = vmax.f32 %v347, 1e-24
  %v390 = vmax.f32 %v350, 1e-24
  %v391 = vmax.f32 %v353, 1e-24
  %v392 = vmax.f32 %v356, 1e-24
  %v393 = vmax.f32 %v359, 1e-24
  %v394 = vmax.f32 %v362, 1e-24
  %v395 = vmax.f32 %v365, 1e-24
  %v396 = vmax.f32 %v368, 1e-24
  %v397 = vmax.f32 %v371, 1e-24
  %v398 = vmax.f32 %v374, 1e-24
  %v399 = vmax.f32 %v377, 1e-24
  %v400 = vmax.f32 %v380, 1e-24
  %v401 = vmax.f32 %v383, 1e-24
  %v402 = vmax.f32 %v386, 1e-24
  %v403 = vrsqrt.pop %v387
  %v404 = vmul.f32 %v403, %v387
  %v405 = vmul.f32 %v404, %v403
  %v406 = vmul.f32 0.5, %v405
  %v407 = vsub.f32 1.5, %v406
  %v408 = vmul.f32 %v403, %v407
  %vm409 = vweird.f32 %v387
  %vm410 = vweird.f32 %v403
  %vm411 = vmor %vm409, %vm410
  %v412 = vsel %vm411, %v403, %v408
  %v413 = vrsqrt.pop %v388
  %v414 = vmul.f32 %v413, %v388
  %v415 = vmul.f32 %v414, %v413
  %v416 = vmul.f32 0.5, %v415
  %v417 = vsub.f32 1.5, %v416
  %v418 = vmul.f32 %v413, %v417
  %vm419 = vweird.f32 %v388
  %vm420 = vweird.f32 %v413
  %vm421 = vmor %vm419, %vm420
  %v422 = vsel %vm421, %v413, %v418
  %v423 = vrsqrt.pop %v389
  %v424 = vmul.f32 %v423, %v389
  %v425 = vmul.f32 %v424, %v423
  %v426 = vmul.f32 0.5, %v425
  %v427 = vsub.f32 1.5, %v426
  %v428 = vmul.f32 %v423, %v427
  %vm429 = vweird.f32 %v389
  %vm430 = vweird.f32 %v423
  %vm431 = vmor %vm429, %vm430
  %v432 = vsel %vm431, %v423, %v428
  %v433 = vrsqrt.pop %v390
  %v434 = vmul.f32 %v433, %v390
  %v435 = vmul.f32 %v434, %v433
  %v436 = vmul.f32 0.5, %v435
  %v437 = vsub.f32 1.5, %v436
  %v438 = vmul.f32 %v433, %v437
  %vm439 = vweird.f32 %v390
  %vm440 = vweird.f32 %v433
  %vm441 = vmor %vm439, %vm440
  %v442 = vsel %vm441, %v433, %v438
  %v443 = vrsqrt.pop %v391
  %v444 = vmul.f32 %v443, %v391
  %v445 = vmul.f32 %v444, %v443
  %v446 = vmul.f32 0.5, %v445
  %v447 = vsub.f32 1.5, %v446
  %v448 = vmul.f32 %v443, %v447
  %vm449 = vweird.f32 %v391
  %vm450 = vweird.f32 %v443
  %vm451 = vmor %vm449, %vm450
  %v452 = vsel %vm451, %v443, %v448
  %v453 = vrsqrt.pop %v392
  %v454 = vmul.f32 %v453, %v392
  %v455 = vmul.f32 %v454, %v453
  %v456 = vmul.f32 0.5, %v455
  %v457 = vsub.f32 1.5, %v456
  %v458 = vmul.f32 %v453, %v457
  %vm459 = vweird.f32 %v392
  %vm460 = vweird.f32 %v453
  %vm461 = vmor %vm459, %vm460
  %v462 = vsel %vm461, %v453, %v458
  %v463 = vrsqrt.pop %v393
  %v464 = vmul.f32 %v463, %v393
  %v465 = vmul.f32 %v464, %v463
  %v466 = vmul.f32 0.5, %v465
  %v467 = vsub.f32 1.5, %v466
  %v468 = vmul.f32 %v463, %v467
  %vm469 = vweird.f32 %v393
  %vm470 = vweird.f32 %v463
  %vm471 = vmor %vm469, %vm470
  %v472 = vsel %vm471, %v463, %v468
  %v473 = vrsqrt.pop %v394
  %v474 = vmul.f32 %v473, %v394
  %v475 = vmul.f32 %v474, %v473
  %v476 = vmul.f32 0.5, %v475
  %v477 = vsub.f32 1.5, %v476
  %v478 = vmul.f32 %v473, %v477
  %vm479 = vweird.f32 %v394
  %vm480 = vweird.f32 %v473
  %vm481 = vmor %vm479, %vm480
  %v482 = vsel %vm481, %v473, %v478
  %v483 = vrsqrt.pop %v395
  %v484 = vmul.f32 %v483, %v395
  %v485 = vmul.f32 %v484, %v483
  %v486 = vmul.f32 0.5, %v485
  %v487 = vsub.f32 1.5, %v486
  %v488 = vmul.f32 %v483, %v487
  %vm489 = vweird.f32 %v395
  %vm490 = vweird.f32 %v483
  %vm491 = vmor %vm489, %vm490
  %v492 = vsel %vm491, %v483, %v488
  %v493 = vrsqrt.pop %v396
  %v494 = vmul.f32 %v493, %v396
  %v495 = vmul.f32 %v494, %v493
  %v496 = vmul.f32 0.5, %v495
  %v497 = vsub.f32 1.5, %v496
  %v498 = vmul.f32 %v493, %v497
  %vm499 = vweird.f32 %v396
  %vm500 = vweird.f32 %v493
  %vm501 = vmor %vm499, %vm500
  %v502 = vsel %vm501, %v493, %v498
  %v503 = vrsqrt.pop %v397
  %v504 = vmul.f32 %v503, %v397
  %v505 = vmul.f32 %v504, %v503
  %v506 = vmul.f32 0.5, %v505
  %v507 = vsub.f32 1.5, %v506
  %v508 = vmul.f32 %v503, %v507
  %vm509 = vweird.f32 %v397
  %vm510 = vweird.f32 %v503
  %vm511 = vmor %vm509, %vm510
  %v512 = vsel %vm511, %v503, %v508
  %v513 = vrsqrt.pop %v398
  %v514 = vmul.f32 %v513, %v398
  %v515 = vmul.f32 %v514, %v513
  %v516 = vmul.f32 0.5, %v515
  %v517 = vsub.f32 1.5, %v516
  %v518 = vmul.f32 %v513, %v517
  %vm519 = vweird.f32 %v398
  %vm520 = vweird.f32 %v513
  %vm521 = vmor %vm519, %vm520
  %v522 = vsel %vm521, %v513, %v518
  %v523 = vrsqrt.pop %v399
  %v524 = vmul.f32 %v523, %v399
  %v525 = vmul.f32 %v524, %v523
  %v526 = vmul.f32 0.5, %v525
  %v527 = vsub.f32 1.5, %v526
  %v528 = vmul.f32 %v523, %v527
  %vm529 = vweird.f32 %v399
  %vm530 = vweird.f32 %v523
  %vm531 = vmor %vm529, %vm530
  %v532 = vsel %vm531, %v523, %v528
  %v533 = vrsqrt.pop %v400
  %v534 = vmul.f32 %v533, %v400
  %v535 = vmul.f32 %v534, %v533
  %v536 = vmul.f32 0.5, %v535
  %v537 = vsub.f32 1.5, %v536
  %v538 = vmul.f32 %v533, %v537
  %vm539 = vweird.f32 %v400
  %vm540 = vweird.f32 %v533
  %vm541 = vmor %vm539, %vm540
  %v542 = vsel %vm541, %v533, %v538
  %v543 = vrsqrt.pop %v401
  %v544 = vmul.f32 %v543, %v401
  %v545 = vmul.f32 %v544, %v543
  %v546 = vmul.f32 0.5, %v545
  %v547 = vsub.f32 1.5, %v546
  %v548 = vmul.f32 %v543, %v547
  %vm549 = vweird.f32 %v401
  %vm550 = vweird.f32 %v543
  %vm551 = vmor %vm549, %vm550
  %v552 = vsel %vm551, %v543, %v548
  %v553 = vrsqrt.pop %v402
  %v554 = vmul.f32 %v553, %v402
  %v555 = vmul.f32 %v554, %v553
  %v556 = vmul.f32 0.5, %v555
  %v557 = vsub.f32 1.5, %v556
  %v558 = vmul.f32 %v553, %v557
  %vm559 = vweird.f32 %v402
  %vm560 = vweird.f32 %v553
  %vm561 = vmor %vm559, %vm560
  %v562 = vsel %vm561, %v553, %v558
  %v563 = vmul.f32 %v307, %v412
  %v564 = vmul.f32 %v308, %v422
  %v565 = vmul.f32 %v309, %v432
  %v566 = vmul.f32 %v310, %v442
  %v567 = vmul.f32 %v311, %v452
  %v568 = vmul.f32 %v312, %v462
  %v569 = vmul.f32 %v313, %v472
  %v570 = vmul.f32 %v314, %v482
  %v571 = vmul.f32 %v315, %v492
  %v572 = vmul.f32 %v316, %v502
  %v573 = vmul.f32 %v317, %v512
  %v574 = vmul.f32 %v318, %v522
  %v575 = vmul.f32 %v319, %v532
  %v576 = vmul.f32 %v320, %v542
  %v577 = vmul.f32 %v321, %v552
  %v578 = vmul.f32 %v322, %v562
  %v579 = vpack.c.bf16 %v563, %v563
  %v580 = vpack.c.bf16 %v564, %v564
  %v581 = vpack.c.bf16 %v565, %v565
  %v582 = vpack.c.bf16 %v566, %v566
  %v583 = vpack.c.bf16 %v567, %v567
  %v584 = vpack.c.bf16 %v568, %v568
  %v585 = vpack.c.bf16 %v569, %v569
  %v586 = vpack.c.bf16 %v570, %v570
  %v587 = vpack.c.bf16 %v571, %v571
  %v588 = vpack.c.bf16 %v572, %v572
  %v589 = vpack.c.bf16 %v573, %v573
  %v590 = vpack.c.bf16 %v574, %v574
  %v591 = vpack.c.bf16 %v575, %v575
  %v592 = vpack.c.bf16 %v576, %v576
  %v593 = vpack.c.bf16 %v577, %v577
  %v594 = vpack.c.bf16 %v578, %v578
  %v603 = vunpack.c.l.b16 %v291
  %v604 = vunpack.c.l.b16 %v292
  %v605 = vunpack.c.l.b16 %v293
  %v606 = vunpack.c.l.b16 %v294
  %v607 = vunpack.c.l.b16 %v295
  %v608 = vunpack.c.l.b16 %v296
  %v609 = vunpack.c.l.b16 %v297
  %v610 = vunpack.c.l.b16 %v298
  %v611 = vpack.c.b16 %v604, %v603
  %v612 = vpack.c.b16 %v606, %v605
  %v613 = vpack.c.b16 %v608, %v607
  %v614 = vpack.c.b16 %v610, %v609
  %v623 = vunpack.c.l.b16 %v579
  %v624 = vunpack.c.l.b16 %v580
  %v625 = vunpack.c.l.b16 %v581
  %v626 = vunpack.c.l.b16 %v582
  %v627 = vunpack.c.l.b16 %v583
  %v628 = vunpack.c.l.b16 %v584
  %v629 = vunpack.c.l.b16 %v585
  %v630 = vunpack.c.l.b16 %v586
  %v631 = vpack.c.b16 %v624, %v623
  %v632 = vpack.c.b16 %v626, %v625
  %v633 = vpack.c.b16 %v628, %v627
  %v634 = vpack.c.b16 %v630, %v629
  %v636 = vsel %vm50, %v611, 0
  %v639 = vsel %vm50, %v612, 0
  %v642 = vsel %vm50, %v613, 0
  %v645 = vsel %vm50, %v614, 0
  %v648 = vsel %vm50, %v631, 0
  %v651 = vsel %vm50, %v632, 0
  %v654 = vsel %vm50, %v633, 0
  %v657 = vsel %vm50, %v634, 0
  %659 = vmatpush.bf16.xpose.msra.mxu0 0
  %660 = vmatpush.bf16.xpose.msra.mxu0 0
  %661 = vmatpush.bf16.xpose.msra.mxu0 0
  %662 = vmatpush.bf16.xpose.msra.mxu0 0
  %663 = vmatpush.bf16.xpose.msra.mxu0 %v657
  %664 = vmatpush.bf16.xpose.msra.mxu0 %v654
  %665 = vmatpush.bf16.xpose.msra.mxu0 %v651
  %666 = vmatpush.bf16.xpose.msra.mxu0 %v648
  %667 = vmatmul.bf16.gmra.mxu0 %v636
  %v668 = vpop.f32.mrf.mxu0
  %v669 = vadd.f32 0.0, %v668
  %v670 = vpop.f32.mrf.mxu0
  %v671 = vadd.f32 0.0, %v670
  %672 = vmatmul.bf16.gmra.mxu0 %v639
  %v673 = vpop.f32.mrf.mxu0
  %v674 = vadd.f32 0.0, %v673
  %v675 = vpop.f32.mrf.mxu0
  %v676 = vadd.f32 0.0, %v675
  %677 = vmatmul.bf16.gmra.mxu0 %v642
  %v678 = vpop.f32.mrf.mxu0
  %v679 = vadd.f32 0.0, %v678
  %v680 = vpop.f32.mrf.mxu0
  %v681 = vadd.f32 0.0, %v680
  %682 = vmatmul.bf16.gmra.mxu0 %v645
  %v683 = vpop.f32.mrf.mxu0
  %v684 = vadd.f32 0.0, %v683
  %v685 = vpop.f32.mrf.mxu0
  %v686 = vadd.f32 0.0, %v685
  %687 = vdwg.mxu0
  %v696 = vunpack.c.l.b16 %v299
  %v697 = vunpack.c.l.b16 %v300
  %v698 = vunpack.c.l.b16 %v301
  %v699 = vunpack.c.l.b16 %v302
  %v700 = vunpack.c.l.b16 %v303
  %v701 = vunpack.c.l.b16 %v304
  %v702 = vunpack.c.l.b16 %v305
  %v703 = vunpack.c.l.b16 %v306
  %v704 = vpack.c.b16 %v697, %v696
  %v705 = vpack.c.b16 %v699, %v698
  %v706 = vpack.c.b16 %v701, %v700
  %v707 = vpack.c.b16 %v703, %v702
  %v716 = vunpack.c.l.b16 %v587
  %v717 = vunpack.c.l.b16 %v588
  %v718 = vunpack.c.l.b16 %v589
  %v719 = vunpack.c.l.b16 %v590
  %v720 = vunpack.c.l.b16 %v591
  %v721 = vunpack.c.l.b16 %v592
  %v722 = vunpack.c.l.b16 %v593
  %v723 = vunpack.c.l.b16 %v594
  %v724 = vpack.c.b16 %v717, %v716
  %v725 = vpack.c.b16 %v719, %v718
  %v726 = vpack.c.b16 %v721, %v720
  %v727 = vpack.c.b16 %v723, %v722
  %v729 = vsel %vm50, %v704, 0
  %v732 = vsel %vm50, %v705, 0
  %v735 = vsel %vm50, %v706, 0
  %v738 = vsel %vm50, %v707, 0
  %v741 = vsel %vm50, %v724, 0
  %v744 = vsel %vm50, %v725, 0
  %v747 = vsel %vm50, %v726, 0
  %v750 = vsel %vm50, %v727, 0
  %752 = vmatpush.bf16.xpose.msra.mxu0 0
  %753 = vmatpush.bf16.xpose.msra.mxu0 0
  %754 = vmatpush.bf16.xpose.msra.mxu0 0
  %755 = vmatpush.bf16.xpose.msra.mxu0 0
  %756 = vmatpush.bf16.xpose.msra.mxu0 %v750
  %757 = vmatpush.bf16.xpose.msra.mxu0 %v747
  %758 = vmatpush.bf16.xpose.msra.mxu0 %v744
  %759 = vmatpush.bf16.xpose.msra.mxu0 %v741
  %760 = vmatmul.bf16.gmra.mxu0 %v729
  %v761 = vpop.f32.mrf.mxu0
  %v762 = vadd.f32 0.0, %v761
  %v763 = vpop.f32.mrf.mxu0
  %v764 = vadd.f32 0.0, %v763
  %765 = vmatmul.bf16.gmra.mxu0 %v732
  %v766 = vpop.f32.mrf.mxu0
  %v767 = vadd.f32 0.0, %v766
  %v768 = vpop.f32.mrf.mxu0
  %v769 = vadd.f32 0.0, %v768
  %770 = vmatmul.bf16.gmra.mxu0 %v735
  %v771 = vpop.f32.mrf.mxu0
  %v772 = vadd.f32 0.0, %v771
  %v773 = vpop.f32.mrf.mxu0
  %v774 = vadd.f32 0.0, %v773
  %775 = vmatmul.bf16.gmra.mxu0 %v738
  %v776 = vpop.f32.mrf.mxu0
  %v777 = vadd.f32 0.0, %v776
  %v778 = vpop.f32.mrf.mxu0
  %v779 = vadd.f32 0.0, %v778
  %780 = vdwg.mxu0
  %v781 = vsel %vm50, %v669, -inf
  %782 = vmax.xlane.f32.xlu0 %v781
  %v783 = vpop.xlane.xlu0 %782
  %v784 = vsel %vm50, %v671, -inf
  %785 = vmax.xlane.f32.xlu0 %v784
  %v786 = vpop.xlane.xlu0 %785
  %v787 = vsel %vm50, %v674, -inf
  %788 = vmax.xlane.f32.xlu0 %v787
  %v789 = vpop.xlane.xlu0 %788
  %v790 = vsel %vm50, %v676, -inf
  %791 = vmax.xlane.f32.xlu0 %v790
  %v792 = vpop.xlane.xlu0 %791
  %v793 = vsel %vm50, %v679, -inf
  %794 = vmax.xlane.f32.xlu0 %v793
  %v795 = vpop.xlane.xlu0 %794
  %v796 = vsel %vm50, %v681, -inf
  %797 = vmax.xlane.f32.xlu0 %v796
  %v798 = vpop.xlane.xlu0 %797
  %v799 = vsel %vm50, %v684, -inf
  %800 = vmax.xlane.f32.xlu0 %v799
  %v801 = vpop.xlane.xlu0 %800
  %v802 = vsel %vm50, %v686, -inf
  %803 = vmax.xlane.f32.xlu0 %v802
  %v804 = vpop.xlane.xlu0 %803
  %v805 = vsel %vm50, %v762, -inf
  %806 = vmax.xlane.f32.xlu0 %v805
  %v807 = vpop.xlane.xlu0 %806
  %v808 = vsel %vm50, %v764, -inf
  %809 = vmax.xlane.f32.xlu0 %v808
  %v810 = vpop.xlane.xlu0 %809
  %v811 = vsel %vm50, %v767, -inf
  %812 = vmax.xlane.f32.xlu0 %v811
  %v813 = vpop.xlane.xlu0 %812
  %v814 = vsel %vm50, %v769, -inf
  %815 = vmax.xlane.f32.xlu0 %v814
  %v816 = vpop.xlane.xlu0 %815
  %v817 = vsel %vm50, %v772, -inf
  %818 = vmax.xlane.f32.xlu0 %v817
  %v819 = vpop.xlane.xlu0 %818
  %v820 = vsel %vm50, %v774, -inf
  %821 = vmax.xlane.f32.xlu0 %v820
  %v822 = vpop.xlane.xlu0 %821
  %v823 = vsel %vm50, %v777, -inf
  %824 = vmax.xlane.f32.xlu0 %v823
  %v825 = vpop.xlane.xlu0 %824
  %v826 = vsel %vm50, %v779, -inf
  %827 = vmax.xlane.f32.xlu0 %v826
  %v828 = vpop.xlane.xlu0 %827
  %v829 = vlaneseq
  %v830 = vand.u32 %v829, 127
  %vm831 = vcmp.ge.f32.partialorder %v669, %v783
  %vm832 = vcmp.ge.f32.partialorder %v671, %v786
  %vm833 = vcmp.ge.f32.partialorder %v674, %v789
  %vm834 = vcmp.ge.f32.partialorder %v676, %v792
  %vm835 = vcmp.ge.f32.partialorder %v679, %v795
  %vm836 = vcmp.ge.f32.partialorder %v681, %v798
  %vm837 = vcmp.ge.f32.partialorder %v684, %v801
  %vm838 = vcmp.ge.f32.partialorder %v686, %v804
  %vm839 = vcmp.ge.f32.partialorder %v762, %v807
  %vm840 = vcmp.ge.f32.partialorder %v764, %v810
  %vm841 = vcmp.ge.f32.partialorder %v767, %v813
  %vm842 = vcmp.ge.f32.partialorder %v769, %v816
  %vm843 = vcmp.ge.f32.partialorder %v772, %v819
  %vm844 = vcmp.ge.f32.partialorder %v774, %v822
  %vm845 = vcmp.ge.f32.partialorder %v777, %v825
  %vm846 = vcmp.ge.f32.partialorder %v779, %v828
  %v847 = vsel %vm831, %v830, 64
  %v848 = vsel %vm832, %v830, 64
  %v849 = vsel %vm833, %v830, 64
  %v850 = vsel %vm834, %v830, 64
  %v851 = vsel %vm835, %v830, 64
  %v852 = vsel %vm836, %v830, 64
  %v853 = vsel %vm837, %v830, 64
  %v854 = vsel %vm838, %v830, 64
  %v855 = vsel %vm839, %v830, 64
  %v856 = vsel %vm840, %v830, 64
  %v857 = vsel %vm841, %v830, 64
  %v858 = vsel %vm842, %v830, 64
  %v859 = vsel %vm843, %v830, 64
  %v860 = vsel %vm844, %v830, 64
  %v861 = vsel %vm845, %v830, 64
  %v862 = vsel %vm846, %v830, 64
  %v863 = vsel %vm50, %v847, 2147483647
  %v864 = vand.u32 %v863, 65535
  %v865 = vshra.s32 %v863, 16
  %v866 = vcvt.s32.f32 %v864
  %v867 = vcvt.s32.f32 %v865
  %868 = vmin.xlane.f32.xlu0 %v867
  %v869 = vpop.xlane.xlu0 %868
  %vm870 = vcmp.eq.f32.partialorder %v867, %v869
  %v871 = vsel %vm870, %v866, inf
  %872 = vmin.xlane.f32.xlu0 %v871
  %v873 = vpop.xlane.xlu0 %872
  %v874 = vcvt.f32.s32 %v873
  %v875 = vcvt.f32.s32 %v869
  %v876 = vshll.u32 %v875, 16
  %v877 = vadd.s32 %v876, %v874
  %v878 = vsel %vm50, %v848, 2147483647
  %v879 = vand.u32 %v878, 65535
  %v880 = vshra.s32 %v878, 16
  %v881 = vcvt.s32.f32 %v879
  %v882 = vcvt.s32.f32 %v880
  %883 = vmin.xlane.f32.xlu0 %v882
  %v884 = vpop.xlane.xlu0 %883
  %vm885 = vcmp.eq.f32.partialorder %v882, %v884
  %v886 = vsel %vm885, %v881, inf
  %887 = vmin.xlane.f32.xlu0 %v886
  %v888 = vpop.xlane.xlu0 %887
  %v889 = vcvt.f32.s32 %v888
  %v890 = vcvt.f32.s32 %v884
  %v891 = vshll.u32 %v890, 16
  %v892 = vadd.s32 %v891, %v889
  %v893 = vsel %vm50, %v849, 2147483647
  %v894 = vand.u32 %v893, 65535
  %v895 = vshra.s32 %v893, 16
  %v896 = vcvt.s32.f32 %v894
  %v897 = vcvt.s32.f32 %v895
  %898 = vmin.xlane.f32.xlu0 %v897
  %v899 = vpop.xlane.xlu0 %898
  %vm900 = vcmp.eq.f32.partialorder %v897, %v899
  %v901 = vsel %vm900, %v896, inf
  %902 = vmin.xlane.f32.xlu0 %v901
  %v903 = vpop.xlane.xlu0 %902
  %v904 = vcvt.f32.s32 %v903
  %v905 = vcvt.f32.s32 %v899
  %v906 = vshll.u32 %v905, 16
  %v907 = vadd.s32 %v906, %v904
  %v908 = vsel %vm50, %v850, 2147483647
  %v909 = vand.u32 %v908, 65535
  %v910 = vshra.s32 %v908, 16
  %v911 = vcvt.s32.f32 %v909
  %v912 = vcvt.s32.f32 %v910
  %913 = vmin.xlane.f32.xlu0 %v912
  %v914 = vpop.xlane.xlu0 %913
  %vm915 = vcmp.eq.f32.partialorder %v912, %v914
  %v916 = vsel %vm915, %v911, inf
  %917 = vmin.xlane.f32.xlu0 %v916
  %v918 = vpop.xlane.xlu0 %917
  %v919 = vcvt.f32.s32 %v918
  %v920 = vcvt.f32.s32 %v914
  %v921 = vshll.u32 %v920, 16
  %v922 = vadd.s32 %v921, %v919
  %v923 = vsel %vm50, %v851, 2147483647
  %v924 = vand.u32 %v923, 65535
  %v925 = vshra.s32 %v923, 16
  %v926 = vcvt.s32.f32 %v924
  %v927 = vcvt.s32.f32 %v925
  %928 = vmin.xlane.f32.xlu0 %v927
  %v929 = vpop.xlane.xlu0 %928
  %vm930 = vcmp.eq.f32.partialorder %v927, %v929
  %v931 = vsel %vm930, %v926, inf
  %932 = vmin.xlane.f32.xlu0 %v931
  %v933 = vpop.xlane.xlu0 %932
  %v934 = vcvt.f32.s32 %v933
  %v935 = vcvt.f32.s32 %v929
  %v936 = vshll.u32 %v935, 16
  %v937 = vadd.s32 %v936, %v934
  %v938 = vsel %vm50, %v852, 2147483647
  %v939 = vand.u32 %v938, 65535
  %v940 = vshra.s32 %v938, 16
  %v941 = vcvt.s32.f32 %v939
  %v942 = vcvt.s32.f32 %v940
  %943 = vmin.xlane.f32.xlu0 %v942
  %v944 = vpop.xlane.xlu0 %943
  %vm945 = vcmp.eq.f32.partialorder %v942, %v944
  %v946 = vsel %vm945, %v941, inf
  %947 = vmin.xlane.f32.xlu0 %v946
  %v948 = vpop.xlane.xlu0 %947
  %v949 = vcvt.f32.s32 %v948
  %v950 = vcvt.f32.s32 %v944
  %v951 = vshll.u32 %v950, 16
  %v952 = vadd.s32 %v951, %v949
  %v953 = vsel %vm50, %v853, 2147483647
  %v954 = vand.u32 %v953, 65535
  %v955 = vshra.s32 %v953, 16
  %v956 = vcvt.s32.f32 %v954
  %v957 = vcvt.s32.f32 %v955
  %958 = vmin.xlane.f32.xlu0 %v957
  %v959 = vpop.xlane.xlu0 %958
  %vm960 = vcmp.eq.f32.partialorder %v957, %v959
  %v961 = vsel %vm960, %v956, inf
  %962 = vmin.xlane.f32.xlu0 %v961
  %v963 = vpop.xlane.xlu0 %962
  %v964 = vcvt.f32.s32 %v963
  %v965 = vcvt.f32.s32 %v959
  %v966 = vshll.u32 %v965, 16
  %v967 = vadd.s32 %v966, %v964
  %v968 = vsel %vm50, %v854, 2147483647
  %v969 = vand.u32 %v968, 65535
  %v970 = vshra.s32 %v968, 16
  %v971 = vcvt.s32.f32 %v969
  %v972 = vcvt.s32.f32 %v970
  %973 = vmin.xlane.f32.xlu0 %v972
  %v974 = vpop.xlane.xlu0 %973
  %vm975 = vcmp.eq.f32.partialorder %v972, %v974
  %v976 = vsel %vm975, %v971, inf
  %977 = vmin.xlane.f32.xlu0 %v976
  %v978 = vpop.xlane.xlu0 %977
  %v979 = vcvt.f32.s32 %v978
  %v980 = vcvt.f32.s32 %v974
  %v981 = vshll.u32 %v980, 16
  %v982 = vadd.s32 %v981, %v979
  %v983 = vsel %vm50, %v855, 2147483647
  %v984 = vand.u32 %v983, 65535
  %v985 = vshra.s32 %v983, 16
  %v986 = vcvt.s32.f32 %v984
  %v987 = vcvt.s32.f32 %v985
  %988 = vmin.xlane.f32.xlu0 %v987
  %v989 = vpop.xlane.xlu0 %988
  %vm990 = vcmp.eq.f32.partialorder %v987, %v989
  %v991 = vsel %vm990, %v986, inf
  %992 = vmin.xlane.f32.xlu0 %v991
  %v993 = vpop.xlane.xlu0 %992
  %v994 = vcvt.f32.s32 %v993
  %v995 = vcvt.f32.s32 %v989
  %v996 = vshll.u32 %v995, 16
  %v997 = vadd.s32 %v996, %v994
  %v998 = vsel %vm50, %v856, 2147483647
  %v999 = vand.u32 %v998, 65535
  %v1000 = vshra.s32 %v998, 16
  %v1001 = vcvt.s32.f32 %v999
  %v1002 = vcvt.s32.f32 %v1000
  %1003 = vmin.xlane.f32.xlu0 %v1002
  %v1004 = vpop.xlane.xlu0 %1003
  %vm1005 = vcmp.eq.f32.partialorder %v1002, %v1004
  %v1006 = vsel %vm1005, %v1001, inf
  %1007 = vmin.xlane.f32.xlu0 %v1006
  %v1008 = vpop.xlane.xlu0 %1007
  %v1009 = vcvt.f32.s32 %v1008
  %v1010 = vcvt.f32.s32 %v1004
  %v1011 = vshll.u32 %v1010, 16
  %v1012 = vadd.s32 %v1011, %v1009
  %v1013 = vsel %vm50, %v857, 2147483647
  %v1014 = vand.u32 %v1013, 65535
  %v1015 = vshra.s32 %v1013, 16
  %v1016 = vcvt.s32.f32 %v1014
  %v1017 = vcvt.s32.f32 %v1015
  %1018 = vmin.xlane.f32.xlu0 %v1017
  %v1019 = vpop.xlane.xlu0 %1018
  %vm1020 = vcmp.eq.f32.partialorder %v1017, %v1019
  %v1021 = vsel %vm1020, %v1016, inf
  %1022 = vmin.xlane.f32.xlu0 %v1021
  %v1023 = vpop.xlane.xlu0 %1022
  %v1024 = vcvt.f32.s32 %v1023
  %v1025 = vcvt.f32.s32 %v1019
  %v1026 = vshll.u32 %v1025, 16
  %v1027 = vadd.s32 %v1026, %v1024
  %v1028 = vsel %vm50, %v858, 2147483647
  %v1029 = vand.u32 %v1028, 65535
  %v1030 = vshra.s32 %v1028, 16
  %v1031 = vcvt.s32.f32 %v1029
  %v1032 = vcvt.s32.f32 %v1030
  %1033 = vmin.xlane.f32.xlu0 %v1032
  %v1034 = vpop.xlane.xlu0 %1033
  %vm1035 = vcmp.eq.f32.partialorder %v1032, %v1034
  %v1036 = vsel %vm1035, %v1031, inf
  %1037 = vmin.xlane.f32.xlu0 %v1036
  %v1038 = vpop.xlane.xlu0 %1037
  %v1039 = vcvt.f32.s32 %v1038
  %v1040 = vcvt.f32.s32 %v1034
  %v1041 = vshll.u32 %v1040, 16
  %v1042 = vadd.s32 %v1041, %v1039
  %v1043 = vsel %vm50, %v859, 2147483647
  %v1044 = vand.u32 %v1043, 65535
  %v1045 = vshra.s32 %v1043, 16
  %v1046 = vcvt.s32.f32 %v1044
  %v1047 = vcvt.s32.f32 %v1045
  %1048 = vmin.xlane.f32.xlu0 %v1047
  %v1049 = vpop.xlane.xlu0 %1048
  %vm1050 = vcmp.eq.f32.partialorder %v1047, %v1049
  %v1051 = vsel %vm1050, %v1046, inf
  %1052 = vmin.xlane.f32.xlu0 %v1051
  %v1053 = vpop.xlane.xlu0 %1052
  %v1054 = vcvt.f32.s32 %v1053
  %v1055 = vcvt.f32.s32 %v1049
  %v1056 = vshll.u32 %v1055, 16
  %v1057 = vadd.s32 %v1056, %v1054
  %v1058 = vsel %vm50, %v860, 2147483647
  %v1059 = vand.u32 %v1058, 65535
  %v1060 = vshra.s32 %v1058, 16
  %v1061 = vcvt.s32.f32 %v1059
  %v1062 = vcvt.s32.f32 %v1060
  %1063 = vmin.xlane.f32.xlu0 %v1062
  %v1064 = vpop.xlane.xlu0 %1063
  %vm1065 = vcmp.eq.f32.partialorder %v1062, %v1064
  %v1066 = vsel %vm1065, %v1061, inf
  %1067 = vmin.xlane.f32.xlu0 %v1066
  %v1068 = vpop.xlane.xlu0 %1067
  %v1069 = vcvt.f32.s32 %v1068
  %v1070 = vcvt.f32.s32 %v1064
  %v1071 = vshll.u32 %v1070, 16
  %v1072 = vadd.s32 %v1071, %v1069
  %v1073 = vsel %vm50, %v861, 2147483647
  %v1074 = vand.u32 %v1073, 65535
  %v1075 = vshra.s32 %v1073, 16
  %v1076 = vcvt.s32.f32 %v1074
  %v1077 = vcvt.s32.f32 %v1075
  %1078 = vmin.xlane.f32.xlu0 %v1077
  %v1079 = vpop.xlane.xlu0 %1078
  %vm1080 = vcmp.eq.f32.partialorder %v1077, %v1079
  %v1081 = vsel %vm1080, %v1076, inf
  %1082 = vmin.xlane.f32.xlu0 %v1081
  %v1083 = vpop.xlane.xlu0 %1082
  %v1084 = vcvt.f32.s32 %v1083
  %v1085 = vcvt.f32.s32 %v1079
  %v1086 = vshll.u32 %v1085, 16
  %v1087 = vadd.s32 %v1086, %v1084
  %v1088 = vsel %vm50, %v862, 2147483647
  %v1089 = vand.u32 %v1088, 65535
  %v1090 = vshra.s32 %v1088, 16
  %v1091 = vcvt.s32.f32 %v1089
  %v1092 = vcvt.s32.f32 %v1090
  %1093 = vmin.xlane.f32.xlu0 %v1092
  %v1094 = vpop.xlane.xlu0 %1093
  %vm1095 = vcmp.eq.f32.partialorder %v1092, %v1094
  %v1096 = vsel %vm1095, %v1091, inf
  %1097 = vmin.xlane.f32.xlu0 %v1096
  %v1098 = vpop.xlane.xlu0 %1097
  %v1099 = vcvt.f32.s32 %v1098
  %v1100 = vcvt.f32.s32 %v1094
  %v1101 = vshll.u32 %v1100, 16
  %v1102 = vadd.s32 %v1101, %v1099
  %vm1103 = vcmp.eq.s32.totalorder %v830, %v877
  %vm1104 = vcmp.eq.s32.totalorder %v830, %v892
  %vm1105 = vcmp.eq.s32.totalorder %v830, %v907
  %vm1106 = vcmp.eq.s32.totalorder %v830, %v922
  %vm1107 = vcmp.eq.s32.totalorder %v830, %v937
  %vm1108 = vcmp.eq.s32.totalorder %v830, %v952
  %vm1109 = vcmp.eq.s32.totalorder %v830, %v967
  %vm1110 = vcmp.eq.s32.totalorder %v830, %v982
  %vm1111 = vcmp.eq.s32.totalorder %v830, %v997
  %vm1112 = vcmp.eq.s32.totalorder %v830, %v1012
  %vm1113 = vcmp.eq.s32.totalorder %v830, %v1027
  %vm1114 = vcmp.eq.s32.totalorder %v830, %v1042
  %vm1115 = vcmp.eq.s32.totalorder %v830, %v1057
  %vm1116 = vcmp.eq.s32.totalorder %v830, %v1072
  %vm1117 = vcmp.eq.s32.totalorder %v830, %v1087
  %vm1118 = vcmp.eq.s32.totalorder %v830, %v1102
  %v1119 = vsel %vm1103, 1, 0
  %v1120 = vsel %vm1104, 1, 0
  %v1121 = vsel %vm1105, 1, 0
  %v1122 = vsel %vm1106, 1, 0
  %v1123 = vsel %vm1107, 1, 0
  %v1124 = vsel %vm1108, 1, 0
  %v1125 = vsel %vm1109, 1, 0
  %v1126 = vsel %vm1110, 1, 0
  %v1127 = vsel %vm1111, 1, 0
  %v1128 = vsel %vm1112, 1, 0
  %v1129 = vsel %vm1113, 1, 0
  %v1130 = vsel %vm1114, 1, 0
  %v1131 = vsel %vm1115, 1, 0
  %v1132 = vsel %vm1116, 1, 0
  %v1133 = vsel %vm1117, 1, 0
  %v1134 = vsel %vm1118, 1, 0
  %v1135 = vcvt.s32.f32 %v1119
  %v1136 = vcvt.s32.f32 %v1120
  %v1137 = vcvt.s32.f32 %v1121
  %v1138 = vcvt.s32.f32 %v1122
  %v1139 = vcvt.s32.f32 %v1123
  %v1140 = vcvt.s32.f32 %v1124
  %v1141 = vcvt.s32.f32 %v1125
  %v1142 = vcvt.s32.f32 %v1126
  %v1143 = vcvt.s32.f32 %v1127
  %v1144 = vcvt.s32.f32 %v1128
  %v1145 = vcvt.s32.f32 %v1129
  %v1146 = vcvt.s32.f32 %v1130
  %v1147 = vcvt.s32.f32 %v1131
  %v1148 = vcvt.s32.f32 %v1132
  %v1149 = vcvt.s32.f32 %v1133
  %v1150 = vcvt.s32.f32 %v1134
  %v1151 = vld [vmem:[%s2] sm:$0xf]
  %v1152 = vld [vmem:[%s2 + $0x4] sm:$0xf]
  %v1153 = vld [vmem:[%s2 + $0x8] sm:$0xf]
  %v1154 = vld [vmem:[%s2 + $0xc] sm:$0xf]
  %v1155 = vld [vmem:[%s2 + $0x10] sm:$0xf]
  %v1156 = vld [vmem:[%s2 + $0x14] sm:$0xf]
  %v1157 = vld [vmem:[%s2 + $0x18] sm:$0xf]
  %v1158 = vld [vmem:[%s2 + $0x1c] sm:$0xf]
  %v1159 = vld [vmem:[%s2 + $0x20] sm:$0xf]
  %v1160 = vld [vmem:[%s2 + $0x24] sm:$0xf]
  %v1161 = vld [vmem:[%s2 + $0x28] sm:$0xf]
  %v1162 = vld [vmem:[%s2 + $0x2c] sm:$0xf]
  %v1163 = vld [vmem:[%s2 + $0x30] sm:$0xf]
  %v1164 = vld [vmem:[%s2 + $0x34] sm:$0xf]
  %v1165 = vld [vmem:[%s2 + $0x38] sm:$0xf]
  %v1166 = vld [vmem:[%s2 + $0x3c] sm:$0xf]
  %v1167 = vld [vmem:[%s3] sm:$0xf]
  %v1168 = vld [vmem:[%s3 + $0x4] sm:$0xf]
  %v1169 = vld [vmem:[%s3 + $0x8] sm:$0xf]
  %v1170 = vld [vmem:[%s3 + $0xc] sm:$0xf]
  %v1171 = vld [vmem:[%s3 + $0x10] sm:$0xf]
  %v1172 = vld [vmem:[%s3 + $0x14] sm:$0xf]
  %v1173 = vld [vmem:[%s3 + $0x18] sm:$0xf]
  %v1174 = vld [vmem:[%s3 + $0x1c] sm:$0xf]
  %v1175 = vld [vmem:[%s3 + $0x20] sm:$0xf]
  %v1176 = vld [vmem:[%s3 + $0x24] sm:$0xf]
  %v1177 = vld [vmem:[%s3 + $0x28] sm:$0xf]
  %v1178 = vld [vmem:[%s3 + $0x2c] sm:$0xf]
  %v1179 = vld [vmem:[%s3 + $0x30] sm:$0xf]
  %v1180 = vld [vmem:[%s3 + $0x34] sm:$0xf]
  %v1181 = vld [vmem:[%s3 + $0x38] sm:$0xf]
  %v1182 = vld [vmem:[%s3 + $0x3c] sm:$0xf]
  %v1191 = vunpack.c.l.b16 %v1151
  %v1192 = vunpack.c.l.b16 %v1152
  %v1193 = vunpack.c.l.b16 %v1153
  %v1194 = vunpack.c.l.b16 %v1154
  %v1195 = vunpack.c.l.b16 %v1155
  %v1196 = vunpack.c.l.b16 %v1156
  %v1197 = vunpack.c.l.b16 %v1157
  %v1198 = vunpack.c.l.b16 %v1158
  %v1199 = vpack.c.b16 %v1192, %v1191
  %v1200 = vpack.c.b16 %v1194, %v1193
  %v1201 = vpack.c.b16 %v1196, %v1195
  %v1202 = vpack.c.b16 %v1198, %v1197
  %v1211 = vunpack.c.l.b16 %v1167
  %v1212 = vunpack.c.l.b16 %v1168
  %v1213 = vunpack.c.l.b16 %v1169
  %v1214 = vunpack.c.l.b16 %v1170
  %v1215 = vunpack.c.l.b16 %v1171
  %v1216 = vunpack.c.l.b16 %v1172
  %v1217 = vunpack.c.l.b16 %v1173
  %v1218 = vunpack.c.l.b16 %v1174
  %v1219 = vpack.c.b16 %v1212, %v1211
  %v1220 = vpack.c.b16 %v1214, %v1213
  %v1221 = vpack.c.b16 %v1216, %v1215
  %v1222 = vpack.c.b16 %v1218, %v1217
  %vm1223 = vcmask 261120
  %v1225 = vsel %vm1223, %v1199, 0
  %v1228 = vsel %vm1223, %v1200, 0
  %v1231 = vsel %vm1223, %v1201, 0
  %v1234 = vsel %vm1223, %v1202, 0
  %v1237 = vsel %vm1223, %v1219, 0
  %v1240 = vsel %vm1223, %v1220, 0
  %v1243 = vsel %vm1223, %v1221, 0
  %v1246 = vsel %vm1223, %v1222, 0
  %1248 = vmatpush.bf16.xpose.msra.mxu0 0
  %1249 = vmatpush.bf16.xpose.msra.mxu0 0
  %1250 = vmatpush.bf16.xpose.msra.mxu0 0
  %1251 = vmatpush.bf16.xpose.msra.mxu0 0
  %1252 = vmatpush.bf16.xpose.msra.mxu0 %v1246
  %1253 = vmatpush.bf16.xpose.msra.mxu0 %v1243
  %1254 = vmatpush.bf16.xpose.msra.mxu0 %v1240
  %1255 = vmatpush.bf16.xpose.msra.mxu0 %v1237
  %1256 = vmatmul.bf16.gmra.mxu0 %v1225
  %v1257 = vpop.f32.mrf.mxu0
  %v1258 = vadd.f32 0.0, %v1257
  %v1259 = vpop.f32.mrf.mxu0
  %v1260 = vadd.f32 0.0, %v1259
  %1261 = vmatmul.bf16.gmra.mxu0 %v1228
  %v1262 = vpop.f32.mrf.mxu0
  %v1263 = vadd.f32 0.0, %v1262
  %v1264 = vpop.f32.mrf.mxu0
  %v1265 = vadd.f32 0.0, %v1264
  %1266 = vmatmul.bf16.gmra.mxu0 %v1231
  %v1267 = vpop.f32.mrf.mxu0
  %v1268 = vadd.f32 0.0, %v1267
  %v1269 = vpop.f32.mrf.mxu0
  %v1270 = vadd.f32 0.0, %v1269
  %1271 = vmatmul.bf16.gmra.mxu0 %v1234
  %v1272 = vpop.f32.mrf.mxu0
  %v1273 = vadd.f32 0.0, %v1272
  %v1274 = vpop.f32.mrf.mxu0
  %v1275 = vadd.f32 0.0, %v1274
  %1276 = vdwg.mxu0
  %v1285 = vunpack.c.l.b16 %v1159
  %v1286 = vunpack.c.l.b16 %v1160
  %v1287 = vunpack.c.l.b16 %v1161
  %v1288 = vunpack.c.l.b16 %v1162
  %v1289 = vunpack.c.l.b16 %v1163
  %v1290 = vunpack.c.l.b16 %v1164
  %v1291 = vunpack.c.l.b16 %v1165
  %v1292 = vunpack.c.l.b16 %v1166
  %v1293 = vpack.c.b16 %v1286, %v1285
  %v1294 = vpack.c.b16 %v1288, %v1287
  %v1295 = vpack.c.b16 %v1290, %v1289
  %v1296 = vpack.c.b16 %v1292, %v1291
  %v1305 = vunpack.c.l.b16 %v1175
  %v1306 = vunpack.c.l.b16 %v1176
  %v1307 = vunpack.c.l.b16 %v1177
  %v1308 = vunpack.c.l.b16 %v1178
  %v1309 = vunpack.c.l.b16 %v1179
  %v1310 = vunpack.c.l.b16 %v1180
  %v1311 = vunpack.c.l.b16 %v1181
  %v1312 = vunpack.c.l.b16 %v1182
  %v1313 = vpack.c.b16 %v1306, %v1305
  %v1314 = vpack.c.b16 %v1308, %v1307
  %v1315 = vpack.c.b16 %v1310, %v1309
  %v1316 = vpack.c.b16 %v1312, %v1311
  %v1318 = vsel %vm1223, %v1293, 0
  %v1321 = vsel %vm1223, %v1294, 0
  %v1324 = vsel %vm1223, %v1295, 0
  %v1327 = vsel %vm1223, %v1296, 0
  %v1330 = vsel %vm1223, %v1313, 0
  %v1333 = vsel %vm1223, %v1314, 0
  %v1336 = vsel %vm1223, %v1315, 0
  %v1339 = vsel %vm1223, %v1316, 0
  %1341 = vmatpush.bf16.xpose.msra.mxu0 0
  %1342 = vmatpush.bf16.xpose.msra.mxu0 0
  %1343 = vmatpush.bf16.xpose.msra.mxu0 0
  %1344 = vmatpush.bf16.xpose.msra.mxu0 0
  %1345 = vmatpush.bf16.xpose.msra.mxu0 %v1339
  %1346 = vmatpush.bf16.xpose.msra.mxu0 %v1336
  %1347 = vmatpush.bf16.xpose.msra.mxu0 %v1333
  %1348 = vmatpush.bf16.xpose.msra.mxu0 %v1330
  %1349 = vmatmul.bf16.gmra.mxu0 %v1318
  %v1350 = vpop.f32.mrf.mxu0
  %v1351 = vadd.f32 0.0, %v1350
  %v1352 = vpop.f32.mrf.mxu0
  %v1353 = vadd.f32 0.0, %v1352
  %1354 = vmatmul.bf16.gmra.mxu0 %v1321
  %v1355 = vpop.f32.mrf.mxu0
  %v1356 = vadd.f32 0.0, %v1355
  %v1357 = vpop.f32.mrf.mxu0
  %v1358 = vadd.f32 0.0, %v1357
  %1359 = vmatmul.bf16.gmra.mxu0 %v1324
  %v1360 = vpop.f32.mrf.mxu0
  %v1361 = vadd.f32 0.0, %v1360
  %v1362 = vpop.f32.mrf.mxu0
  %v1363 = vadd.f32 0.0, %v1362
  %1364 = vmatmul.bf16.gmra.mxu0 %v1327
  %v1365 = vpop.f32.mrf.mxu0
  %v1366 = vadd.f32 0.0, %v1365
  %v1367 = vpop.f32.mrf.mxu0
  %v1368 = vadd.f32 0.0, %v1367
  %1369 = vdwg.mxu0
  %v1370 = vmul.f32 %v1135, %v1258
  %v1371 = vmul.f32 %v1136, %v1260
  %v1372 = vmul.f32 %v1137, %v1263
  %v1373 = vmul.f32 %v1138, %v1265
  %v1374 = vmul.f32 %v1139, %v1268
  %v1375 = vmul.f32 %v1140, %v1270
  %v1376 = vmul.f32 %v1141, %v1273
  %v1377 = vmul.f32 %v1142, %v1275
  %v1378 = vmul.f32 %v1143, %v1351
  %v1379 = vmul.f32 %v1144, %v1353
  %v1380 = vmul.f32 %v1145, %v1356
  %v1381 = vmul.f32 %v1146, %v1358
  %v1382 = vmul.f32 %v1147, %v1361
  %v1383 = vmul.f32 %v1148, %v1363
  %v1384 = vmul.f32 %v1149, %v1366
  %v1385 = vmul.f32 %v1150, %v1368
  %v1386 = vsel %vm50, %v1370, 0.0
  %1387 = vadd.xlane.f32.xlu0 %v1386
  %v1388 = vpop.xlane.xlu0 %1387
  %v1389 = vsel %vm50, %v1371, 0.0
  %1390 = vadd.xlane.f32.xlu0 %v1389
  %v1391 = vpop.xlane.xlu0 %1390
  %v1392 = vsel %vm50, %v1372, 0.0
  %1393 = vadd.xlane.f32.xlu0 %v1392
  %v1394 = vpop.xlane.xlu0 %1393
  %v1395 = vsel %vm50, %v1373, 0.0
  %1396 = vadd.xlane.f32.xlu0 %v1395
  %v1397 = vpop.xlane.xlu0 %1396
  %v1398 = vsel %vm50, %v1374, 0.0
  %1399 = vadd.xlane.f32.xlu0 %v1398
  %v1400 = vpop.xlane.xlu0 %1399
  %v1401 = vsel %vm50, %v1375, 0.0
  %1402 = vadd.xlane.f32.xlu0 %v1401
  %v1403 = vpop.xlane.xlu0 %1402
  %v1404 = vsel %vm50, %v1376, 0.0
  %1405 = vadd.xlane.f32.xlu0 %v1404
  %v1406 = vpop.xlane.xlu0 %1405
  %v1407 = vsel %vm50, %v1377, 0.0
  %1408 = vadd.xlane.f32.xlu0 %v1407
  %v1409 = vpop.xlane.xlu0 %1408
  %v1410 = vsel %vm50, %v1378, 0.0
  %1411 = vadd.xlane.f32.xlu0 %v1410
  %v1412 = vpop.xlane.xlu0 %1411
  %v1413 = vsel %vm50, %v1379, 0.0
  %1414 = vadd.xlane.f32.xlu0 %v1413
  %v1415 = vpop.xlane.xlu0 %1414
  %v1416 = vsel %vm50, %v1380, 0.0
  %1417 = vadd.xlane.f32.xlu0 %v1416
  %v1418 = vpop.xlane.xlu0 %1417
  %v1419 = vsel %vm50, %v1381, 0.0
  %1420 = vadd.xlane.f32.xlu0 %v1419
  %v1421 = vpop.xlane.xlu0 %1420
  %v1422 = vsel %vm50, %v1382, 0.0
  %1423 = vadd.xlane.f32.xlu0 %v1422
  %v1424 = vpop.xlane.xlu0 %1423
  %v1425 = vsel %vm50, %v1383, 0.0
  %1426 = vadd.xlane.f32.xlu0 %v1425
  %v1427 = vpop.xlane.xlu0 %1426
  %v1428 = vsel %vm50, %v1384, 0.0
  %1429 = vadd.xlane.f32.xlu0 %v1428
  %v1430 = vpop.xlane.xlu0 %1429
  %v1431 = vsel %vm50, %v1385, 0.0
  %1432 = vadd.xlane.f32.xlu0 %v1431
  %v1433 = vpop.xlane.xlu0 %1432
  %v1450 = vperm.slane %v1388, %v830
  %v1451 = vadd.s32 %v830, 4294967288
  %v1452 = vperm.slane %v1391, %v1451
  %vm1453 = vcmask 130112
  %v1454 = vsel %vm1453, %v1452, %v1450
  %v1455 = vadd.s32 %v830, 4294967280
  %v1456 = vperm.slane %v1394, %v1455
  %vm1457 = vcmask 195712
  %v1458 = vsel %vm1457, %v1456, %v1454
  %v1459 = vadd.s32 %v830, 4294967272
  %v1460 = vperm.slane %v1397, %v1459
  %vm1461 = vcmask 261312
  %v1462 = vsel %vm1461, %v1460, %v1458
  %v1463 = vadd.s32 %v830, 4294967264
  %v1464 = vperm.slane %v1400, %v1463
  %vm1465 = vcmask 326912
  %v1466 = vsel %vm1465, %v1464, %v1462
  %v1467 = vadd.s32 %v830, 4294967256
  %v1468 = vperm.slane %v1403, %v1467
  %vm1469 = vcmask 392512
  %v1470 = vsel %vm1469, %v1468, %v1466
  %v1471 = vadd.s32 %v830, 4294967248
  %v1472 = vperm.slane %v1406, %v1471
  %vm1473 = vcmask 458112
  %v1474 = vsel %vm1473, %v1472, %v1470
  %v1475 = vadd.s32 %v830, 4294967240
  %v1476 = vperm.slane %v1409, %v1475
  %vm1477 = vcmask 523712
  %v1478 = vsel %vm1477, %v1476, %v1474
  %v1479 = vperm.slane %v1412, %v830
  %v1480 = vperm.slane %v1415, %v1451
  %v1481 = vsel %vm1453, %v1480, %v1479
  %v1482 = vperm.slane %v1418, %v1455
  %v1483 = vsel %vm1457, %v1482, %v1481
  %v1484 = vperm.slane %v1421, %v1459
  %v1485 = vsel %vm1461, %v1484, %v1483
  %v1486 = vperm.slane %v1424, %v1463
  %v1487 = vsel %vm1465, %v1486, %v1485
  %v1488 = vperm.slane %v1427, %v1467
  %v1489 = vsel %vm1469, %v1488, %v1487
  %v1490 = vperm.slane %v1430, %v1471
  %v1491 = vsel %vm1473, %v1490, %v1489
  %v1492 = vperm.slane %v1433, %v1475
  %v1493 = vsel %vm1477, %v1492, %v1491
  %vm1494 = vcmask 1041409
  %v1495 = vsel %vm1494, %v1493, %v1478
  %vm1497 = vcmask 517120
  %1498 = vst.msk [vmem:[%s4] sm:$0x3] %vm1497, %v1495
  // Predicated region
  $region18: #{moco_forward.8} parent=0 // pred_check
    _
  $region19: #{moco_forward.8} parent=0 // pred_check_branch
    %1500 = sbr.rel (0) target = $region21
  $region20: #{moco_forward.8} parent=0 // pred_region
    _
  $region21: #{moco_forward.8} parent=0 // pred_fallthru
    _
  // Predicated region
  $region22: #{moco_forward.8} parent=0 // pred_check
    _
  $region23: #{moco_forward.8} parent=0 // pred_check_branch
    %1502 = sbr.rel (0) target = $region25
  $region24: #{moco_forward.8} parent=0 // pred_region
    _
  $region25: #{moco_forward.8} parent=0 // pred_fallthru
    _

// kernel: moco_forward.6
$region0: #{moco_forward.6}
  #allocation0 [shape = 'u32[]', space=smem, size = 0x4, offset = 0x4, fixed_abs, tag = 'smem constant byte address 0x4 - core index']
  #allocation1 [shape = 'u32[72,128]{1,0:T(1,128)}', space=vmem, size = 0x9000, scoped, tag = 'internal scratch']
  %s0 = inlined_call_operand.vmem [shape: f32[2,64,64], index: 0, kind: input, shape index: {}]
  %s1 = inlined_call_operand.vmem [shape: bf16[64,32], index: 1, kind: input, shape index: {}]
  %s2 = inlined_call_operand.vmem [shape: f32[1,32], index: 2, kind: input, shape index: {}]
  %s3 = inlined_call_operand.vmem [shape: bf16[32,32], index: 3, kind: input, shape index: {}]
  %s4 = inlined_call_operand.vmem [shape: f32[1,32], index: 4, kind: input, shape index: {}]
  %s5 = inlined_call_operand.vmem [shape: bf16[32,32], index: 5, kind: input, shape index: {}]
  %s6 = inlined_call_operand.vmem [shape: f32[1,32], index: 6, kind: input, shape index: {}]
  %s7 = inlined_call_operand.vmem [shape: bf16[64,32], index: 7, kind: input, shape index: {}]
  %s8 = inlined_call_operand.vmem [shape: f32[1,32], index: 8, kind: input, shape index: {}]
  %s9 = inlined_call_operand.vmem [shape: bf16[32,32], index: 9, kind: input, shape index: {}]
  %s10 = inlined_call_operand.vmem [shape: f32[1,32], index: 10, kind: input, shape index: {}]
  %s11 = inlined_call_operand.vmem [shape: bf16[32,32], index: 11, kind: input, shape index: {}]
  %s12 = inlined_call_operand.vmem [shape: f32[1,32], index: 12, kind: input, shape index: {}]
  %s13 = inlined_call_operand.vmem [shape: f32[2,32], index: 13, kind: output, shape index: {0}]
  %s14 = inlined_call_operand.vmem [shape: bf16[2,64,32], index: 14, kind: output, shape index: {1}]
  %s15 = inlined_call_operand.vmem [shape: f32[2,32], index: 15, kind: output, shape index: {2}]
  %16 = xla_tuple %s13, %s14, %s15
  %s17 = sld [smem:[#allocation0]]
  $region78: #{moco_forward.6} parent=0
    _
  %s19 = ssub.s32 1, %s17
  %s20 = scalar_select 0, %s19, %s17
  // Predicated region
  $region2: #{moco_forward.6} parent=0 // pred_check
    _
  $region3: #{moco_forward.6} parent=0 // pred_check_branch
    %22 = sbr.rel (0) target = $region5
  $region4: #{moco_forward.6} parent=0 // pred_region
    _
  $region5: #{moco_forward.6} parent=0 // pred_fallthru
    _
  // Predicated region
  $region6: #{moco_forward.6} parent=0 // pred_check
    _
  $region7: #{moco_forward.6} parent=0 // pred_check_branch
    %24 = sbr.rel (0) target = $region9
  $region8: #{moco_forward.6} parent=0 // pred_region
    _
  $region9: #{moco_forward.6} parent=0 // pred_fallthru
    _
  // Predicated region
  $region10: #{moco_forward.6} parent=0 // pred_check
    _
  $region11: #{moco_forward.6} parent=0 // pred_check_branch
    %26 = sbr.rel (0) target = $region13
  $region12: #{moco_forward.6} parent=0 // pred_region
    _
  $region13: #{moco_forward.6} parent=0 // pred_fallthru
    _
  // Predicated region
  $region14: #{moco_forward.6} parent=0 // pred_check
    _
  $region15: #{moco_forward.6} parent=0 // pred_check_branch
    %28 = sbr.rel (0) target = $region17
  $region16: #{moco_forward.6} parent=0 // pred_region
    _
  $region17: #{moco_forward.6} parent=0 // pred_fallthru
    _
  // Predicated region
  $region18: #{moco_forward.6} parent=0 // pred_check
    _
  $region19: #{moco_forward.6} parent=0 // pred_check_branch
    %30 = sbr.rel (0) target = $region21
  $region20: #{moco_forward.6} parent=0 // pred_region
    _
  $region21: #{moco_forward.6} parent=0 // pred_fallthru
    _
  // Predicated region
  $region22: #{moco_forward.6} parent=0 // pred_check
    _
  $region23: #{moco_forward.6} parent=0 // pred_check_branch
    %32 = sbr.rel (0) target = $region25
  $region24: #{moco_forward.6} parent=0 // pred_region
    _
  $region25: #{moco_forward.6} parent=0 // pred_fallthru
    _
  // Predicated region
  $region26: #{moco_forward.6} parent=0 // pred_check
    _
  $region27: #{moco_forward.6} parent=0 // pred_check_branch
    %34 = sbr.rel (0) target = $region29
  $region28: #{moco_forward.6} parent=0 // pred_region
    _
  $region29: #{moco_forward.6} parent=0 // pred_fallthru
    _
  // Predicated region
  $region30: #{moco_forward.6} parent=0 // pred_check
    _
  $region31: #{moco_forward.6} parent=0 // pred_check_branch
    %36 = sbr.rel (0) target = $region33
  $region32: #{moco_forward.6} parent=0 // pred_region
    _
  $region33: #{moco_forward.6} parent=0 // pred_fallthru
    _
  // Predicated region
  $region34: #{moco_forward.6} parent=0 // pred_check
    _
  $region35: #{moco_forward.6} parent=0 // pred_check_branch
    %38 = sbr.rel (0) target = $region37
  $region36: #{moco_forward.6} parent=0 // pred_region
    _
  $region37: #{moco_forward.6} parent=0 // pred_fallthru
    _
  // Predicated region
  $region38: #{moco_forward.6} parent=0 // pred_check
    _
  $region39: #{moco_forward.6} parent=0 // pred_check_branch
    %40 = sbr.rel (0) target = $region41
  $region40: #{moco_forward.6} parent=0 // pred_region
    _
  $region41: #{moco_forward.6} parent=0 // pred_fallthru
    _
  // Predicated region
  $region42: #{moco_forward.6} parent=0 // pred_check
    _
  $region43: #{moco_forward.6} parent=0 // pred_check_branch
    %42 = sbr.rel (0) target = $region45
  $region44: #{moco_forward.6} parent=0 // pred_region
    _
  $region45: #{moco_forward.6} parent=0 // pred_fallthru
    _
  // Predicated region
  $region46: #{moco_forward.6} parent=0 // pred_check
    _
  $region47: #{moco_forward.6} parent=0 // pred_check_branch
    %44 = sbr.rel (0) target = $region49
  $region48: #{moco_forward.6} parent=0 // pred_region
    _
  $region49: #{moco_forward.6} parent=0 // pred_fallthru
    _
  // Predicated region
  $region50: #{moco_forward.6} parent=0 // pred_check
    _
  $region51: #{moco_forward.6} parent=0 // pred_check_branch
    %46 = sbr.rel (0) target = $region53
  $region52: #{moco_forward.6} parent=0 // pred_region
    _
  $region53: #{moco_forward.6} parent=0 // pred_fallthru
    _
  %v48 = vld [vmem:[%s0] sm:$0xff]
  %v49 = vld [vmem:[%s0 + $0x8] sm:$0xff]
  %v50 = vld [vmem:[%s0 + $0x10] sm:$0xff]
  %v51 = vld [vmem:[%s0 + $0x18] sm:$0xff]
  %v52 = vld [vmem:[%s0 + $0x20] sm:$0xff]
  %v53 = vld [vmem:[%s0 + $0x28] sm:$0xff]
  %v54 = vld [vmem:[%s0 + $0x30] sm:$0xff]
  %v55 = vld [vmem:[%s0 + $0x38] sm:$0xff]
  %v56 = vld [vmem:[%s0 + $0x40] sm:$0xff]
  %v57 = vld [vmem:[%s0 + $0x48] sm:$0xff]
  %v58 = vld [vmem:[%s0 + $0x50] sm:$0xff]
  %v59 = vld [vmem:[%s0 + $0x58] sm:$0xff]
  %v60 = vld [vmem:[%s0 + $0x60] sm:$0xff]
  %v61 = vld [vmem:[%s0 + $0x68] sm:$0xff]
  %v62 = vld [vmem:[%s0 + $0x70] sm:$0xff]
  %v63 = vld [vmem:[%s0 + $0x78] sm:$0xff]
  %vm64 = vcmask 523264
  %v65 = vsel %vm64, %v48, 0.0
  %v66 = vsel %vm64, %v49, 0.0
  %v67 = vadd.f32 %v65, %v66
  %v68 = vsel %vm64, %v50, 0.0
  %v69 = vadd.f32 %v67, %v68
  %v70 = vsel %vm64, %v51, 0.0
  %v71 = vadd.f32 %v69, %v70
  %v72 = vsel %vm64, %v52, 0.0
  %v73 = vadd.f32 %v71, %v72
  %v74 = vsel %vm64, %v53, 0.0
  %v75 = vadd.f32 %v73, %v74
  %v76 = vsel %vm64, %v54, 0.0
  %v77 = vadd.f32 %v75, %v76
  %v78 = vsel %vm64, %v55, 0.0
  %v79 = vadd.f32 %v77, %v78
  %v80 = vrot.slane %v79, 4
  %v81 = vadd.f32 %v79, %v80
  %v82 = vrot.slane %v81, 2
  %v83 = vadd.f32 %v81, %v82
  %v84 = vrot.slane %v83, 1
  %v85 = vadd.f32 %v83, %v84
  %v86 = vsel %vm64, %v56, 0.0
  %v87 = vsel %vm64, %v57, 0.0
  %v88 = vadd.f32 %v86, %v87
  %v89 = vsel %vm64, %v58, 0.0
  %v90 = vadd.f32 %v88, %v89
  %v91 = vsel %vm64, %v59, 0.0
  %v92 = vadd.f32 %v90, %v91
  %v93 = vsel %vm64, %v60, 0.0
  %v94 = vadd.f32 %v92, %v93
  %v95 = vsel %vm64, %v61, 0.0
  %v96 = vadd.f32 %v94, %v95
  %v97 = vsel %vm64, %v62, 0.0
  %v98 = vadd.f32 %v96, %v97
  %v99 = vsel %vm64, %v63, 0.0
  %v100 = vadd.f32 %v98, %v99
  %v101 = vrot.slane %v100, 4
  %v102 = vadd.f32 %v100, %v101
  %v103 = vrot.slane %v102, 2
  %v104 = vadd.f32 %v102, %v103
  %v105 = vrot.slane %v104, 1
  %v106 = vadd.f32 %v104, %v105
  %v107 = vrcp.pop 64.0
  %v108 = vmul.f32 64.0, %v107
  %v109 = vsub.f32 1.0, %v108
  %v110 = vmul.f32 %v107, %v109
  %v111 = vadd.f32 %v107, %v110
  %vm112 = vweird.f32 %v107
  %v113 = vsel %vm112, %v107, %v111
  %v114 = vmul.f32 %v85, %v113
  %v115 = vmul.f32 %v106, %v113
  %v116 = vpack.c.bf16 %v114, %v114
  %v117 = vpack.c.bf16 %v115, %v115
  %v118 = vld [vmem:[%s1] sm:$0xf]
  %v119 = vld [vmem:[%s1 + $0x4] sm:$0xf]
  %v120 = vld [vmem:[%s1 + $0x8] sm:$0xf]
  %v121 = vld [vmem:[%s1 + $0xc] sm:$0xf]
  %v122 = vld [vmem:[%s1 + $0x10] sm:$0xf]
  %v123 = vld [vmem:[%s1 + $0x14] sm:$0xf]
  %v124 = vld [vmem:[%s1 + $0x18] sm:$0xf]
  %v125 = vld [vmem:[%s1 + $0x1c] sm:$0xf]
  %v126 = vld [vmem:[%s2] sm:$0x1]
  %v128 = vperm.slane %v126, 0
  %v132 = vunpack.c.l.b16 %v116
  %v133 = vunpack.c.l.b16 %v117
  %vm134 = vcmask 1041409
  %v135 = vsel %vm134, %v133, %v132
  %v136 = vpack.c.b16 %v135, %v135
  %v145 = vunpack.c.l.b16 %v118
  %v146 = vunpack.c.l.b16 %v119
  %v147 = vunpack.c.l.b16 %v120
  %v148 = vunpack.c.l.b16 %v121
  %v149 = vunpack.c.l.b16 %v122
  %v150 = vunpack.c.l.b16 %v123
  %v151 = vunpack.c.l.b16 %v124
  %v152 = vunpack.c.l.b16 %v125
  %v153 = vpack.c.b16 %v146, %v145
  %v154 = vpack.c.b16 %v148, %v147
  %v155 = vpack.c.b16 %v150, %v149
  %v156 = vpack.c.b16 %v152, %v151
  %v162 = vsel %vm64, %v136, 0
  %164 = vmatpush.bf16.msra.mxu0 0
  %165 = vmatpush.bf16.msra.mxu0 0
  %166 = vmatpush.bf16.msra.mxu0 0
  %167 = vmatpush.bf16.msra.mxu0 0
  %168 = vmatpush.bf16.msra.mxu0 %v156
  %169 = vmatpush.bf16.msra.mxu0 %v155
  %170 = vmatpush.bf16.msra.mxu0 %v154
  %171 = vmatpush.bf16.msra.mxu0 %v153
  %172 = vmatmul.bf16.gmra.mxu0 %v162
  %v173 = vpop.f32.mrf.mxu0
  %v174 = vadd.f32 %v128, %v173
  %v175 = vpop.f32.mrf.mxu0
  %176 = vdwg.mxu0
  %v177 = vmax.f32 %v174, 0.0
  %v178 = vpack.c.bf16 %v177, %v177
  %v179 = vld [vmem:[%s3] sm:$0xf]
  %v180 = vld [vmem:[%s3 + $0x4] sm:$0xf]
  %v181 = vld [vmem:[%s3 + $0x8] sm:$0xf]
  %v182 = vld [vmem:[%s3 + $0xc] sm:$0xf]
  %v183 = vld [vmem:[%s4] sm:$0x1]
  %v185 = vperm.slane %v183, 0
  %v191 = vunpack.c.l.b16 %v179
  %v192 = vunpack.c.l.b16 %v180
  %v193 = vunpack.c.l.b16 %v181
  %v194 = vunpack.c.l.b16 %v182
  %v195 = vpack.c.b16 %v192, %v191
  %v196 = vpack.c.b16 %v194, %v193
  %vm199 = vcmask 261120
  %v201 = vsel %vm199, %v178, 0
  %203 = vmatpush.bf16.msra.mxu0 0
  %204 = vmatpush.bf16.msra.mxu0 0
  %205 = vmatpush.bf16.msra.mxu0 0
  %206 = vmatpush.bf16.msra.mxu0 0
  %207 = vmatpush.bf16.msra.mxu0 0
  %208 = vmatpush.bf16.msra.mxu0 0
  %209 = vmatpush.bf16.msra.mxu0 %v196
  %210 = vmatpush.bf16.msra.mxu0 %v195
  %211 = vmatmul.bf16.gmra.mxu0 %v201
  %v212 = vpop.f32.mrf.mxu0
  %v213 = vadd.f32 %v185, %v212
  %v214 = vpop.f32.mrf.mxu0
  %215 = vdwg.mxu0
  %v216 = vmax.f32 %v213, 0.0
  %v217 = vpack.c.bf16 %v216, %v216
  %v218 = vld [vmem:[%s5] sm:$0xf]
  %v219 = vld [vmem:[%s5 + $0x4] sm:$0xf]
  %v220 = vld [vmem:[%s5 + $0x8] sm:$0xf]
  %v221 = vld [vmem:[%s5 + $0xc] sm:$0xf]
  %v222 = vld [vmem:[%s6] sm:$0x1]
  %v224 = vperm.slane %v222, 0
  %v230 = vunpack.c.l.b16 %v218
  %v231 = vunpack.c.l.b16 %v219
  %v232 = vunpack.c.l.b16 %v220
  %v233 = vunpack.c.l.b16 %v221
  %v234 = vpack.c.b16 %v231, %v230
  %v235 = vpack.c.b16 %v233, %v232
  %v239 = vsel %vm199, %v217, 0
  %241 = vmatpush.bf16.msra.mxu0 0
  %242 = vmatpush.bf16.msra.mxu0 0
  %243 = vmatpush.bf16.msra.mxu0 0
  %244 = vmatpush.bf16.msra.mxu0 0
  %245 = vmatpush.bf16.msra.mxu0 0
  %246 = vmatpush.bf16.msra.mxu0 0
  %247 = vmatpush.bf16.msra.mxu0 %v235
  %248 = vmatpush.bf16.msra.mxu0 %v234
  %249 = vmatmul.bf16.gmra.mxu0 %v239
  %v250 = vpop.f32.mrf.mxu0
  %v251 = vadd.f32 %v224, %v250
  %v252 = vpop.f32.mrf.mxu0
  %253 = vdwg.mxu0
  %v254 = vmul.f32 %v251, %v251
  %vm255 = vcmask 254976
  %v256 = vsel %vm255, %v254, 0.0
  %257 = vadd.xlane.f32.xlu0 %v256
  %v258 = vpop.xlane.xlu0 %257
  %v259 = vmax.f32 %v258, 1e-24
  %v260 = vrsqrt.pop %v259
  %v261 = vmul.f32 %v260, %v259
  %v262 = vmul.f32 %v261, %v260
  %v263 = vmul.f32 0.5, %v262
  %v264 = vsub.f32 1.5, %v263
  %v265 = vmul.f32 %v260, %v264
  %vm266 = vweird.f32 %v259
  %vm267 = vweird.f32 %v260
  %vm268 = vmor %vm266, %vm267
  %v269 = vsel %vm268, %v260, %v265
  %v270 = vmul.f32 %v251, %v269
  %271 = vst.msk [vmem:[%s13] sm:$0x3] %vm255, %v270
  %v272 = vpack.c.bf16 %v48, %v48
  %v273 = vpack.c.bf16 %v49, %v49
  %v274 = vpack.c.bf16 %v50, %v50
  %v275 = vpack.c.bf16 %v51, %v51
  %v276 = vpack.c.bf16 %v52, %v52
  %v277 = vpack.c.bf16 %v53, %v53
  %v278 = vpack.c.bf16 %v54, %v54
  %v279 = vpack.c.bf16 %v55, %v55
  %v280 = vpack.c.bf16 %v56, %v56
  %v281 = vpack.c.bf16 %v57, %v57
  %v282 = vpack.c.bf16 %v58, %v58
  %v283 = vpack.c.bf16 %v59, %v59
  %v284 = vpack.c.bf16 %v60, %v60
  %v285 = vpack.c.bf16 %v61, %v61
  %v286 = vpack.c.bf16 %v62, %v62
  %v287 = vpack.c.bf16 %v63, %v63
  %v288 = vld [vmem:[%s7] sm:$0xf]
  %v289 = vld [vmem:[%s7 + $0x4] sm:$0xf]
  %v290 = vld [vmem:[%s7 + $0x8] sm:$0xf]
  %v291 = vld [vmem:[%s7 + $0xc] sm:$0xf]
  %v292 = vld [vmem:[%s7 + $0x10] sm:$0xf]
  %v293 = vld [vmem:[%s7 + $0x14] sm:$0xf]
  %v294 = vld [vmem:[%s7 + $0x18] sm:$0xf]
  %v295 = vld [vmem:[%s7 + $0x1c] sm:$0xf]
  %v296 = vld [vmem:[%s8] sm:$0x1]
  %v298 = vperm.slane %v296, 0
  %v316 = vunpack.c.l.b16 %v272
  %v317 = vunpack.c.l.b16 %v273
  %v318 = vunpack.c.l.b16 %v274
  %v319 = vunpack.c.l.b16 %v275
  %v320 = vunpack.c.l.b16 %v276
  %v321 = vunpack.c.l.b16 %v277
  %v322 = vunpack.c.l.b16 %v278
  %v323 = vunpack.c.l.b16 %v279
  %v324 = vunpack.c.l.b16 %v280
  %v325 = vunpack.c.l.b16 %v281
  %v326 = vunpack.c.l.b16 %v282
  %v327 = vunpack.c.l.b16 %v283
  %v328 = vunpack.c.l.b16 %v284
  %v329 = vunpack.c.l.b16 %v285
  %v330 = vunpack.c.l.b16 %v286
  %v331 = vunpack.c.l.b16 %v287
  %v332 = vpack.c.b16 %v317, %v316
  %v333 = vpack.c.b16 %v319, %v318
  %v334 = vpack.c.b16 %v321, %v320
  %v335 = vpack.c.b16 %v323, %v322
  %v336 = vpack.c.b16 %v325, %v324
  %v337 = vpack.c.b16 %v327, %v326
  %v338 = vpack.c.b16 %v329, %v328
  %v339 = vpack.c.b16 %v331, %v330
  %v348 = vunpack.c.l.b16 %v288
  %v349 = vunpack.c.l.b16 %v289
  %v350 = vunpack.c.l.b16 %v290
  %v351 = vunpack.c.l.b16 %v291
  %v352 = vunpack.c.l.b16 %v292
  %v353 = vunpack.c.l.b16 %v293
  %v354 = vunpack.c.l.b16 %v294
  %v355 = vunpack.c.l.b16 %v295
  %v356 = vpack.c.b16 %v349, %v348
  %v357 = vpack.c.b16 %v351, %v350
  %v358 = vpack.c.b16 %v353, %v352
  %v359 = vpack.c.b16 %v355, %v354
  %v365 = vsel %vm64, %v332, 0
  %v368 = vsel %vm64, %v333, 0
  %v371 = vsel %vm64, %v334, 0
  %v374 = vsel %vm64, %v335, 0
  %v377 = vsel %vm64, %v336, 0
  %v380 = vsel %vm64, %v337, 0
  %v383 = vsel %vm64, %v338, 0
  %v386 = vsel %vm64, %v339, 0
  %388 = vmatpush.bf16.msra.mxu0 0
  %389 = vmatpush.bf16.msra.mxu0 0
  %390 = vmatpush.bf16.msra.mxu0 0
  %391 = vmatpush.bf16.msra.mxu0 0
  %392 = vmatpush.bf16.msra.mxu0 %v359
  %393 = vmatpush.bf16.msra.mxu0 %v358
  %394 = vmatpush.bf16.msra.mxu0 %v357
  %395 = vmatpush.bf16.msra.mxu0 %v356
  %396 = vmatmul.bf16.gmra.mxu0 %v365
  %v397 = vpop.f32.mrf.mxu0
  %v398 = vadd.f32 %v298, %v397
  %v399 = vpop.f32.mrf.mxu0
  %v400 = vadd.f32 %v298, %v399
  %401 = vmatmul.bf16.gmra.mxu0 %v368
  %v402 = vpop.f32.mrf.mxu0
  %v403 = vadd.f32 %v298, %v402
  %v404 = vpop.f32.mrf.mxu0
  %v405 = vadd.f32 %v298, %v404
  %406 = vmatmul.bf16.gmra.mxu0 %v371
  %v407 = vpop.f32.mrf.mxu0
  %v408 = vadd.f32 %v298, %v407
  %v409 = vpop.f32.mrf.mxu0
  %v410 = vadd.f32 %v298, %v409
  %411 = vmatmul.bf16.gmra.mxu0 %v374
  %v412 = vpop.f32.mrf.mxu0
  %v413 = vadd.f32 %v298, %v412
  %v414 = vpop.f32.mrf.mxu0
  %v415 = vadd.f32 %v298, %v414
  %416 = vmatmul.bf16.gmra.mxu0 %v377
  %v417 = vpop.f32.mrf.mxu0
  %v418 = vadd.f32 %v298, %v417
  %v419 = vpop.f32.mrf.mxu0
  %v420 = vadd.f32 %v298, %v419
  %421 = vmatmul.bf16.gmra.mxu0 %v380
  %v422 = vpop.f32.mrf.mxu0
  %v423 = vadd.f32 %v298, %v422
  %v424 = vpop.f32.mrf.mxu0
  %v425 = vadd.f32 %v298, %v424
  %426 = vmatmul.bf16.gmra.mxu0 %v383
  %v427 = vpop.f32.mrf.mxu0
  %v428 = vadd.f32 %v298, %v427
  %v429 = vpop.f32.mrf.mxu0
  %v430 = vadd.f32 %v298, %v429
  %431 = vmatmul.bf16.gmra.mxu0 %v386
  %v432 = vpop.f32.mrf.mxu0
  %v433 = vadd.f32 %v298, %v432
  %v434 = vpop.f32.mrf.mxu0
  %v435 = vadd.f32 %v298, %v434
  %436 = vdwg.mxu0
  %v437 = vmax.f32 %v398, 0.0
  %v438 = vmax.f32 %v400, 0.0
  %v439 = vmax.f32 %v403, 0.0
  %v440 = vmax.f32 %v405, 0.0
  %v441 = vmax.f32 %v408, 0.0
  %v442 = vmax.f32 %v410, 0.0
  %v443 = vmax.f32 %v413, 0.0
  %v444 = vmax.f32 %v415, 0.0
  %v445 = vmax.f32 %v418, 0.0
  %v446 = vmax.f32 %v420, 0.0
  %v447 = vmax.f32 %v423, 0.0
  %v448 = vmax.f32 %v425, 0.0
  %v449 = vmax.f32 %v428, 0.0
  %v450 = vmax.f32 %v430, 0.0
  %v451 = vmax.f32 %v433, 0.0
  %v452 = vmax.f32 %v435, 0.0
  %v453 = vpack.c.bf16 %v438, %v437
  %v454 = vpack.c.bf16 %v440, %v439
  %v455 = vpack.c.bf16 %v442, %v441
  %v456 = vpack.c.bf16 %v444, %v443
  %v457 = vpack.c.bf16 %v446, %v445
  %v458 = vpack.c.bf16 %v448, %v447
  %v459 = vpack.c.bf16 %v450, %v449
  %v460 = vpack.c.bf16 %v452, %v451
  %v461 = vld [vmem:[%s9] sm:$0xf]
  %v462 = vld [vmem:[%s9 + $0x4] sm:$0xf]
  %v463 = vld [vmem:[%s9 + $0x8] sm:$0xf]
  %v464 = vld [vmem:[%s9 + $0xc] sm:$0xf]
  %v465 = vld [vmem:[%s10] sm:$0x1]
  %v467 = vperm.slane %v465, 0
  %v473 = vunpack.c.l.b16 %v461
  %v474 = vunpack.c.l.b16 %v462
  %v475 = vunpack.c.l.b16 %v463
  %v476 = vunpack.c.l.b16 %v464
  %v477 = vpack.c.b16 %v474, %v473
  %v478 = vpack.c.b16 %v476, %v475
  %v482 = vsel %vm199, %v453, 0
  %v485 = vsel %vm199, %v454, 0
  %v488 = vsel %vm199, %v455, 0
  %v491 = vsel %vm199, %v456, 0
  %v494 = vsel %vm199, %v457, 0
  %v497 = vsel %vm199, %v458, 0
  %v500 = vsel %vm199, %v459, 0
  %v503 = vsel %vm199, %v460, 0
  %505 = vmatpush.bf16.msra.mxu0 0
  %506 = vmatpush.bf16.msra.mxu0 0
  %507 = vmatpush.bf16.msra.mxu0 0
  %508 = vmatpush.bf16.msra.mxu0 0
  %509 = vmatpush.bf16.msra.mxu0 0
  %510 = vmatpush.bf16.msra.mxu0 0
  %511 = vmatpush.bf16.msra.mxu0 %v478
  %512 = vmatpush.bf16.msra.mxu0 %v477
  %513 = vmatmul.bf16.gmra.mxu0 %v482
  %v514 = vpop.f32.mrf.mxu0
  %v515 = vadd.f32 %v467, %v514
  %v516 = vpop.f32.mrf.mxu0
  %v517 = vadd.f32 %v467, %v516
  %518 = vmatmul.bf16.gmra.mxu0 %v485
  %v519 = vpop.f32.mrf.mxu0
  %v520 = vadd.f32 %v467, %v519
  %v521 = vpop.f32.mrf.mxu0
  %v522 = vadd.f32 %v467, %v521
  %523 = vmatmul.bf16.gmra.mxu0 %v488
  %v524 = vpop.f32.mrf.mxu0
  %v525 = vadd.f32 %v467, %v524
  %v526 = vpop.f32.mrf.mxu0
  %v527 = vadd.f32 %v467, %v526
  %528 = vmatmul.bf16.gmra.mxu0 %v491
  %v529 = vpop.f32.mrf.mxu0
  %v530 = vadd.f32 %v467, %v529
  %v531 = vpop.f32.mrf.mxu0
  %v532 = vadd.f32 %v467, %v531
  %533 = vmatmul.bf16.gmra.mxu0 %v494
  %v534 = vpop.f32.mrf.mxu0
  %v535 = vadd.f32 %v467, %v534
  %v536 = vpop.f32.mrf.mxu0
  %v537 = vadd.f32 %v467, %v536
  %538 = vmatmul.bf16.gmra.mxu0 %v497
  %v539 = vpop.f32.mrf.mxu0
  %v540 = vadd.f32 %v467, %v539
  %v541 = vpop.f32.mrf.mxu0
  %v542 = vadd.f32 %v467, %v541
  %543 = vmatmul.bf16.gmra.mxu0 %v500
  %v544 = vpop.f32.mrf.mxu0
  %v545 = vadd.f32 %v467, %v544
  %v546 = vpop.f32.mrf.mxu0
  %v547 = vadd.f32 %v467, %v546
  %548 = vmatmul.bf16.gmra.mxu0 %v503
  %v549 = vpop.f32.mrf.mxu0
  %v550 = vadd.f32 %v467, %v549
  %v551 = vpop.f32.mrf.mxu0
  %v552 = vadd.f32 %v467, %v551
  %553 = vdwg.mxu0
  %v554 = vmax.f32 %v515, 0.0
  %v555 = vmax.f32 %v517, 0.0
  %v556 = vmax.f32 %v520, 0.0
  %v557 = vmax.f32 %v522, 0.0
  %v558 = vmax.f32 %v525, 0.0
  %v559 = vmax.f32 %v527, 0.0
  %v560 = vmax.f32 %v530, 0.0
  %v561 = vmax.f32 %v532, 0.0
  %v562 = vmax.f32 %v535, 0.0
  %v563 = vmax.f32 %v537, 0.0
  %v564 = vmax.f32 %v540, 0.0
  %v565 = vmax.f32 %v542, 0.0
  %v566 = vmax.f32 %v545, 0.0
  %v567 = vmax.f32 %v547, 0.0
  %v568 = vmax.f32 %v550, 0.0
  %v569 = vmax.f32 %v552, 0.0
  %v570 = vpack.c.bf16 %v555, %v554
  %v571 = vpack.c.bf16 %v557, %v556
  %v572 = vpack.c.bf16 %v559, %v558
  %v573 = vpack.c.bf16 %v561, %v560
  %v574 = vpack.c.bf16 %v563, %v562
  %v575 = vpack.c.bf16 %v565, %v564
  %v576 = vpack.c.bf16 %v567, %v566
  %v577 = vpack.c.bf16 %v569, %v568
  %v578 = vld [vmem:[%s11] sm:$0xf]
  %v579 = vld [vmem:[%s11 + $0x4] sm:$0xf]
  %v580 = vld [vmem:[%s11 + $0x8] sm:$0xf]
  %v581 = vld [vmem:[%s11 + $0xc] sm:$0xf]
  %v582 = vld [vmem:[%s12] sm:$0x1]
  %v584 = vperm.slane %v582, 0
  %v590 = vunpack.c.l.b16 %v578
  %v591 = vunpack.c.l.b16 %v579
  %v592 = vunpack.c.l.b16 %v580
  %v593 = vunpack.c.l.b16 %v581
  %v594 = vpack.c.b16 %v591, %v590
  %v595 = vpack.c.b16 %v593, %v592
  %v599 = vsel %vm199, %v570, 0
  %v602 = vsel %vm199, %v571, 0
  %v605 = vsel %vm199, %v572, 0
  %v608 = vsel %vm199, %v573, 0
  %v611 = vsel %vm199, %v574, 0
  %v614 = vsel %vm199, %v575, 0
  %v617 = vsel %vm199, %v576, 0
  %v620 = vsel %vm199, %v577, 0
  %622 = vmatpush.bf16.msra.mxu0 0
  %623 = vmatpush.bf16.msra.mxu0 0
  %624 = vmatpush.bf16.msra.mxu0 0
  %625 = vmatpush.bf16.msra.mxu0 0
  %626 = vmatpush.bf16.msra.mxu0 0
  %627 = vmatpush.bf16.msra.mxu0 0
  %628 = vmatpush.bf16.msra.mxu0 %v595
  %629 = vmatpush.bf16.msra.mxu0 %v594
  %630 = vmatmul.bf16.gmra.mxu0 %v599
  %v631 = vpop.f32.mrf.mxu0
  %v632 = vadd.f32 %v584, %v631
  %v633 = vpop.f32.mrf.mxu0
  %v634 = vadd.f32 %v584, %v633
  %635 = vmatmul.bf16.gmra.mxu0 %v602
  %v636 = vpop.f32.mrf.mxu0
  %v637 = vadd.f32 %v584, %v636
  %v638 = vpop.f32.mrf.mxu0
  %v639 = vadd.f32 %v584, %v638
  %640 = vmatmul.bf16.gmra.mxu0 %v605
  %v641 = vpop.f32.mrf.mxu0
  %v642 = vadd.f32 %v584, %v641
  %v643 = vpop.f32.mrf.mxu0
  %v644 = vadd.f32 %v584, %v643
  %645 = vmatmul.bf16.gmra.mxu0 %v608
  %v646 = vpop.f32.mrf.mxu0
  %v647 = vadd.f32 %v584, %v646
  %v648 = vpop.f32.mrf.mxu0
  %v649 = vadd.f32 %v584, %v648
  %650 = vmatmul.bf16.gmra.mxu0 %v611
  %v651 = vpop.f32.mrf.mxu0
  %v652 = vadd.f32 %v584, %v651
  %v653 = vpop.f32.mrf.mxu0
  %v654 = vadd.f32 %v584, %v653
  %655 = vmatmul.bf16.gmra.mxu0 %v614
  %v656 = vpop.f32.mrf.mxu0
  %v657 = vadd.f32 %v584, %v656
  %v658 = vpop.f32.mrf.mxu0
  %v659 = vadd.f32 %v584, %v658
  %660 = vmatmul.bf16.gmra.mxu0 %v617
  %v661 = vpop.f32.mrf.mxu0
  %v662 = vadd.f32 %v584, %v661
  %v663 = vpop.f32.mrf.mxu0
  %v664 = vadd.f32 %v584, %v663
  %665 = vmatmul.bf16.gmra.mxu0 %v620
  %v666 = vpop.f32.mrf.mxu0
  %v667 = vadd.f32 %v584, %v666
  %v668 = vpop.f32.mrf.mxu0
  %v669 = vadd.f32 %v584, %v668
  %670 = vdwg.mxu0
  %v671 = vsel %vm199, %v632, 0.0
  %v672 = vsel %vm199, %v634, 0.0
  %v673 = vadd.f32 %v671, %v672
  %v674 = vsel %vm199, %v637, 0.0
  %v675 = vadd.f32 %v673, %v674
  %v676 = vsel %vm199, %v639, 0.0
  %v677 = vadd.f32 %v675, %v676
  %v678 = vsel %vm199, %v642, 0.0
  %v679 = vadd.f32 %v677, %v678
  %v680 = vsel %vm199, %v644, 0.0
  %v681 = vadd.f32 %v679, %v680
  %v682 = vsel %vm199, %v647, 0.0
  %v683 = vadd.f32 %v681, %v682
  %v684 = vsel %vm199, %v649, 0.0
  %v685 = vadd.f32 %v683, %v684
  %v686 = vrot.slane %v685, 4
  %v687 = vadd.f32 %v685, %v686
  %v688 = vrot.slane %v687, 2
  %v689 = vadd.f32 %v687, %v688
  %v690 = vrot.slane %v689, 1
  %v691 = vadd.f32 %v689, %v690
  %v692 = vsel %vm199, %v652, 0.0
  %v693 = vsel %vm199, %v654, 0.0
  %v694 = vadd.f32 %v692, %v693
  %v695 = vsel %vm199, %v657, 0.0
  %v696 = vadd.f32 %v694, %v695
  %v697 = vsel %vm199, %v659, 0.0
  %v698 = vadd.f32 %v696, %v697
  %v699 = vsel %vm199, %v662, 0.0
  %v700 = vadd.f32 %v698, %v699
  %v701 = vsel %vm199, %v664, 0.0
  %v702 = vadd.f32 %v700, %v701
  %v703 = vsel %vm199, %v667, 0.0
  %v704 = vadd.f32 %v702, %v703
  %v705 = vsel %vm199, %v669, 0.0
  %v706 = vadd.f32 %v704, %v705
  %v707 = vrot.slane %v706, 4
  %v708 = vadd.f32 %v706, %v707
  %v709 = vrot.slane %v708, 2
  %v710 = vadd.f32 %v708, %v709
  %v711 = vrot.slane %v710, 1
  %v712 = vadd.f32 %v710, %v711
  %v713 = vmul.f32 %v691, %v113
  %v714 = vmul.f32 %v712, %v113
  %v715 = vmul.f32 %v713, %v713
  %v716 = vmul.f32 %v714, %v714
  %v719 = vsel %vm134, %v716, %v715
  %v721 = vsel %vm255, %v719, 0.0
  %722 = vadd.xlane.f32.xlu0 %v721
  %v723 = vpop.xlane.xlu0 %722
  %v724 = vmax.f32 %v723, 1e-24
  %v725 = vrsqrt.pop %v724
  %v726 = vmul.f32 %v725, %v724
  %v727 = vmul.f32 %v726, %v725
  %v728 = vmul.f32 0.5, %v727
  %v729 = vsub.f32 1.5, %v728
  %v730 = vmul.f32 %v725, %v729
  %vm731 = vweird.f32 %v724
  %vm732 = vweird.f32 %v725
  %vm733 = vmor %vm731, %vm732
  %v734 = vsel %vm733, %v725, %v730
  %v736 = vrot.slane %v734, 1
  %v739 = vmul.f32 %v713, %v734
  %v740 = vmul.f32 %v714, %v736
  %v743 = vrot.slane %v740, 7
  %v744 = vsel %vm134, %v743, %v739
  %746 = vst.msk [vmem:[%s15] sm:$0x3] %vm255, %v744
  %v747 = vmul.f32 %v632, %v632
  %v748 = vmul.f32 %v634, %v634
  %v749 = vmul.f32 %v637, %v637
  %v750 = vmul.f32 %v639, %v639
  %v751 = vmul.f32 %v642, %v642
  %v752 = vmul.f32 %v644, %v644
  %v753 = vmul.f32 %v647, %v647
  %v754 = vmul.f32 %v649, %v649
  %v755 = vmul.f32 %v652, %v652
  %v756 = vmul.f32 %v654, %v654
  %v757 = vmul.f32 %v657, %v657
  %v758 = vmul.f32 %v659, %v659
  %v759 = vmul.f32 %v662, %v662
  %v760 = vmul.f32 %v664, %v664
  %v761 = vmul.f32 %v667, %v667
  %v762 = vmul.f32 %v669, %v669
  %v763 = vsel %vm199, %v747, 0.0
  %764 = vadd.xlane.f32.xlu0 %v763
  %v765 = vpop.xlane.xlu0 %764
  %v766 = vsel %vm199, %v748, 0.0
  %767 = vadd.xlane.f32.xlu0 %v766
  %v768 = vpop.xlane.xlu0 %767
  %v769 = vsel %vm199, %v749, 0.0
  %770 = vadd.xlane.f32.xlu0 %v769
  %v771 = vpop.xlane.xlu0 %770
  %v772 = vsel %vm199, %v750, 0.0
  %773 = vadd.xlane.f32.xlu0 %v772
  %v774 = vpop.xlane.xlu0 %773
  %v775 = vsel %vm199, %v751, 0.0
  %776 = vadd.xlane.f32.xlu0 %v775
  %v777 = vpop.xlane.xlu0 %776
  %v778 = vsel %vm199, %v752, 0.0
  %779 = vadd.xlane.f32.xlu0 %v778
  %v780 = vpop.xlane.xlu0 %779
  %v781 = vsel %vm199, %v753, 0.0
  %782 = vadd.xlane.f32.xlu0 %v781
  %v783 = vpop.xlane.xlu0 %782
  %v784 = vsel %vm199, %v754, 0.0
  %785 = vadd.xlane.f32.xlu0 %v784
  %v786 = vpop.xlane.xlu0 %785
  %v787 = vsel %vm199, %v755, 0.0
  %788 = vadd.xlane.f32.xlu0 %v787
  %v789 = vpop.xlane.xlu0 %788
  %v790 = vsel %vm199, %v756, 0.0
  %791 = vadd.xlane.f32.xlu0 %v790
  %v792 = vpop.xlane.xlu0 %791
  %v793 = vsel %vm199, %v757, 0.0
  %794 = vadd.xlane.f32.xlu0 %v793
  %v795 = vpop.xlane.xlu0 %794
  %v796 = vsel %vm199, %v758, 0.0
  %797 = vadd.xlane.f32.xlu0 %v796
  %v798 = vpop.xlane.xlu0 %797
  %v799 = vsel %vm199, %v759, 0.0
  %800 = vadd.xlane.f32.xlu0 %v799
  %v801 = vpop.xlane.xlu0 %800
  %v802 = vsel %vm199, %v760, 0.0
  %803 = vadd.xlane.f32.xlu0 %v802
  %v804 = vpop.xlane.xlu0 %803
  %v805 = vsel %vm199, %v761, 0.0
  %806 = vadd.xlane.f32.xlu0 %v805
  %v807 = vpop.xlane.xlu0 %806
  %v808 = vsel %vm199, %v762, 0.0
  %809 = vadd.xlane.f32.xlu0 %v808
  %v810 = vpop.xlane.xlu0 %809
  %v811 = vmax.f32 %v765, 1e-24
  %v812 = vmax.f32 %v768, 1e-24
  %v813 = vmax.f32 %v771, 1e-24
  %v814 = vmax.f32 %v774, 1e-24
  %v815 = vmax.f32 %v777, 1e-24
  %v816 = vmax.f32 %v780, 1e-24
  %v817 = vmax.f32 %v783, 1e-24
  %v818 = vmax.f32 %v786, 1e-24
  %v819 = vmax.f32 %v789, 1e-24
  %v820 = vmax.f32 %v792, 1e-24
  %v821 = vmax.f32 %v795, 1e-24
  %v822 = vmax.f32 %v798, 1e-24
  %v823 = vmax.f32 %v801, 1e-24
  %v824 = vmax.f32 %v804, 1e-24
  %v825 = vmax.f32 %v807, 1e-24
  %v826 = vmax.f32 %v810, 1e-24
  %v827 = vrsqrt.pop %v811
  %v828 = vmul.f32 %v827, %v811
  %v829 = vmul.f32 %v828, %v827
  %v830 = vmul.f32 0.5, %v829
  %v831 = vsub.f32 1.5, %v830
  %v832 = vmul.f32 %v827, %v831
  %vm833 = vweird.f32 %v811
  %vm834 = vweird.f32 %v827
  %vm835 = vmor %vm833, %vm834
  %v836 = vsel %vm835, %v827, %v832
  %v837 = vrsqrt.pop %v812
  %v838 = vmul.f32 %v837, %v812
  %v839 = vmul.f32 %v838, %v837
  %v840 = vmul.f32 0.5, %v839
  %v841 = vsub.f32 1.5, %v840
  %v842 = vmul.f32 %v837, %v841
  %vm843 = vweird.f32 %v812
  %vm844 = vweird.f32 %v837
  %vm845 = vmor %vm843, %vm844
  %v846 = vsel %vm845, %v837, %v842
  %v847 = vrsqrt.pop %v813
  %v848 = vmul.f32 %v847, %v813
  %v849 = vmul.f32 %v848, %v847
  %v850 = vmul.f32 0.5, %v849
  %v851 = vsub.f32 1.5, %v850
  %v852 = vmul.f32 %v847, %v851
  %vm853 = vweird.f32 %v813
  %vm854 = vweird.f32 %v847
  %vm855 = vmor %vm853, %vm854
  %v856 = vsel %vm855, %v847, %v852
  %v857 = vrsqrt.pop %v814
  %v858 = vmul.f32 %v857, %v814
  %v859 = vmul.f32 %v858, %v857
  %v860 = vmul.f32 0.5, %v859
  %v861 = vsub.f32 1.5, %v860
  %v862 = vmul.f32 %v857, %v861
  %vm863 = vweird.f32 %v814
  %vm864 = vweird.f32 %v857
  %vm865 = vmor %vm863, %vm864
  %v866 = vsel %vm865, %v857, %v862
  %v867 = vrsqrt.pop %v815
  %v868 = vmul.f32 %v867, %v815
  %v869 = vmul.f32 %v868, %v867
  %v870 = vmul.f32 0.5, %v869
  %v871 = vsub.f32 1.5, %v870
  %v872 = vmul.f32 %v867, %v871
  %vm873 = vweird.f32 %v815
  %vm874 = vweird.f32 %v867
  %vm875 = vmor %vm873, %vm874
  %v876 = vsel %vm875, %v867, %v872
  %v877 = vrsqrt.pop %v816
  %v878 = vmul.f32 %v877, %v816
  %v879 = vmul.f32 %v878, %v877
  %v880 = vmul.f32 0.5, %v879
  %v881 = vsub.f32 1.5, %v880
  %v882 = vmul.f32 %v877, %v881
  %vm883 = vweird.f32 %v816
  %vm884 = vweird.f32 %v877
  %vm885 = vmor %vm883, %vm884
  %v886 = vsel %vm885, %v877, %v882
  %v887 = vrsqrt.pop %v817
  %v888 = vmul.f32 %v887, %v817
  %v889 = vmul.f32 %v888, %v887
  %v890 = vmul.f32 0.5, %v889
  %v891 = vsub.f32 1.5, %v890
  %v892 = vmul.f32 %v887, %v891
  %vm893 = vweird.f32 %v817
  %vm894 = vweird.f32 %v887
  %vm895 = vmor %vm893, %vm894
  %v896 = vsel %vm895, %v887, %v892
  %v897 = vrsqrt.pop %v818
  %v898 = vmul.f32 %v897, %v818
  %v899 = vmul.f32 %v898, %v897
  %v900 = vmul.f32 0.5, %v899
  %v901 = vsub.f32 1.5, %v900
  %v902 = vmul.f32 %v897, %v901
  %vm903 = vweird.f32 %v818
  %vm904 = vweird.f32 %v897
  %vm905 = vmor %vm903, %vm904
  %v906 = vsel %vm905, %v897, %v902
  %v907 = vrsqrt.pop %v819
  %v908 = vmul.f32 %v907, %v819
  %v909 = vmul.f32 %v908, %v907
  %v910 = vmul.f32 0.5, %v909
  %v911 = vsub.f32 1.5, %v910
  %v912 = vmul.f32 %v907, %v911
  %vm913 = vweird.f32 %v819
  %vm914 = vweird.f32 %v907
  %vm915 = vmor %vm913, %vm914
  %v916 = vsel %vm915, %v907, %v912
  %v917 = vrsqrt.pop %v820
  %v918 = vmul.f32 %v917, %v820
  %v919 = vmul.f32 %v918, %v917
  %v920 = vmul.f32 0.5, %v919
  %v921 = vsub.f32 1.5, %v920
  %v922 = vmul.f32 %v917, %v921
  %vm923 = vweird.f32 %v820
  %vm924 = vweird.f32 %v917
  %vm925 = vmor %vm923, %vm924
  %v926 = vsel %vm925, %v917, %v922
  %v927 = vrsqrt.pop %v821
  %v928 = vmul.f32 %v927, %v821
  %v929 = vmul.f32 %v928, %v927
  %v930 = vmul.f32 0.5, %v929
  %v931 = vsub.f32 1.5, %v930
  %v932 = vmul.f32 %v927, %v931
  %vm933 = vweird.f32 %v821
  %vm934 = vweird.f32 %v927
  %vm935 = vmor %vm933, %vm934
  %v936 = vsel %vm935, %v927, %v932
  %v937 = vrsqrt.pop %v822
  %v938 = vmul.f32 %v937, %v822
  %v939 = vmul.f32 %v938, %v937
  %v940 = vmul.f32 0.5, %v939
  %v941 = vsub.f32 1.5, %v940
  %v942 = vmul.f32 %v937, %v941
  %vm943 = vweird.f32 %v822
  %vm944 = vweird.f32 %v937
  %vm945 = vmor %vm943, %vm944
  %v946 = vsel %vm945, %v937, %v942
  %v947 = vrsqrt.pop %v823
  %v948 = vmul.f32 %v947, %v823
  %v949 = vmul.f32 %v948, %v947
  %v950 = vmul.f32 0.5, %v949
  %v951 = vsub.f32 1.5, %v950
  %v952 = vmul.f32 %v947, %v951
  %vm953 = vweird.f32 %v823
  %vm954 = vweird.f32 %v947
  %vm955 = vmor %vm953, %vm954
  %v956 = vsel %vm955, %v947, %v952
  %v957 = vrsqrt.pop %v824
  %v958 = vmul.f32 %v957, %v824
  %v959 = vmul.f32 %v958, %v957
  %v960 = vmul.f32 0.5, %v959
  %v961 = vsub.f32 1.5, %v960
  %v962 = vmul.f32 %v957, %v961
  %vm963 = vweird.f32 %v824
  %vm964 = vweird.f32 %v957
  %vm965 = vmor %vm963, %vm964
  %v966 = vsel %vm965, %v957, %v962
  %v967 = vrsqrt.pop %v825
  %v968 = vmul.f32 %v967, %v825
  %v969 = vmul.f32 %v968, %v967
  %v970 = vmul.f32 0.5, %v969
  %v971 = vsub.f32 1.5, %v970
  %v972 = vmul.f32 %v967, %v971
  %vm973 = vweird.f32 %v825
  %vm974 = vweird.f32 %v967
  %vm975 = vmor %vm973, %vm974
  %v976 = vsel %vm975, %v967, %v972
  %v977 = vrsqrt.pop %v826
  %v978 = vmul.f32 %v977, %v826
  %v979 = vmul.f32 %v978, %v977
  %v980 = vmul.f32 0.5, %v979
  %v981 = vsub.f32 1.5, %v980
  %v982 = vmul.f32 %v977, %v981
  %vm983 = vweird.f32 %v826
  %vm984 = vweird.f32 %v977
  %vm985 = vmor %vm983, %vm984
  %v986 = vsel %vm985, %v977, %v982
  %v987 = vmul.f32 %v632, %v836
  %v988 = vmul.f32 %v634, %v846
  %v989 = vmul.f32 %v637, %v856
  %v990 = vmul.f32 %v639, %v866
  %v991 = vmul.f32 %v642, %v876
  %v992 = vmul.f32 %v644, %v886
  %v993 = vmul.f32 %v647, %v896
  %v994 = vmul.f32 %v649, %v906
  %v995 = vmul.f32 %v652, %v916
  %v996 = vmul.f32 %v654, %v926
  %v997 = vmul.f32 %v657, %v936
  %v998 = vmul.f32 %v659, %v946
  %v999 = vmul.f32 %v662, %v956
  %v1000 = vmul.f32 %v664, %v966
  %v1001 = vmul.f32 %v667, %v976
  %v1002 = vmul.f32 %v669, %v986
  %v1003 = vpack.c.bf16 %v987, %v987
  %v1004 = vpack.c.bf16 %v988, %v988
  %v1005 = vpack.c.bf16 %v989, %v989
  %v1006 = vpack.c.bf16 %v990, %v990
  %v1007 = vpack.c.bf16 %v991, %v991
  %v1008 = vpack.c.bf16 %v992, %v992
  %v1009 = vpack.c.bf16 %v993, %v993
  %v1010 = vpack.c.bf16 %v994, %v994
  %v1011 = vpack.c.bf16 %v995, %v995
  %v1012 = vpack.c.bf16 %v996, %v996
  %v1013 = vpack.c.bf16 %v997, %v997
  %v1014 = vpack.c.bf16 %v998, %v998
  %v1015 = vpack.c.bf16 %v999, %v999
  %v1016 = vpack.c.bf16 %v1000, %v1000
  %v1017 = vpack.c.bf16 %v1001, %v1001
  %v1018 = vpack.c.bf16 %v1002, %v1002
  %vm1019 = vcmask 257024
  %1020 = vst.msk [vmem:[%s14] sm:$0xf] %vm1019, %v1003
  %1021 = vst.msk [vmem:[%s14 + $0x4] sm:$0xf] %vm1019, %v1004
  %1022 = vst.msk [vmem:[%s14 + $0x8] sm:$0xf] %vm1019, %v1005
  %1023 = vst.msk [vmem:[%s14 + $0xc] sm:$0xf] %vm1019, %v1006
  %1024 = vst.msk [vmem:[%s14 + $0x10] sm:$0xf] %vm1019, %v1007
  %1025 = vst.msk [vmem:[%s14 + $0x14] sm:$0xf] %vm1019, %v1008
  %1026 = vst.msk [vmem:[%s14 + $0x18] sm:$0xf] %vm1019, %v1009
  %1027 = vst.msk [vmem:[%s14 + $0x1c] sm:$0xf] %vm1019, %v1010
  %1028 = vst.msk [vmem:[%s14 + $0x20] sm:$0xf] %vm1019, %v1011
  %1029 = vst.msk [vmem:[%s14 + $0x24] sm:$0xf] %vm1019, %v1012
  %1030 = vst.msk [vmem:[%s14 + $0x28] sm:$0xf] %vm1019, %v1013
  %1031 = vst.msk [vmem:[%s14 + $0x2c] sm:$0xf] %vm1019, %v1014
  %1032 = vst.msk [vmem:[%s14 + $0x30] sm:$0xf] %vm1019, %v1015
  %1033 = vst.msk [vmem:[%s14 + $0x34] sm:$0xf] %vm1019, %v1016
  %1034 = vst.msk [vmem:[%s14 + $0x38] sm:$0xf] %vm1019, %v1017
  %1035 = vst.msk [vmem:[%s14 + $0x3c] sm:$0xf] %vm1019, %v1018
  // Predicated region
  $region54: #{moco_forward.6} parent=0 // pred_check
    _
  $region55: #{moco_forward.6} parent=0 // pred_check_branch
    %1037 = sbr.rel (0) target = $region57
  $region56: #{moco_forward.6} parent=0 // pred_region
    _
  $region57: #{moco_forward.6} parent=0 // pred_fallthru
    _
  // Predicated region
  $region58: #{moco_forward.6} parent=0 // pred_check
    _
  $region59: #{moco_forward.6} parent=0 // pred_check_branch
    %1039 = sbr.rel (0) target = $region61
  $region60: #{moco_forward.6} parent=0 // pred_region
    _
  $region61: #{moco_forward.6} parent=0 // pred_fallthru
    _
  // Predicated region
  $region62: #{moco_forward.6} parent=0 // pred_check
    _
  $region63: #{moco_forward.6} parent=0 // pred_check_branch
    %1041 = sbr.rel (0) target = $region65
  $region64: #{moco_forward.6} parent=0 // pred_region
    _
  $region65: #{moco_forward.6} parent=0 // pred_fallthru
    _
  // Predicated region
  $region66: #{moco_forward.6} parent=0 // pred_check
    _
  $region67: #{moco_forward.6} parent=0 // pred_check_branch
    %1043 = sbr.rel (0) target = $region69
  $region68: #{moco_forward.6} parent=0 // pred_region
    _
  $region69: #{moco_forward.6} parent=0 // pred_fallthru
    _
  // Predicated region
  $region70: #{moco_forward.6} parent=0 // pred_check
    _
  $region71: #{moco_forward.6} parent=0 // pred_check_branch
    %1045 = sbr.rel (0) target = $region73
  $region72: #{moco_forward.6} parent=0 // pred_region
    _
  $region73: #{moco_forward.6} parent=0 // pred_fallthru
    _
  // Predicated region
  $region74: #{moco_forward.6} parent=0 // pred_check
    _
  $region75: #{moco_forward.6} parent=0 // pred_check_branch
    %1047 = sbr.rel (0) target = $region77
  $region76: #{moco_forward.6} parent=0 // pred_region
    _
  $region77: #{moco_forward.6} parent=0 // pred_fallthru
    _

// kernel: moco_forward.9
$region0: #{moco_forward.9}
  #allocation0 [shape = 'u32[]', space=smem, size = 0x4, offset = 0x4, fixed_abs, tag = 'smem constant byte address 0x4 - core index']
  #allocation1 [shape = 'u32[72,128]{1,0:T(1,128)}', space=vmem, size = 0x9000, scoped, tag = 'internal scratch']
  %s0 = inlined_call_operand.vmem [shape: bf16[128,32], index: 0, kind: input, shape index: {}]
  %s1 = inlined_call_operand.vmem [shape: bf16[32,1024], index: 1, kind: input, shape index: {}]
  %s2 = inlined_call_operand.vmem [shape: f32[128,1024], index: 2, kind: output, shape index: {}]
  %s3 = sld [smem:[#allocation0]]
  $region18: #{moco_forward.9} parent=0
    _
  %s5 = ssub.s32 1, %s3
  %s6 = scalar_select 0, %s5, %s3
  // Predicated region
  $region2: #{moco_forward.9} parent=0 // pred_check
    _
  $region3: #{moco_forward.9} parent=0 // pred_check_branch
    %8 = sbr.rel (0) target = $region5
  $region4: #{moco_forward.9} parent=0 // pred_region
    _
  $region5: #{moco_forward.9} parent=0 // pred_fallthru
    _
  // Predicated region
  $region6: #{moco_forward.9} parent=0 // pred_check
    _
  $region7: #{moco_forward.9} parent=0 // pred_check_branch
    %10 = sbr.rel (0) target = $region9
  $region8: #{moco_forward.9} parent=0 // pred_region
    _
  $region9: #{moco_forward.9} parent=0 // pred_fallthru
    _
  %v12 = vld [vmem:[%s0] sm:$0xf]
  %v13 = vld [vmem:[%s0 + $0x4] sm:$0xf]
  %v14 = vld [vmem:[%s0 + $0x8] sm:$0xf]
  %v15 = vld [vmem:[%s0 + $0xc] sm:$0xf]
  %v16 = vld [vmem:[%s0 + $0x10] sm:$0xf]
  %v17 = vld [vmem:[%s0 + $0x14] sm:$0xf]
  %v18 = vld [vmem:[%s0 + $0x18] sm:$0xf]
  %v19 = vld [vmem:[%s0 + $0x1c] sm:$0xf]
  %v20 = vld [vmem:[%s0 + $0x20] sm:$0xf]
  %v21 = vld [vmem:[%s0 + $0x24] sm:$0xf]
  %v22 = vld [vmem:[%s0 + $0x28] sm:$0xf]
  %v23 = vld [vmem:[%s0 + $0x2c] sm:$0xf]
  %v24 = vld [vmem:[%s0 + $0x30] sm:$0xf]
  %v25 = vld [vmem:[%s0 + $0x34] sm:$0xf]
  %v26 = vld [vmem:[%s0 + $0x38] sm:$0xf]
  %v27 = vld [vmem:[%s0 + $0x3c] sm:$0xf]
  %v28 = vld [vmem:[%s1] sm:$0xff]
  %v29 = vld [vmem:[%s1 + $0x8] sm:$0xff]
  %v30 = vld [vmem:[%s1 + $0x10] sm:$0xff]
  %v31 = vld [vmem:[%s1 + $0x18] sm:$0xff]
  %v32 = vld [vmem:[%s1 + $0x20] sm:$0xff]
  %v33 = vld [vmem:[%s1 + $0x28] sm:$0xff]
  %v34 = vld [vmem:[%s1 + $0x30] sm:$0xff]
  %v35 = vld [vmem:[%s1 + $0x38] sm:$0xff]
  %v36 = vld [vmem:[%s1 + $0x40] sm:$0xff]
  %v37 = vld [vmem:[%s1 + $0x48] sm:$0xff]
  %v38 = vld [vmem:[%s1 + $0x50] sm:$0xff]
  %v39 = vld [vmem:[%s1 + $0x58] sm:$0xff]
  %v40 = vld [vmem:[%s1 + $0x60] sm:$0xff]
  %v41 = vld [vmem:[%s1 + $0x68] sm:$0xff]
  %v42 = vld [vmem:[%s1 + $0x70] sm:$0xff]
  %v43 = vld [vmem:[%s1 + $0x78] sm:$0xff]
  %v60 = vunpack.c.l.b16 %v12
  %v61 = vunpack.c.l.b16 %v13
  %v62 = vunpack.c.l.b16 %v14
  %v63 = vunpack.c.l.b16 %v15
  %v64 = vunpack.c.l.b16 %v16
  %v65 = vunpack.c.l.b16 %v17
  %v66 = vunpack.c.l.b16 %v18
  %v67 = vunpack.c.l.b16 %v19
  %v68 = vunpack.c.l.b16 %v20
  %v69 = vunpack.c.l.b16 %v21
  %v70 = vunpack.c.l.b16 %v22
  %v71 = vunpack.c.l.b16 %v23
  %v72 = vunpack.c.l.b16 %v24
  %v73 = vunpack.c.l.b16 %v25
  %v74 = vunpack.c.l.b16 %v26
  %v75 = vunpack.c.l.b16 %v27
  %v76 = vpack.c.b16 %v61, %v60
  %v77 = vpack.c.b16 %v63, %v62
  %v78 = vpack.c.b16 %v65, %v64
  %v79 = vpack.c.b16 %v67, %v66
  %v80 = vpack.c.b16 %v69, %v68
  %v81 = vpack.c.b16 %v71, %v70
  %v82 = vpack.c.b16 %v73, %v72
  %v83 = vpack.c.b16 %v75, %v74
  %v100 = vunpack.c.l.b16 %v28
  %v101 = vunpack.c.h.b16 %v28
  %v102 = vunpack.c.l.b16 %v29
  %v103 = vunpack.c.h.b16 %v29
  %v104 = vunpack.c.l.b16 %v30
  %v105 = vunpack.c.h.b16 %v30
  %v106 = vunpack.c.l.b16 %v31
  %v107 = vunpack.c.h.b16 %v31
  %v108 = vunpack.c.l.b16 %v32
  %v109 = vunpack.c.h.b16 %v32
  %v110 = vunpack.c.l.b16 %v33
  %v111 = vunpack.c.h.b16 %v33
  %v112 = vunpack.c.l.b16 %v34
  %v113 = vunpack.c.h.b16 %v34
  %v114 = vunpack.c.l.b16 %v35
  %v115 = vunpack.c.h.b16 %v35
  %v116 = vunpack.c.l.b16 %v36
  %v117 = vunpack.c.h.b16 %v36
  %v118 = vunpack.c.l.b16 %v37
  %v119 = vunpack.c.h.b16 %v37
  %v120 = vunpack.c.l.b16 %v38
  %v121 = vunpack.c.h.b16 %v38
  %v122 = vunpack.c.l.b16 %v39
  %v123 = vunpack.c.h.b16 %v39
  %v124 = vunpack.c.l.b16 %v40
  %v125 = vunpack.c.h.b16 %v40
  %v126 = vunpack.c.l.b16 %v41
  %v127 = vunpack.c.h.b16 %v41
  %v128 = vunpack.c.l.b16 %v42
  %v129 = vunpack.c.h.b16 %v42
  %v130 = vunpack.c.l.b16 %v43
  %v131 = vunpack.c.h.b16 %v43
  %v132 = vpack.c.b16 %v108, %v100
  %v133 = vpack.c.b16 %v109, %v101
  %v134 = vpack.c.b16 %v110, %v102
  %v135 = vpack.c.b16 %v111, %v103
  %v136 = vpack.c.b16 %v112, %v104
  %v137 = vpack.c.b16 %v113, %v105
  %v138 = vpack.c.b16 %v114, %v106
  %v139 = vpack.c.b16 %v115, %v107
  %v140 = vpack.c.b16 %v124, %v116
  %v141 = vpack.c.b16 %v125, %v117
  %v142 = vpack.c.b16 %v126, %v118
  %v143 = vpack.c.b16 %v127, %v119
  %v144 = vpack.c.b16 %v128, %v120
  %v145 = vpack.c.b16 %v129, %v121
  %v146 = vpack.c.b16 %v130, %v122
  %v147 = vpack.c.b16 %v131, %v123
  %vm164 = vcmask 261120
  %v166 = vsel %vm164, %v76, 0
  %v169 = vsel %vm164, %v77, 0
  %v172 = vsel %vm164, %v78, 0
  %v175 = vsel %vm164, %v79, 0
  %v178 = vsel %vm164, %v80, 0
  %v181 = vsel %vm164, %v81, 0
  %v184 = vsel %vm164, %v82, 0
  %v187 = vsel %vm164, %v83, 0
  %189 = vmatpush.bf16.msra.mxu0 0
  %190 = vmatpush.bf16.msra.mxu0 0
  %191 = vmatpush.bf16.msra.mxu0 0
  %192 = vmatpush.bf16.msra.mxu0 0
  %193 = vmatpush.bf16.msra.mxu0 0
  %194 = vmatpush.bf16.msra.mxu0 0
  %195 = vmatpush.bf16.msra.mxu0 %v140
  %196 = vmatpush.bf16.msra.mxu0 %v132
  %197 = vmatmul.bf16.gmra.mxu0 %v166
  %v198 = vpop.f32.mrf.mxu0
  %v199 = vadd.f32 0.0, %v198
  %v200 = vpop.f32.mrf.mxu0
  %v201 = vadd.f32 0.0, %v200
  %202 = vmatmul.bf16.gmra.mxu0 %v169
  %v203 = vpop.f32.mrf.mxu0
  %v204 = vadd.f32 0.0, %v203
  %v205 = vpop.f32.mrf.mxu0
  %v206 = vadd.f32 0.0, %v205
  %207 = vmatmul.bf16.gmra.mxu0 %v172
  %v208 = vpop.f32.mrf.mxu0
  %v209 = vadd.f32 0.0, %v208
  %v210 = vpop.f32.mrf.mxu0
  %v211 = vadd.f32 0.0, %v210
  %212 = vmatmul.bf16.gmra.mxu0 %v175
  %v213 = vpop.f32.mrf.mxu0
  %v214 = vadd.f32 0.0, %v213
  %v215 = vpop.f32.mrf.mxu0
  %v216 = vadd.f32 0.0, %v215
  %217 = vmatmul.bf16.gmra.mxu0 %v178
  %v218 = vpop.f32.mrf.mxu0
  %v219 = vadd.f32 0.0, %v218
  %v220 = vpop.f32.mrf.mxu0
  %v221 = vadd.f32 0.0, %v220
  %222 = vmatmul.bf16.gmra.mxu0 %v181
  %v223 = vpop.f32.mrf.mxu0
  %v224 = vadd.f32 0.0, %v223
  %v225 = vpop.f32.mrf.mxu0
  %v226 = vadd.f32 0.0, %v225
  %227 = vmatmul.bf16.gmra.mxu0 %v184
  %v228 = vpop.f32.mrf.mxu0
  %v229 = vadd.f32 0.0, %v228
  %v230 = vpop.f32.mrf.mxu0
  %v231 = vadd.f32 0.0, %v230
  %232 = vmatmul.bf16.gmra.mxu0 %v187
  %v233 = vpop.f32.mrf.mxu0
  %v234 = vadd.f32 0.0, %v233
  %v235 = vpop.f32.mrf.mxu0
  %v236 = vadd.f32 0.0, %v235
  %237 = vdwg.mxu0
  %238 = vmatpush.bf16.msra.mxu0 0
  %239 = vmatpush.bf16.msra.mxu0 0
  %240 = vmatpush.bf16.msra.mxu0 0
  %241 = vmatpush.bf16.msra.mxu0 0
  %242 = vmatpush.bf16.msra.mxu0 0
  %243 = vmatpush.bf16.msra.mxu0 0
  %244 = vmatpush.bf16.msra.mxu0 %v141
  %245 = vmatpush.bf16.msra.mxu0 %v133
  %246 = vmatmul.bf16.gmra.mxu0 %v166
  %v247 = vpop.f32.mrf.mxu0
  %v248 = vadd.f32 0.0, %v247
  %v249 = vpop.f32.mrf.mxu0
  %v250 = vadd.f32 0.0, %v249
  %251 = vmatmul.bf16.gmra.mxu0 %v169
  %v252 = vpop.f32.mrf.mxu0
  %v253 = vadd.f32 0.0, %v252
  %v254 = vpop.f32.mrf.mxu0
  %v255 = vadd.f32 0.0, %v254
  %256 = vmatmul.bf16.gmra.mxu0 %v172
  %v257 = vpop.f32.mrf.mxu0
  %v258 = vadd.f32 0.0, %v257
  %v259 = vpop.f32.mrf.mxu0
  %v260 = vadd.f32 0.0, %v259
  %261 = vmatmul.bf16.gmra.mxu0 %v175
  %v262 = vpop.f32.mrf.mxu0
  %v263 = vadd.f32 0.0, %v262
  %v264 = vpop.f32.mrf.mxu0
  %v265 = vadd.f32 0.0, %v264
  %266 = vmatmul.bf16.gmra.mxu0 %v178
  %v267 = vpop.f32.mrf.mxu0
  %v268 = vadd.f32 0.0, %v267
  %v269 = vpop.f32.mrf.mxu0
  %v270 = vadd.f32 0.0, %v269
  %271 = vmatmul.bf16.gmra.mxu0 %v181
  %v272 = vpop.f32.mrf.mxu0
  %v273 = vadd.f32 0.0, %v272
  %v274 = vpop.f32.mrf.mxu0
  %v275 = vadd.f32 0.0, %v274
  %276 = vmatmul.bf16.gmra.mxu0 %v184
  %v277 = vpop.f32.mrf.mxu0
  %v278 = vadd.f32 0.0, %v277
  %v279 = vpop.f32.mrf.mxu0
  %v280 = vadd.f32 0.0, %v279
  %281 = vmatmul.bf16.gmra.mxu0 %v187
  %v282 = vpop.f32.mrf.mxu0
  %v283 = vadd.f32 0.0, %v282
  %v284 = vpop.f32.mrf.mxu0
  %v285 = vadd.f32 0.0, %v284
  %286 = vdwg.mxu0
  %287 = vmatpush.bf16.msra.mxu0 0
  %288 = vmatpush.bf16.msra.mxu0 0
  %289 = vmatpush.bf16.msra.mxu0 0
  %290 = vmatpush.bf16.msra.mxu0 0
  %291 = vmatpush.bf16.msra.mxu0 0
  %292 = vmatpush.bf16.msra.mxu0 0
  %293 = vmatpush.bf16.msra.mxu0 %v142
  %294 = vmatpush.bf16.msra.mxu0 %v134
  %295 = vmatmul.bf16.gmra.mxu0 %v166
  %v296 = vpop.f32.mrf.mxu0
  %v297 = vadd.f32 0.0, %v296
  %v298 = vpop.f32.mrf.mxu0
  %v299 = vadd.f32 0.0, %v298
  %300 = vmatmul.bf16.gmra.mxu0 %v169
  %v301 = vpop.f32.mrf.mxu0
  %v302 = vadd.f32 0.0, %v301
  %v303 = vpop.f32.mrf.mxu0
  %v304 = vadd.f32 0.0, %v303
  %305 = vmatmul.bf16.gmra.mxu0 %v172
  %v306 = vpop.f32.mrf.mxu0
  %v307 = vadd.f32 0.0, %v306
  %v308 = vpop.f32.mrf.mxu0
  %v309 = vadd.f32 0.0, %v308
  %310 = vmatmul.bf16.gmra.mxu0 %v175
  %v311 = vpop.f32.mrf.mxu0
  %v312 = vadd.f32 0.0, %v311
  %v313 = vpop.f32.mrf.mxu0
  %v314 = vadd.f32 0.0, %v313
  %315 = vmatmul.bf16.gmra.mxu0 %v178
  %v316 = vpop.f32.mrf.mxu0
  %v317 = vadd.f32 0.0, %v316
  %v318 = vpop.f32.mrf.mxu0
  %v319 = vadd.f32 0.0, %v318
  %320 = vmatmul.bf16.gmra.mxu0 %v181
  %v321 = vpop.f32.mrf.mxu0
  %v322 = vadd.f32 0.0, %v321
  %v323 = vpop.f32.mrf.mxu0
  %v324 = vadd.f32 0.0, %v323
  %325 = vmatmul.bf16.gmra.mxu0 %v184
  %v326 = vpop.f32.mrf.mxu0
  %v327 = vadd.f32 0.0, %v326
  %v328 = vpop.f32.mrf.mxu0
  %v329 = vadd.f32 0.0, %v328
  %330 = vmatmul.bf16.gmra.mxu0 %v187
  %v331 = vpop.f32.mrf.mxu0
  %v332 = vadd.f32 0.0, %v331
  %v333 = vpop.f32.mrf.mxu0
  %v334 = vadd.f32 0.0, %v333
  %335 = vdwg.mxu0
  %336 = vmatpush.bf16.msra.mxu0 0
  %337 = vmatpush.bf16.msra.mxu0 0
  %338 = vmatpush.bf16.msra.mxu0 0
  %339 = vmatpush.bf16.msra.mxu0 0
  %340 = vmatpush.bf16.msra.mxu0 0
  %341 = vmatpush.bf16.msra.mxu0 0
  %342 = vmatpush.bf16.msra.mxu0 %v143
  %343 = vmatpush.bf16.msra.mxu0 %v135
  %344 = vmatmul.bf16.gmra.mxu0 %v166
  %v345 = vpop.f32.mrf.mxu0
  %v346 = vadd.f32 0.0, %v345
  %v347 = vpop.f32.mrf.mxu0
  %v348 = vadd.f32 0.0, %v347
  %349 = vmatmul.bf16.gmra.mxu0 %v169
  %v350 = vpop.f32.mrf.mxu0
  %v351 = vadd.f32 0.0, %v350
  %v352 = vpop.f32.mrf.mxu0
  %v353 = vadd.f32 0.0, %v352
  %354 = vmatmul.bf16.gmra.mxu0 %v172
  %v355 = vpop.f32.mrf.mxu0
  %v356 = vadd.f32 0.0, %v355
  %v357 = vpop.f32.mrf.mxu0
  %v358 = vadd.f32 0.0, %v357
  %359 = vmatmul.bf16.gmra.mxu0 %v175
  %v360 = vpop.f32.mrf.mxu0
  %v361 = vadd.f32 0.0, %v360
  %v362 = vpop.f32.mrf.mxu0
  %v363 = vadd.f32 0.0, %v362
  %364 = vmatmul.bf16.gmra.mxu0 %v178
  %v365 = vpop.f32.mrf.mxu0
  %v366 = vadd.f32 0.0, %v365
  %v367 = vpop.f32.mrf.mxu0
  %v368 = vadd.f32 0.0, %v367
  %369 = vmatmul.bf16.gmra.mxu0 %v181
  %v370 = vpop.f32.mrf.mxu0
  %v371 = vadd.f32 0.0, %v370
  %v372 = vpop.f32.mrf.mxu0
  %v373 = vadd.f32 0.0, %v372
  %374 = vmatmul.bf16.gmra.mxu0 %v184
  %v375 = vpop.f32.mrf.mxu0
  %v376 = vadd.f32 0.0, %v375
  %v377 = vpop.f32.mrf.mxu0
  %v378 = vadd.f32 0.0, %v377
  %379 = vmatmul.bf16.gmra.mxu0 %v187
  %v380 = vpop.f32.mrf.mxu0
  %v381 = vadd.f32 0.0, %v380
  %v382 = vpop.f32.mrf.mxu0
  %v383 = vadd.f32 0.0, %v382
  %384 = vdwg.mxu0
  %385 = vmatpush.bf16.msra.mxu0 0
  %386 = vmatpush.bf16.msra.mxu0 0
  %387 = vmatpush.bf16.msra.mxu0 0
  %388 = vmatpush.bf16.msra.mxu0 0
  %389 = vmatpush.bf16.msra.mxu0 0
  %390 = vmatpush.bf16.msra.mxu0 0
  %391 = vmatpush.bf16.msra.mxu0 %v144
  %392 = vmatpush.bf16.msra.mxu0 %v136
  %393 = vmatmul.bf16.gmra.mxu0 %v166
  %v394 = vpop.f32.mrf.mxu0
  %v395 = vadd.f32 0.0, %v394
  %v396 = vpop.f32.mrf.mxu0
  %v397 = vadd.f32 0.0, %v396
  %398 = vmatmul.bf16.gmra.mxu0 %v169
  %v399 = vpop.f32.mrf.mxu0
  %v400 = vadd.f32 0.0, %v399
  %v401 = vpop.f32.mrf.mxu0
  %v402 = vadd.f32 0.0, %v401
  %403 = vmatmul.bf16.gmra.mxu0 %v172
  %v404 = vpop.f32.mrf.mxu0
  %v405 = vadd.f32 0.0, %v404
  %v406 = vpop.f32.mrf.mxu0
  %v407 = vadd.f32 0.0, %v406
  %408 = vmatmul.bf16.gmra.mxu0 %v175
  %v409 = vpop.f32.mrf.mxu0
  %v410 = vadd.f32 0.0, %v409
  %v411 = vpop.f32.mrf.mxu0
  %v412 = vadd.f32 0.0, %v411
  %413 = vmatmul.bf16.gmra.mxu0 %v178
  %v414 = vpop.f32.mrf.mxu0
  %v415 = vadd.f32 0.0, %v414
  %v416 = vpop.f32.mrf.mxu0
  %v417 = vadd.f32 0.0, %v416
  %418 = vmatmul.bf16.gmra.mxu0 %v181
  %v419 = vpop.f32.mrf.mxu0
  %v420 = vadd.f32 0.0, %v419
  %v421 = vpop.f32.mrf.mxu0
  %v422 = vadd.f32 0.0, %v421
  %423 = vmatmul.bf16.gmra.mxu0 %v184
  %v424 = vpop.f32.mrf.mxu0
  %v425 = vadd.f32 0.0, %v424
  %v426 = vpop.f32.mrf.mxu0
  %v427 = vadd.f32 0.0, %v426
  %428 = vmatmul.bf16.gmra.mxu0 %v187
  %v429 = vpop.f32.mrf.mxu0
  %v430 = vadd.f32 0.0, %v429
  %v431 = vpop.f32.mrf.mxu0
  %v432 = vadd.f32 0.0, %v431
  %433 = vdwg.mxu0
  %434 = vmatpush.bf16.msra.mxu0 0
  %435 = vmatpush.bf16.msra.mxu0 0
  %436 = vmatpush.bf16.msra.mxu0 0
  %437 = vmatpush.bf16.msra.mxu0 0
  %438 = vmatpush.bf16.msra.mxu0 0
  %439 = vmatpush.bf16.msra.mxu0 0
  %440 = vmatpush.bf16.msra.mxu0 %v145
  %441 = vmatpush.bf16.msra.mxu0 %v137
  %442 = vmatmul.bf16.gmra.mxu0 %v166
  %v443 = vpop.f32.mrf.mxu0
  %v444 = vadd.f32 0.0, %v443
  %v445 = vpop.f32.mrf.mxu0
  %v446 = vadd.f32 0.0, %v445
  %447 = vmatmul.bf16.gmra.mxu0 %v169
  %v448 = vpop.f32.mrf.mxu0
  %v449 = vadd.f32 0.0, %v448
  %v450 = vpop.f32.mrf.mxu0
  %v451 = vadd.f32 0.0, %v450
  %452 = vmatmul.bf16.gmra.mxu0 %v172
  %v453 = vpop.f32.mrf.mxu0
  %v454 = vadd.f32 0.0, %v453
  %v455 = vpop.f32.mrf.mxu0
  %v456 = vadd.f32 0.0, %v455
  %457 = vmatmul.bf16.gmra.mxu0 %v175
  %v458 = vpop.f32.mrf.mxu0
  %v459 = vadd.f32 0.0, %v458
  %v460 = vpop.f32.mrf.mxu0
  %v461 = vadd.f32 0.0, %v460
  %462 = vmatmul.bf16.gmra.mxu0 %v178
  %v463 = vpop.f32.mrf.mxu0
  %v464 = vadd.f32 0.0, %v463
  %v465 = vpop.f32.mrf.mxu0
  %v466 = vadd.f32 0.0, %v465
  %467 = vmatmul.bf16.gmra.mxu0 %v181
  %v468 = vpop.f32.mrf.mxu0
  %v469 = vadd.f32 0.0, %v468
  %v470 = vpop.f32.mrf.mxu0
  %v471 = vadd.f32 0.0, %v470
  %472 = vmatmul.bf16.gmra.mxu0 %v184
  %v473 = vpop.f32.mrf.mxu0
  %v474 = vadd.f32 0.0, %v473
  %v475 = vpop.f32.mrf.mxu0
  %v476 = vadd.f32 0.0, %v475
  %477 = vmatmul.bf16.gmra.mxu0 %v187
  %v478 = vpop.f32.mrf.mxu0
  %v479 = vadd.f32 0.0, %v478
  %v480 = vpop.f32.mrf.mxu0
  %v481 = vadd.f32 0.0, %v480
  %482 = vdwg.mxu0
  %483 = vmatpush.bf16.msra.mxu0 0
  %484 = vmatpush.bf16.msra.mxu0 0
  %485 = vmatpush.bf16.msra.mxu0 0
  %486 = vmatpush.bf16.msra.mxu0 0
  %487 = vmatpush.bf16.msra.mxu0 0
  %488 = vmatpush.bf16.msra.mxu0 0
  %489 = vmatpush.bf16.msra.mxu0 %v146
  %490 = vmatpush.bf16.msra.mxu0 %v138
  %491 = vmatmul.bf16.gmra.mxu0 %v166
  %v492 = vpop.f32.mrf.mxu0
  %v493 = vadd.f32 0.0, %v492
  %v494 = vpop.f32.mrf.mxu0
  %v495 = vadd.f32 0.0, %v494
  %496 = vmatmul.bf16.gmra.mxu0 %v169
  %v497 = vpop.f32.mrf.mxu0
  %v498 = vadd.f32 0.0, %v497
  %v499 = vpop.f32.mrf.mxu0
  %v500 = vadd.f32 0.0, %v499
  %501 = vmatmul.bf16.gmra.mxu0 %v172
  %v502 = vpop.f32.mrf.mxu0
  %v503 = vadd.f32 0.0, %v502
  %v504 = vpop.f32.mrf.mxu0
  %v505 = vadd.f32 0.0, %v504
  %506 = vmatmul.bf16.gmra.mxu0 %v175
  %v507 = vpop.f32.mrf.mxu0
  %v508 = vadd.f32 0.0, %v507
  %v509 = vpop.f32.mrf.mxu0
  %v510 = vadd.f32 0.0, %v509
  %511 = vmatmul.bf16.gmra.mxu0 %v178
  %v512 = vpop.f32.mrf.mxu0
  %v513 = vadd.f32 0.0, %v512
  %v514 = vpop.f32.mrf.mxu0
  %v515 = vadd.f32 0.0, %v514
  %516 = vmatmul.bf16.gmra.mxu0 %v181
  %v517 = vpop.f32.mrf.mxu0
  %v518 = vadd.f32 0.0, %v517
  %v519 = vpop.f32.mrf.mxu0
  %v520 = vadd.f32 0.0, %v519
  %521 = vmatmul.bf16.gmra.mxu0 %v184
  %v522 = vpop.f32.mrf.mxu0
  %v523 = vadd.f32 0.0, %v522
  %v524 = vpop.f32.mrf.mxu0
  %v525 = vadd.f32 0.0, %v524
  %526 = vmatmul.bf16.gmra.mxu0 %v187
  %v527 = vpop.f32.mrf.mxu0
  %v528 = vadd.f32 0.0, %v527
  %v529 = vpop.f32.mrf.mxu0
  %v530 = vadd.f32 0.0, %v529
  %531 = vdwg.mxu0
  %532 = vmatpush.bf16.msra.mxu0 0
  %533 = vmatpush.bf16.msra.mxu0 0
  %534 = vmatpush.bf16.msra.mxu0 0
  %535 = vmatpush.bf16.msra.mxu0 0
  %536 = vmatpush.bf16.msra.mxu0 0
  %537 = vmatpush.bf16.msra.mxu0 0
  %538 = vmatpush.bf16.msra.mxu0 %v147
  %539 = vmatpush.bf16.msra.mxu0 %v139
  %540 = vmatmul.bf16.gmra.mxu0 %v166
  %v541 = vpop.f32.mrf.mxu0
  %v542 = vadd.f32 0.0, %v541
  %v543 = vpop.f32.mrf.mxu0
  %v544 = vadd.f32 0.0, %v543
  %545 = vmatmul.bf16.gmra.mxu0 %v169
  %v546 = vpop.f32.mrf.mxu0
  %v547 = vadd.f32 0.0, %v546
  %v548 = vpop.f32.mrf.mxu0
  %v549 = vadd.f32 0.0, %v548
  %550 = vmatmul.bf16.gmra.mxu0 %v172
  %v551 = vpop.f32.mrf.mxu0
  %v552 = vadd.f32 0.0, %v551
  %v553 = vpop.f32.mrf.mxu0
  %v554 = vadd.f32 0.0, %v553
  %555 = vmatmul.bf16.gmra.mxu0 %v175
  %v556 = vpop.f32.mrf.mxu0
  %v557 = vadd.f32 0.0, %v556
  %v558 = vpop.f32.mrf.mxu0
  %v559 = vadd.f32 0.0, %v558
  %560 = vmatmul.bf16.gmra.mxu0 %v178
  %v561 = vpop.f32.mrf.mxu0
  %v562 = vadd.f32 0.0, %v561
  %v563 = vpop.f32.mrf.mxu0
  %v564 = vadd.f32 0.0, %v563
  %565 = vmatmul.bf16.gmra.mxu0 %v181
  %v566 = vpop.f32.mrf.mxu0
  %v567 = vadd.f32 0.0, %v566
  %v568 = vpop.f32.mrf.mxu0
  %v569 = vadd.f32 0.0, %v568
  %570 = vmatmul.bf16.gmra.mxu0 %v184
  %v571 = vpop.f32.mrf.mxu0
  %v572 = vadd.f32 0.0, %v571
  %v573 = vpop.f32.mrf.mxu0
  %v574 = vadd.f32 0.0, %v573
  %575 = vmatmul.bf16.gmra.mxu0 %v187
  %v576 = vpop.f32.mrf.mxu0
  %v577 = vadd.f32 0.0, %v576
  %v578 = vpop.f32.mrf.mxu0
  %v579 = vadd.f32 0.0, %v578
  %580 = vdwg.mxu0
  %v581 = vmul.f32 %v199, 14.285714
  %v582 = vmul.f32 %v248, 14.285714
  %v583 = vmul.f32 %v297, 14.285714
  %v584 = vmul.f32 %v346, 14.285714
  %v585 = vmul.f32 %v395, 14.285714
  %v586 = vmul.f32 %v444, 14.285714
  %v587 = vmul.f32 %v493, 14.285714
  %v588 = vmul.f32 %v542, 14.285714
  %v589 = vmul.f32 %v201, 14.285714
  %v590 = vmul.f32 %v250, 14.285714
  %v591 = vmul.f32 %v299, 14.285714
  %v592 = vmul.f32 %v348, 14.285714
  %v593 = vmul.f32 %v397, 14.285714
  %v594 = vmul.f32 %v446, 14.285714
  %v595 = vmul.f32 %v495, 14.285714
  %v596 = vmul.f32 %v544, 14.285714
  %v597 = vmul.f32 %v204, 14.285714
  %v598 = vmul.f32 %v253, 14.285714
  %v599 = vmul.f32 %v302, 14.285714
  %v600 = vmul.f32 %v351, 14.285714
  %v601 = vmul.f32 %v400, 14.285714
  %v602 = vmul.f32 %v449, 14.285714
  %v603 = vmul.f32 %v498, 14.285714
  %v604 = vmul.f32 %v547, 14.285714
  %v605 = vmul.f32 %v206, 14.285714
  %v606 = vmul.f32 %v255, 14.285714
  %v607 = vmul.f32 %v304, 14.285714
  %v608 = vmul.f32 %v353, 14.285714
  %v609 = vmul.f32 %v402, 14.285714
  %v610 = vmul.f32 %v451, 14.285714
  %v611 = vmul.f32 %v500, 14.285714
  %v612 = vmul.f32 %v549, 14.285714
  %v613 = vmul.f32 %v209, 14.285714
  %v614 = vmul.f32 %v258, 14.285714
  %v615 = vmul.f32 %v307, 14.285714
  %v616 = vmul.f32 %v356, 14.285714
  %v617 = vmul.f32 %v405, 14.285714
  %v618 = vmul.f32 %v454, 14.285714
  %v619 = vmul.f32 %v503, 14.285714
  %v620 = vmul.f32 %v552, 14.285714
  %v621 = vmul.f32 %v211, 14.285714
  %v622 = vmul.f32 %v260, 14.285714
  %v623 = vmul.f32 %v309, 14.285714
  %v624 = vmul.f32 %v358, 14.285714
  %v625 = vmul.f32 %v407, 14.285714
  %v626 = vmul.f32 %v456, 14.285714
  %v627 = vmul.f32 %v505, 14.285714
  %v628 = vmul.f32 %v554, 14.285714
  %v629 = vmul.f32 %v214, 14.285714
  %v630 = vmul.f32 %v263, 14.285714
  %v631 = vmul.f32 %v312, 14.285714
  %v632 = vmul.f32 %v361, 14.285714
  %v633 = vmul.f32 %v410, 14.285714
  %v634 = vmul.f32 %v459, 14.285714
  %v635 = vmul.f32 %v508, 14.285714
  %v636 = vmul.f32 %v557, 14.285714
  %v637 = vmul.f32 %v216, 14.285714
  %v638 = vmul.f32 %v265, 14.285714
  %v639 = vmul.f32 %v314, 14.285714
  %v640 = vmul.f32 %v363, 14.285714
  %v641 = vmul.f32 %v412, 14.285714
  %v642 = vmul.f32 %v461, 14.285714
  %v643 = vmul.f32 %v510, 14.285714
  %v644 = vmul.f32 %v559, 14.285714
  %v645 = vmul.f32 %v219, 14.285714
  %v646 = vmul.f32 %v268, 14.285714
  %v647 = vmul.f32 %v317, 14.285714
  %v648 = vmul.f32 %v366, 14.285714
  %v649 = vmul.f32 %v415, 14.285714
  %v650 = vmul.f32 %v464, 14.285714
  %v651 = vmul.f32 %v513, 14.285714
  %v652 = vmul.f32 %v562, 14.285714
  %v653 = vmul.f32 %v221, 14.285714
  %v654 = vmul.f32 %v270, 14.285714
  %v655 = vmul.f32 %v319, 14.285714
  %v656 = vmul.f32 %v368, 14.285714
  %v657 = vmul.f32 %v417, 14.285714
  %v658 = vmul.f32 %v466, 14.285714
  %v659 = vmul.f32 %v515, 14.285714
  %v660 = vmul.f32 %v564, 14.285714
  %v661 = vmul.f32 %v224, 14.285714
  %v662 = vmul.f32 %v273, 14.285714
  %v663 = vmul.f32 %v322, 14.285714
  %v664 = vmul.f32 %v371, 14.285714
  %v665 = vmul.f32 %v420, 14.285714
  %v666 = vmul.f32 %v469, 14.285714
  %v667 = vmul.f32 %v518, 14.285714
  %v668 = vmul.f32 %v567, 14.285714
  %v669 = vmul.f32 %v226, 14.285714
  %v670 = vmul.f32 %v275, 14.285714
  %v671 = vmul.f32 %v324, 14.285714
  %v672 = vmul.f32 %v373, 14.285714
  %v673 = vmul.f32 %v422, 14.285714
  %v674 = vmul.f32 %v471, 14.285714
  %v675 = vmul.f32 %v520, 14.285714
  %v676 = vmul.f32 %v569, 14.285714
  %v677 = vmul.f32 %v229, 14.285714
  %v678 = vmul.f32 %v278, 14.285714
  %v679 = vmul.f32 %v327, 14.285714
  %v680 = vmul.f32 %v376, 14.285714
  %v681 = vmul.f32 %v425, 14.285714
  %v682 = vmul.f32 %v474, 14.285714
  %v683 = vmul.f32 %v523, 14.285714
  %v684 = vmul.f32 %v572, 14.285714
  %v685 = vmul.f32 %v231, 14.285714
  %v686 = vmul.f32 %v280, 14.285714
  %v687 = vmul.f32 %v329, 14.285714
  %v688 = vmul.f32 %v378, 14.285714
  %v689 = vmul.f32 %v427, 14.285714
  %v690 = vmul.f32 %v476, 14.285714
  %v691 = vmul.f32 %v525, 14.285714
  %v692 = vmul.f32 %v574, 14.285714
  %v693 = vmul.f32 %v234, 14.285714
  %v694 = vmul.f32 %v283, 14.285714
  %v695 = vmul.f32 %v332, 14.285714
  %v696 = vmul.f32 %v381, 14.285714
  %v697 = vmul.f32 %v430, 14.285714
  %v698 = vmul.f32 %v479, 14.285714
  %v699 = vmul.f32 %v528, 14.285714
  %v700 = vmul.f32 %v577, 14.285714
  %v701 = vmul.f32 %v236, 14.285714
  %v702 = vmul.f32 %v285, 14.285714
  %v703 = vmul.f32 %v334, 14.285714
  %v704 = vmul.f32 %v383, 14.285714
  %v705 = vmul.f32 %v432, 14.285714
  %v706 = vmul.f32 %v481, 14.285714
  %v707 = vmul.f32 %v530, 14.285714
  %v708 = vmul.f32 %v579, 14.285714
  %709 = vst [vmem:[%s2] sm:$0xff] %v581
  %710 = vst [vmem:[%s2 + $0x8] sm:$0xff] %v582
  %711 = vst [vmem:[%s2 + $0x10] sm:$0xff] %v583
  %712 = vst [vmem:[%s2 + $0x18] sm:$0xff] %v584
  %713 = vst [vmem:[%s2 + $0x20] sm:$0xff] %v585
  %714 = vst [vmem:[%s2 + $0x28] sm:$0xff] %v586
  %715 = vst [vmem:[%s2 + $0x30] sm:$0xff] %v587
  %716 = vst [vmem:[%s2 + $0x38] sm:$0xff] %v588
  %717 = vst [vmem:[%s2 + $0x40] sm:$0xff] %v589
  %718 = vst [vmem:[%s2 + $0x48] sm:$0xff] %v590
  %719 = vst [vmem:[%s2 + $0x50] sm:$0xff] %v591
  %720 = vst [vmem:[%s2 + $0x58] sm:$0xff] %v592
  %721 = vst [vmem:[%s2 + $0x60] sm:$0xff] %v593
  %722 = vst [vmem:[%s2 + $0x68] sm:$0xff] %v594
  %723 = vst [vmem:[%s2 + $0x70] sm:$0xff] %v595
  %724 = vst [vmem:[%s2 + $0x78] sm:$0xff] %v596
  %725 = vst [vmem:[%s2 + $0x80] sm:$0xff] %v597
  %726 = vst [vmem:[%s2 + $0x88] sm:$0xff] %v598
  %727 = vst [vmem:[%s2 + $0x90] sm:$0xff] %v599
  %728 = vst [vmem:[%s2 + $0x98] sm:$0xff] %v600
  %729 = vst [vmem:[%s2 + $0xa0] sm:$0xff] %v601
  %730 = vst [vmem:[%s2 + $0xa8] sm:$0xff] %v602
  %731 = vst [vmem:[%s2 + $0xb0] sm:$0xff] %v603
  %732 = vst [vmem:[%s2 + $0xb8] sm:$0xff] %v604
  %733 = vst [vmem:[%s2 + $0xc0] sm:$0xff] %v605
  %734 = vst [vmem:[%s2 + $0xc8] sm:$0xff] %v606
  %735 = vst [vmem:[%s2 + $0xd0] sm:$0xff] %v607
  %736 = vst [vmem:[%s2 + $0xd8] sm:$0xff] %v608
  %737 = vst [vmem:[%s2 + $0xe0] sm:$0xff] %v609
  %738 = vst [vmem:[%s2 + $0xe8] sm:$0xff] %v610
  %739 = vst [vmem:[%s2 + $0xf0] sm:$0xff] %v611
  %740 = vst [vmem:[%s2 + $0xf8] sm:$0xff] %v612
  %741 = vst [vmem:[%s2 + $0x100] sm:$0xff] %v613
  %742 = vst [vmem:[%s2 + $0x108] sm:$0xff] %v614
  %743 = vst [vmem:[%s2 + $0x110] sm:$0xff] %v615
  %744 = vst [vmem:[%s2 + $0x118] sm:$0xff] %v616
  %745 = vst [vmem:[%s2 + $0x120] sm:$0xff] %v617
  %746 = vst [vmem:[%s2 + $0x128] sm:$0xff] %v618
  %747 = vst [vmem:[%s2 + $0x130] sm:$0xff] %v619
  %748 = vst [vmem:[%s2 + $0x138] sm:$0xff] %v620
  %749 = vst [vmem:[%s2 + $0x140] sm:$0xff] %v621
  %750 = vst [vmem:[%s2 + $0x148] sm:$0xff] %v622
  %751 = vst [vmem:[%s2 + $0x150] sm:$0xff] %v623
  %752 = vst [vmem:[%s2 + $0x158] sm:$0xff] %v624
  %753 = vst [vmem:[%s2 + $0x160] sm:$0xff] %v625
  %754 = vst [vmem:[%s2 + $0x168] sm:$0xff] %v626
  %755 = vst [vmem:[%s2 + $0x170] sm:$0xff] %v627
  %756 = vst [vmem:[%s2 + $0x178] sm:$0xff] %v628
  %757 = vst [vmem:[%s2 + $0x180] sm:$0xff] %v629
  %758 = vst [vmem:[%s2 + $0x188] sm:$0xff] %v630
  %759 = vst [vmem:[%s2 + $0x190] sm:$0xff] %v631
  %760 = vst [vmem:[%s2 + $0x198] sm:$0xff] %v632
  %761 = vst [vmem:[%s2 + $0x1a0] sm:$0xff] %v633
  %762 = vst [vmem:[%s2 + $0x1a8] sm:$0xff] %v634
  %763 = vst [vmem:[%s2 + $0x1b0] sm:$0xff] %v635
  %764 = vst [vmem:[%s2 + $0x1b8] sm:$0xff] %v636
  %765 = vst [vmem:[%s2 + $0x1c0] sm:$0xff] %v637
  %766 = vst [vmem:[%s2 + $0x1c8] sm:$0xff] %v638
  %767 = vst [vmem:[%s2 + $0x1d0] sm:$0xff] %v639
  %768 = vst [vmem:[%s2 + $0x1d8] sm:$0xff] %v640
  %769 = vst [vmem:[%s2 + $0x1e0] sm:$0xff] %v641
  %770 = vst [vmem:[%s2 + $0x1e8] sm:$0xff] %v642
  %771 = vst [vmem:[%s2 + $0x1f0] sm:$0xff] %v643
  %772 = vst [vmem:[%s2 + $0x1f8] sm:$0xff] %v644
  %773 = vst [vmem:[%s2 + $0x200] sm:$0xff] %v645
  %774 = vst [vmem:[%s2 + $0x208] sm:$0xff] %v646
  %775 = vst [vmem:[%s2 + $0x210] sm:$0xff] %v647
  %776 = vst [vmem:[%s2 + $0x218] sm:$0xff] %v648
  %777 = vst [vmem:[%s2 + $0x220] sm:$0xff] %v649
  %778 = vst [vmem:[%s2 + $0x228] sm:$0xff] %v650
  %779 = vst [vmem:[%s2 + $0x230] sm:$0xff] %v651
  %780 = vst [vmem:[%s2 + $0x238] sm:$0xff] %v652
  %781 = vst [vmem:[%s2 + $0x240] sm:$0xff] %v653
  %782 = vst [vmem:[%s2 + $0x248] sm:$0xff] %v654
  %783 = vst [vmem:[%s2 + $0x250] sm:$0xff] %v655
  %784 = vst [vmem:[%s2 + $0x258] sm:$0xff] %v656
  %785 = vst [vmem:[%s2 + $0x260] sm:$0xff] %v657
  %786 = vst [vmem:[%s2 + $0x268] sm:$0xff] %v658
  %787 = vst [vmem:[%s2 + $0x270] sm:$0xff] %v659
  %788 = vst [vmem:[%s2 + $0x278] sm:$0xff] %v660
  %789 = vst [vmem:[%s2 + $0x280] sm:$0xff] %v661
  %790 = vst [vmem:[%s2 + $0x288] sm:$0xff] %v662
  %791 = vst [vmem:[%s2 + $0x290] sm:$0xff] %v663
  %792 = vst [vmem:[%s2 + $0x298] sm:$0xff] %v664
  %793 = vst [vmem:[%s2 + $0x2a0] sm:$0xff] %v665
  %794 = vst [vmem:[%s2 + $0x2a8] sm:$0xff] %v666
  %795 = vst [vmem:[%s2 + $0x2b0] sm:$0xff] %v667
  %796 = vst [vmem:[%s2 + $0x2b8] sm:$0xff] %v668
  %797 = vst [vmem:[%s2 + $0x2c0] sm:$0xff] %v669
  %798 = vst [vmem:[%s2 + $0x2c8] sm:$0xff] %v670
  %799 = vst [vmem:[%s2 + $0x2d0] sm:$0xff] %v671
  %800 = vst [vmem:[%s2 + $0x2d8] sm:$0xff] %v672
  %801 = vst [vmem:[%s2 + $0x2e0] sm:$0xff] %v673
  %802 = vst [vmem:[%s2 + $0x2e8] sm:$0xff] %v674
  %803 = vst [vmem:[%s2 + $0x2f0] sm:$0xff] %v675
  %804 = vst [vmem:[%s2 + $0x2f8] sm:$0xff] %v676
  %805 = vst [vmem:[%s2 + $0x300] sm:$0xff] %v677
  %806 = vst [vmem:[%s2 + $0x308] sm:$0xff] %v678
  %807 = vst [vmem:[%s2 + $0x310] sm:$0xff] %v679
  %808 = vst [vmem:[%s2 + $0x318] sm:$0xff] %v680
  %809 = vst [vmem:[%s2 + $0x320] sm:$0xff] %v681
  %810 = vst [vmem:[%s2 + $0x328] sm:$0xff] %v682
  %811 = vst [vmem:[%s2 + $0x330] sm:$0xff] %v683
  %812 = vst [vmem:[%s2 + $0x338] sm:$0xff] %v684
  %813 = vst [vmem:[%s2 + $0x340] sm:$0xff] %v685
  %814 = vst [vmem:[%s2 + $0x348] sm:$0xff] %v686
  %815 = vst [vmem:[%s2 + $0x350] sm:$0xff] %v687
  %816 = vst [vmem:[%s2 + $0x358] sm:$0xff] %v688
  %817 = vst [vmem:[%s2 + $0x360] sm:$0xff] %v689
  %818 = vst [vmem:[%s2 + $0x368] sm:$0xff] %v690
  %819 = vst [vmem:[%s2 + $0x370] sm:$0xff] %v691
  %820 = vst [vmem:[%s2 + $0x378] sm:$0xff] %v692
  %821 = vst [vmem:[%s2 + $0x380] sm:$0xff] %v693
  %822 = vst [vmem:[%s2 + $0x388] sm:$0xff] %v694
  %823 = vst [vmem:[%s2 + $0x390] sm:$0xff] %v695
  %824 = vst [vmem:[%s2 + $0x398] sm:$0xff] %v696
  %825 = vst [vmem:[%s2 + $0x3a0] sm:$0xff] %v697
  %826 = vst [vmem:[%s2 + $0x3a8] sm:$0xff] %v698
  %827 = vst [vmem:[%s2 + $0x3b0] sm:$0xff] %v699
  %828 = vst [vmem:[%s2 + $0x3b8] sm:$0xff] %v700
  %829 = vst [vmem:[%s2 + $0x3c0] sm:$0xff] %v701
  %830 = vst [vmem:[%s2 + $0x3c8] sm:$0xff] %v702
  %831 = vst [vmem:[%s2 + $0x3d0] sm:$0xff] %v703
  %832 = vst [vmem:[%s2 + $0x3d8] sm:$0xff] %v704
  %833 = vst [vmem:[%s2 + $0x3e0] sm:$0xff] %v705
  %834 = vst [vmem:[%s2 + $0x3e8] sm:$0xff] %v706
  %835 = vst [vmem:[%s2 + $0x3f0] sm:$0xff] %v707
  %836 = vst [vmem:[%s2 + $0x3f8] sm:$0xff] %v708
  // Predicated region
  $region10: #{moco_forward.9} parent=0 // pred_check
    _
  $region11: #{moco_forward.9} parent=0 // pred_check_branch
    %838 = sbr.rel (0) target = $region13
  $region12: #{moco_forward.9} parent=0 // pred_region
    _
  $region13: #{moco_forward.9} parent=0 // pred_fallthru
    _
  // Predicated region
  $region14: #{moco_forward.9} parent=0 // pred_check
    _
  $region15: #{moco_forward.9} parent=0 // pred_check_branch
    %840 = sbr.rel (0) target = $region17
  $region16: #{moco_forward.9} parent=0 // pred_region
    _
  $region17: #{moco_forward.9} parent=0 // pred_fallthru
    _

</llo_original>
